<compile_context>
chip_gen: v7x
topology: tpu7x:2x2x1
jax: 0.10.0
libtpu: 0.0.40
codegen_flags: <defaults>
</compile_context>

<pallas_src>
import functools

import jax
import jax.numpy as jnp
from jax.experimental import pallas as pl
from jax.experimental.pallas import tpu as pltpu

EPS = 1e-5                    # PyTorch BatchNorm3d default eps
MXU_DTYPE = jnp.bfloat16      # MXU operand dtype (f32 accumulation)
ACT_DTYPE = jnp.bfloat16      # activation storage dtype between layers
N_TAPS_PAD = 32               # 27 real taps + 5 zero taps -> K = 32*Cin (128-aligned)


# ----------------------------- Pallas kernels ------------------------------
def _mm_bias_kernel(p_ref, w_ref, b_ref, o_ref, *, relu):
    """out = patches @ W + bias (+ReLU).  BN scale pre-folded into W."""
    acc = jnp.dot(p_ref[...], w_ref[...], preferred_element_type=jnp.float32)
    acc = acc + b_ref[...]
    if relu:
        acc = jnp.maximum(acc, 0.0)
    o_ref[...] = acc.astype(o_ref.dtype)


def _mm_bias_res_kernel(p_ref, w_ref, r_ref, wr_ref, b_ref, o_ref, *, relu):
    """out = patches @ W + res_src @ W_redir + bias (+ReLU).

    Fuses the 1x1x1 redir conv (+ its BN) into the transposed-conv kernel so
    the residual never round-trips through HBM as a separate tensor."""
    acc = jnp.dot(p_ref[...], w_ref[...], preferred_element_type=jnp.float32)
    acc = acc + jnp.dot(r_ref[...], wr_ref[...],
                        preferred_element_type=jnp.float32)
    acc = acc + b_ref[...]
    if relu:
        acc = jnp.maximum(acc, 0.0)
    o_ref[...] = acc.astype(o_ref.dtype)


def _pick_tm(M):
    """Single grid step for small M; otherwise >=128-row tiles (v7x 2 TCs)."""
    if M <= 256:
        return M
    for tm in (512, 256, 128, 64, 32, 16, 8):
        if M % tm == 0 and M // tm >= 2:
            return tm
    return M


def fused_matmul(patches, wmat, bias, *, relu, out_dtype, res=None, res_w=None):
    """(M,K)@(K,Nout) [+ (M,Kr)@(Kr,Nout)] + bias (+ReLU), tiled over M only.

    bf16 operands / f32 accumulation; outputs exactly Nout lanes wide so no
    post-kernel channel slicing is needed."""
    M, K = patches.shape
    Nout = wmat.shape[1]
    tm = _pick_tm(M)
    grid = (M // tm,)

    if res is None:
        kernel = functools.partial(_mm_bias_kernel, relu=relu)
        args = (patches, wmat, bias)
        in_specs = [
            pl.BlockSpec((tm, K), lambda i: (i, 0)),
            pl.BlockSpec((K, Nout), lambda i: (0, 0)),
            pl.BlockSpec((1, Nout), lambda i: (0, 0)),
        ]
    else:
        Kr = res.shape[1]
        kernel = functools.partial(_mm_bias_res_kernel, relu=relu)
        args = (patches, wmat, res, res_w, bias)
        in_specs = [
            pl.BlockSpec((tm, K), lambda i: (i, 0)),
            pl.BlockSpec((K, Nout), lambda i: (0, 0)),
            pl.BlockSpec((tm, Kr), lambda i: (i, 0)),
            pl.BlockSpec((Kr, Nout), lambda i: (0, 0)),
            pl.BlockSpec((1, Nout), lambda i: (0, 0)),
        ]

    return pl.pallas_call(
        kernel,
        out_shape=jax.ShapeDtypeStruct((M, Nout), out_dtype),
        grid=grid,
        in_specs=in_specs,
        out_specs=pl.BlockSpec((tm, Nout), lambda i: (i, 0)),
        compiler_params=pltpu.CompilerParams(
            dimension_semantics=("parallel",)),
    )(*args)


# ------------------------------- JAX glue -----------------------------------
def fold_bn(prm):
    scale = prm["gamma"] / jnp.sqrt(prm["var"] + EPS)
    bias = prm["beta"] - prm["mean"] * scale
    return scale, bias


def im2col_3d(x, stride):
    """x: (N,D,H,W,C) bf16 -> (N*Do*Ho*Wo, 32*C), tap-major then channel.

    27 real taps (k=3, pad=1) plus 5 zero taps so K is a multiple of 128."""
    k, pad = 3, 1
    N, D, H, W, C = x.shape
    xp = jnp.pad(x, ((0, 0), (pad, pad), (pad, pad), (pad, pad), (0, 0)))
    Dp, Hp, Wp = D + 2 * pad, H + 2 * pad, W + 2 * pad
    Do = (Dp - k) // stride + 1
    Ho = (Hp - k) // stride + 1
    Wo = (Wp - k) // stride + 1
    cols = []
    for kd in range(k):
        for kh in range(k):
            for kw in range(k):
                cols.append(
                    xp[:, kd:kd + stride * (Do - 1) + 1:stride,
                          kh:kh + stride * (Ho - 1) + 1:stride,
                          kw:kw + stride * (Wo - 1) + 1:stride, :])
    cols.extend([jnp.zeros_like(cols[0])] * (N_TAPS_PAD - k ** 3))
    patches = jnp.stack(cols, axis=-2)            # (N, Do, Ho, Wo, 32, C)
    return patches.reshape(N * Do * Ho * Wo, N_TAPS_PAD * C), (N, Do, Ho, Wo)


def _conv_weight(prm):
    """Folded (32*Cin, Cout) bf16 weight + (1, Cout) f32 bias for Conv3d+BN."""
    w = prm["w"]                                  # (Cout, Cin, 3, 3, 3)
    Cout, Cin = w.shape[0], w.shape[1]
    scale, bias = fold_bn(prm)
    wmat = jnp.transpose(w, (2, 3, 4, 1, 0)).reshape(27 * Cin, Cout)
    wmat = wmat * scale[None, :]                  # fold BN scale into columns
    wmat = jnp.pad(wmat, ((0, (N_TAPS_PAD - 27) * Cin), (0, 0)))
    return wmat.astype(MXU_DTYPE), bias.reshape(1, Cout).astype(jnp.float32), Cout


def convbn3d(x, prm, stride):
    """Conv3d(k=3, stride, pad=1, bias=False) + BN + ReLU (one pallas_call)."""
    wmat, bias, Cout = _conv_weight(prm)
    patches, (N, Do, Ho, Wo) = im2col_3d(x, stride)
    out = fused_matmul(patches, wmat, bias, relu=True, out_dtype=ACT_DTYPE)
    return out.reshape(N, Do, Ho, Wo, Cout)


# -------- stride-2 transposed conv: all 8 parity phases in ONE matmul --------
# Per dimension (stride 2, k=3, pad=1, output_pad=1):
#   out[2m]   = x[m]   * w[1]
#   out[2m+1] = x[m]   * w[2] + x[m+1] * w[0]      (x[D] == 0)
# (parity, input offset) -> kernel tap index; missing combos contribute zero.
_KIDX = {(0, 0): 1, (1, 0): 2, (1, 1): 0}


def _deconv_union_weight(wt, scale):
    """(8*Cin, 8*Cout): row blocks = input offset (od,oh,ow) in {0,1}^3,
    column blocks = output parity (pd,ph,pw) in {0,1}^3; BN scale folded."""
    Cin, Cout = wt.shape[0], wt.shape[1]
    rows = []
    for od in (0, 1):
        for oh in (0, 1):
            for ow in (0, 1):
                blocks = []
                for pd in (0, 1):
                    for ph in (0, 1):
                        for pw in (0, 1):
                            kd = _KIDX.get((pd, od))
                            kh = _KIDX.get((ph, oh))
                            kw = _KIDX.get((pw, ow))
                            if kd is None or kh is None or kw is None:
                                blocks.append(jnp.zeros((Cin, Cout), jnp.float32))
                            else:
                                blocks.append(wt[:, :, kd, kh, kw] * scale[None, :])
                rows.append(jnp.concatenate(blocks, axis=1))
    return jnp.concatenate(rows, axis=0)


def deconvbn3d_fused(x, prm, res_src, res_prm, out_dtype):
    """ConvTranspose3d(k=3, s=2, pad=1, out_pad=1, bias=False) + BN, fused with
    the 1x1x1 redir conv + BN residual and the trailing ReLU, as ONE kernel.

    All 8 output parities are computed by a single (M, 8*Cin) x (8*Cin, 8*Cout)
    matmul plus a block-diagonal residual matmul; no zero-stuffed volume and no
    per-phase pallas_calls."""
    wt = prm["w"]                                 # (Cin, Cout, 3, 3, 3)
    Cin, Cout = wt.shape[0], wt.shape[1]
    scale, bias = fold_bn(prm)
    rscale, rbias = fold_bn(res_prm)
    Cr = res_prm["w"].shape[1]

    w_union = _deconv_union_weight(wt, scale).astype(MXU_DTYPE)        # (8Cin, 8Cout)
    wr = res_prm["w"][:, :, 0, 0, 0].T * rscale[None, :]               # (Cr, Cout)
    wr_bd = jnp.kron(jnp.eye(8, dtype=wr.dtype), wr).astype(MXU_DTYPE)  # block-diag
    bias_all = jnp.tile(bias + rbias, 8).reshape(1, 8 * Cout).astype(jnp.float32)

    N, D, H, W, _ = x.shape
    M = N * D * H * W
    # Union-tap patches over offsets {0,1}^3 (one-cell zero pad on the high side).
    xpad = jnp.pad(x, ((0, 0), (0, 1), (0, 1), (0, 1), (0, 0)))
    cols = [xpad[:, od:od + D, oh:oh + H, ow:ow + W, :]
            for od in (0, 1) for oh in (0, 1) for ow in (0, 1)]
    patches = jnp.stack(cols, axis=-2).reshape(M, 8 * Cin)
    # Residual space-to-depth: one reshape/transpose instead of 8 strided gathers.
    res = res_src.reshape(N, D, 2, H, 2, W, 2, Cr)
    res = jnp.transpose(res, (0, 1, 3, 5, 2, 4, 6, 7)).reshape(M, 8 * Cr)

    out = fused_matmul(patches, w_union, bias_all, relu=True,
                       out_dtype=out_dtype, res=res, res_w=wr_bd)

    # Parity interleave: y[:, 2d+pd, 2h+ph, 2w+pw, :] = column block (pd,ph,pw).
    y = out.reshape(N, D, H, W, 2, 2, 2, Cout)
    y = jnp.transpose(y, (0, 1, 4, 2, 5, 3, 6, 7))
    return y.reshape(N, 2 * D, 2 * H, 2 * W, Cout)


@jax.jit
def hourglass_forward(x_ncdhw, params):
    x = jnp.transpose(x_ncdhw, (0, 2, 3, 4, 1)).astype(ACT_DTYPE)    # -> NDHWC bf16
    c1 = convbn3d(x, params["conv1"], stride=2)
    c2 = convbn3d(c1, params["conv2"], stride=1)
    c3 = convbn3d(c2, params["conv3"], stride=2)
    c4 = convbn3d(c3, params["conv4"], stride=1)
    # conv5/conv6: transposed conv + BN + fused redir residual + ReLU (1 call each)
    c5 = deconvbn3d_fused(c4, params["conv5"], c2, params["redir2"], ACT_DTYPE)
    c6 = deconvbn3d_fused(c5, params["conv6"], x, params["redir1"], jnp.float32)
    return jnp.transpose(c6, (0, 4, 1, 2, 3))                        # -> NCDHW f32


# ------------------------------ parameters -----------------------------------
def layer_params(key, wshape, bn_c):
    k1, k2, k3, k4, k5 = jax.random.split(key, 5)
    return dict(
        w=0.1 * jax.random.normal(k1, wshape, jnp.float32),
        gamma=1.0 + 0.1 * jax.random.normal(k2, (bn_c,), jnp.float32),
        beta=0.1 * jax.random.normal(k3, (bn_c,), jnp.float32),
        mean=0.05 * jax.random.normal(k4, (bn_c,), jnp.float32),
        var=0.5 + jax.random.uniform(k5, (bn_c,), jnp.float32),
    )


def init_params(key, C):
    keys = jax.random.split(key, 8)
    return {
        "conv1": layer_params(keys[0], (2 * C, C, 3, 3, 3), 2 * C),
        "conv2": layer_params(keys[1], (2 * C, 2 * C, 3, 3, 3), 2 * C),
        "conv3": layer_params(keys[2], (4 * C, 2 * C, 3, 3, 3), 4 * C),
        "conv4": layer_params(keys[3], (4 * C, 4 * C, 3, 3, 3), 4 * C),
        # ConvTranspose3d weights are (Cin, Cout, k, k, k) in PyTorch.
        "conv5": layer_params(keys[4], (4 * C, 2 * C, 3, 3, 3), 2 * C),
        "conv6": layer_params(keys[5], (2 * C, C, 3, 3, 3), C),
        "redir1": layer_params(keys[6], (C, C, 1, 1, 1), C),
        "redir2": layer_params(keys[7], (2 * C, 2 * C, 1, 1, 1), 2 * C),
    }


# --------------------------- pure-JAX reference ------------------------------
def ref_forward(x, p):
    def bn(y, prm):
        scale = prm["gamma"] / jnp.sqrt(prm["var"] + EPS)
        bias = prm["beta"] - prm["mean"] * scale
        return y * scale[None, :, None, None, None] + bias[None, :, None, None, None]

    def conv(y, prm, stride, pad):
        return bn(jax.lax.conv_general_dilated(
            y, prm["w"], window_strides=(stride,) * 3, padding=[(pad, pad)] * 3,
            dimension_numbers=("NCDHW", "OIDHW", "NCDHW")), prm)

    def convT(y, prm):
        w = jnp.transpose(jnp.flip(prm["w"], axis=(2, 3, 4)), (1, 0, 2, 3, 4))
        return bn(jax.lax.conv_general_dilated(
            y, w, window_strides=(1, 1, 1), padding=[(1, 2)] * 3,
            lhs_dilation=(2, 2, 2),
            dimension_numbers=("NCDHW", "OIDHW", "NCDHW")), prm)

    relu = lambda t: jnp.maximum(t, 0.0)
    c1 = relu(conv(x, p["conv1"], 2, 1))
    c2 = relu(conv(c1, p["conv2"], 1, 1))
    c3 = relu(conv(c2, p["conv3"], 2, 1))
    c4 = relu(conv(c3, p["conv4"], 1, 1))
    c5 = relu(convT(c4, p["conv5"]) + conv(c2, p["redir2"], 1, 0))
    c6 = relu(convT(c5, p["conv6"]) + conv(x, p["redir1"], 1, 0))
    return c6


# ---------------------------------- main -------------------------------------
if __name__ == "__main__":
    key = jax.random.PRNGKey(0)
    kx, kp = jax.random.split(key)
    N, C, D, H, W = 2, 4, 8, 16, 16   # (batch, in_channels, disp, height, width)
    x = jax.random.normal(kx, (N, C, D, H, W), jnp.float32)
    params = init_params(kp, C)

    out = jax.block_until_ready(hourglass_forward(x, params))
    assert out.shape == (N, C, D, H, W), out.shape

    ref = jax.block_until_ready(ref_forward(x, params))
    rel_err = float(jnp.max(jnp.abs(out - ref)) / (jnp.max(jnp.abs(ref)) + 1e-6))
    assert rel_err < 2e-2, f"mismatch vs reference: rel_err={rel_err}"

    print("KERNEL_OK")
</pallas_src>

<mosaic_0001>
module attributes {stable_mosaic.version = 11 : i64} {
  func.func @_mm_bias_kernel(%arg0: i32, %arg1: memref<256x128xbf16, #tpu.memory_space<vmem>>, %arg2: memref<128x8xbf16, #tpu.memory_space<vmem>>, %arg3: memref<1x8xf32, #tpu.memory_space<vmem>>, %arg4: memref<256x8xbf16, #tpu.memory_space<vmem>>) attributes {dimension_semantics = [#tpu.dimension_semantics<parallel>], iteration_bounds = array<i64: 2>, scalar_prefetch = 0 : i64, scratch_operands = 0 : i64, tpu.core_type = #tpu.core_type<tc>, window_params = [{transform_indices = @transform_0, window_bounds = array<i64: 256, 128>}, {pipeline_mode = #tpu.pipeline_mode<synchronous>, transform_indices = @transform_1, window_bounds = array<i64: 128, 8>}, {pipeline_mode = #tpu.pipeline_mode<synchronous>, transform_indices = @transform_2, window_bounds = array<i64: 1, 8>}, {transform_indices = @transform_3, window_bounds = array<i64: 256, 8>}]} {
    %c0 = arith.constant 0 : index
    %c0_0 = arith.constant 0 : index
    %0 = vector.load %arg1[%c0, %c0_0] : memref<256x128xbf16, #tpu.memory_space<vmem>>, vector<256x128xbf16>
    %c0_1 = arith.constant 0 : index
    %c0_2 = arith.constant 0 : index
    %1 = vector.load %arg2[%c0_1, %c0_2] : memref<128x8xbf16, #tpu.memory_space<vmem>>, vector<128x8xbf16>
    %cst = arith.constant dense<0.000000e+00> : vector<256x8xf32>
    %2 = tpu.matmul %0, %1, %cst {dimension_numbers = #tpu.dot_dimension_numbers<[1], [0], [0], [1], [0, 0, 1, 1], [], []>} : vector<256x128xbf16>, vector<128x8xbf16>, vector<256x8xf32> -> vector<256x8xf32>
    %c0_3 = arith.constant 0 : index
    %c0_4 = arith.constant 0 : index
    %3 = vector.load %arg3[%c0_3, %c0_4] : memref<1x8xf32, #tpu.memory_space<vmem>>, vector<1x8xf32>
    %4 = vector.broadcast %3 : vector<1x8xf32> to vector<256x8xf32>
    %5 = arith.addf %2, %4 : vector<256x8xf32>
    %cst_5 = arith.constant 0.000000e+00 : f32
    %6 = vector.broadcast %cst_5 : f32 to vector<256x8xf32>
    %7 = arith.maximumf %5, %6 : vector<256x8xf32>
    %8 = arith.truncf %7 : vector<256x8xf32> to vector<256x8xbf16>
    %c0_6 = arith.constant 0 : index
    %c0_7 = arith.constant 0 : index
    %9 = vector.load %arg4[%c0_6, %c0_7] : memref<256x8xbf16, #tpu.memory_space<vmem>>, vector<256x8xbf16>
    tpu.vector_store %arg4[%c0_6, %c0_7], %8 {strides = array<i32>} : memref<256x8xbf16, #tpu.memory_space<vmem>>, vector<256x8xbf16>,
    return
  }
  func.func @transform_0(%arg0: i32) -> (i32, i32) {
    %c0_i32 = arith.constant 0 : i32
    %c0_i32_0 = arith.constant 0 : i32
    return %arg0, %c0_i32 : i32, i32
  }
  func.func @transform_1(%arg0: i32) -> (i32, i32) {
    %c0_i32 = arith.constant 0 : i32
    %c0_i32_0 = arith.constant 0 : i32
    %c0_i32_1 = arith.constant 0 : i32
    return %c0_i32, %c0_i32_0 : i32, i32
  }
  func.func @transform_2(%arg0: i32) -> (i32, i32) {
    %c0_i32 = arith.constant 0 : i32
    %c0_i32_0 = arith.constant 0 : i32
    %c0_i32_1 = arith.constant 0 : i32
    return %c0_i32, %c0_i32_0 : i32, i32
  }
  func.func @transform_3(%arg0: i32) -> (i32, i32) {
    %c0_i32 = arith.constant 0 : i32
    %c0_i32_0 = arith.constant 0 : i32
    return %arg0, %c0_i32 : i32, i32
  }
}

module attributes {stable_mosaic.version = 11 : i64} {
  func.func @_mm_bias_kernel(%arg0: i32, %arg1: memref<256x256xbf16, #tpu.memory_space<vmem>>, %arg2: memref<256x8xbf16, #tpu.memory_space<vmem>>, %arg3: memref<1x8xf32, #tpu.memory_space<vmem>>, %arg4: memref<256x8xbf16, #tpu.memory_space<vmem>>) attributes {dimension_semantics = [#tpu.dimension_semantics<parallel>], iteration_bounds = array<i64: 2>, scalar_prefetch = 0 : i64, scratch_operands = 0 : i64, tpu.core_type = #tpu.core_type<tc>, window_params = [{transform_indices = @transform_0, window_bounds = array<i64: 256, 256>}, {pipeline_mode = #tpu.pipeline_mode<synchronous>, transform_indices = @transform_1, window_bounds = array<i64: 256, 8>}, {pipeline_mode = #tpu.pipeline_mode<synchronous>, transform_indices = @transform_2, window_bounds = array<i64: 1, 8>}, {transform_indices = @transform_3, window_bounds = array<i64: 256, 8>}]} {
    %c0 = arith.constant 0 : index
    %c0_0 = arith.constant 0 : index
    %0 = vector.load %arg1[%c0, %c0_0] : memref<256x256xbf16, #tpu.memory_space<vmem>>, vector<256x256xbf16>
    %c0_1 = arith.constant 0 : index
    %c0_2 = arith.constant 0 : index
    %1 = vector.load %arg2[%c0_1, %c0_2] : memref<256x8xbf16, #tpu.memory_space<vmem>>, vector<256x8xbf16>
    %cst = arith.constant dense<0.000000e+00> : vector<256x8xf32>
    %2 = tpu.matmul %0, %1, %cst {dimension_numbers = #tpu.dot_dimension_numbers<[1], [0], [0], [1], [0, 0, 1, 1], [], []>} : vector<256x256xbf16>, vector<256x8xbf16>, vector<256x8xf32> -> vector<256x8xf32>
    %c0_3 = arith.constant 0 : index
    %c0_4 = arith.constant 0 : index
    %3 = vector.load %arg3[%c0_3, %c0_4] : memref<1x8xf32, #tpu.memory_space<vmem>>, vector<1x8xf32>
    %4 = vector.broadcast %3 : vector<1x8xf32> to vector<256x8xf32>
    %5 = arith.addf %2, %4 : vector<256x8xf32>
    %cst_5 = arith.constant 0.000000e+00 : f32
    %6 = vector.broadcast %cst_5 : f32 to vector<256x8xf32>
    %7 = arith.maximumf %5, %6 : vector<256x8xf32>
    %8 = arith.truncf %7 : vector<256x8xf32> to vector<256x8xbf16>
    %c0_6 = arith.constant 0 : index
    %c0_7 = arith.constant 0 : index
    %9 = vector.load %arg4[%c0_6, %c0_7] : memref<256x8xbf16, #tpu.memory_space<vmem>>, vector<256x8xbf16>
    tpu.vector_store %arg4[%c0_6, %c0_7], %8 {strides = array<i32>} : memref<256x8xbf16, #tpu.memory_space<vmem>>, vector<256x8xbf16>,
    return
  }
  func.func @transform_0(%arg0: i32) -> (i32, i32) {
    %c0_i32 = arith.constant 0 : i32
    %c0_i32_0 = arith.constant 0 : i32
    return %arg0, %c0_i32 : i32, i32
  }
  func.func @transform_1(%arg0: i32) -> (i32, i32) {
    %c0_i32 = arith.constant 0 : i32
    %c0_i32_0 = arith.constant 0 : i32
    %c0_i32_1 = arith.constant 0 : i32
    return %c0_i32, %c0_i32_0 : i32, i32
  }
  func.func @transform_2(%arg0: i32) -> (i32, i32) {
    %c0_i32 = arith.constant 0 : i32
    %c0_i32_0 = arith.constant 0 : i32
    %c0_i32_1 = arith.constant 0 : i32
    return %c0_i32, %c0_i32_0 : i32, i32
  }
  func.func @transform_3(%arg0: i32) -> (i32, i32) {
    %c0_i32 = arith.constant 0 : i32
    %c0_i32_0 = arith.constant 0 : i32
    return %arg0, %c0_i32 : i32, i32
  }
}

module attributes {stable_mosaic.version = 11 : i64} {
  func.func @_mm_bias_kernel(%arg0: i32, %arg1: memref<64x256xbf16, #tpu.memory_space<vmem>>, %arg2: memref<256x16xbf16, #tpu.memory_space<vmem>>, %arg3: memref<1x16xf32, #tpu.memory_space<vmem>>, %arg4: memref<64x16xbf16, #tpu.memory_space<vmem>>) attributes {dimension_semantics = [#tpu.dimension_semantics<parallel>], iteration_bounds = array<i64: 1>, scalar_prefetch = 0 : i64, scratch_operands = 0 : i64, tpu.core_type = #tpu.core_type<tc>, window_params = [{transform_indices = @transform_0, window_bounds = array<i64: 64, 256>}, {pipeline_mode = #tpu.pipeline_mode<synchronous>, transform_indices = @transform_1, window_bounds = array<i64: 256, 16>}, {pipeline_mode = #tpu.pipeline_mode<synchronous>, transform_indices = @transform_2, window_bounds = array<i64: 1, 16>}, {transform_indices = @transform_3, window_bounds = array<i64: 64, 16>}]} {
    %c0 = arith.constant 0 : index
    %c0_0 = arith.constant 0 : index
    %0 = vector.load %arg1[%c0, %c0_0] : memref<64x256xbf16, #tpu.memory_space<vmem>>, vector<64x256xbf16>
    %c0_1 = arith.constant 0 : index
    %c0_2 = arith.constant 0 : index
    %1 = vector.load %arg2[%c0_1, %c0_2] : memref<256x16xbf16, #tpu.memory_space<vmem>>, vector<256x16xbf16>
    %cst = arith.constant dense<0.000000e+00> : vector<64x16xf32>
    %2 = tpu.matmul %0, %1, %cst {dimension_numbers = #tpu.dot_dimension_numbers<[1], [0], [0], [1], [0, 0, 1, 1], [], []>} : vector<64x256xbf16>, vector<256x16xbf16>, vector<64x16xf32> -> vector<64x16xf32>
    %c0_3 = arith.constant 0 : index
    %c0_4 = arith.constant 0 : index
    %3 = vector.load %arg3[%c0_3, %c0_4] : memref<1x16xf32, #tpu.memory_space<vmem>>, vector<1x16xf32>
    %4 = vector.broadcast %3 : vector<1x16xf32> to vector<64x16xf32>
    %5 = arith.addf %2, %4 : vector<64x16xf32>
    %cst_5 = arith.constant 0.000000e+00 : f32
    %6 = vector.broadcast %cst_5 : f32 to vector<64x16xf32>
    %7 = arith.maximumf %5, %6 : vector<64x16xf32>
    %8 = arith.truncf %7 : vector<64x16xf32> to vector<64x16xbf16>
    %c0_6 = arith.constant 0 : index
    %c0_7 = arith.constant 0 : index
    %9 = vector.load %arg4[%c0_6, %c0_7] : memref<64x16xbf16, #tpu.memory_space<vmem>>, vector<64x16xbf16>
    tpu.vector_store %arg4[%c0_6, %c0_7], %8 {strides = array<i32>} : memref<64x16xbf16, #tpu.memory_space<vmem>>, vector<64x16xbf16>,
    return
  }
  func.func @transform_0(%arg0: i32) -> (i32, i32) {
    %c0_i32 = arith.constant 0 : i32
    %c0_i32_0 = arith.constant 0 : i32
    return %arg0, %c0_i32 : i32, i32
  }
  func.func @transform_1(%arg0: i32) -> (i32, i32) {
    %c0_i32 = arith.constant 0 : i32
    %c0_i32_0 = arith.constant 0 : i32
    %c0_i32_1 = arith.constant 0 : i32
    return %c0_i32, %c0_i32_0 : i32, i32
  }
  func.func @transform_2(%arg0: i32) -> (i32, i32) {
    %c0_i32 = arith.constant 0 : i32
    %c0_i32_0 = arith.constant 0 : i32
    %c0_i32_1 = arith.constant 0 : i32
    return %c0_i32, %c0_i32_0 : i32, i32
  }
  func.func @transform_3(%arg0: i32) -> (i32, i32) {
    %c0_i32 = arith.constant 0 : i32
    %c0_i32_0 = arith.constant 0 : i32
    return %arg0, %c0_i32 : i32, i32
  }
}

module attributes {stable_mosaic.version = 11 : i64} {
  func.func @_mm_bias_kernel(%arg0: i32, %arg1: memref<64x512xbf16, #tpu.memory_space<vmem>>, %arg2: memref<512x16xbf16, #tpu.memory_space<vmem>>, %arg3: memref<1x16xf32, #tpu.memory_space<vmem>>, %arg4: memref<64x16xbf16, #tpu.memory_space<vmem>>) attributes {dimension_semantics = [#tpu.dimension_semantics<parallel>], iteration_bounds = array<i64: 1>, scalar_prefetch = 0 : i64, scratch_operands = 0 : i64, tpu.core_type = #tpu.core_type<tc>, window_params = [{transform_indices = @transform_0, window_bounds = array<i64: 64, 512>}, {pipeline_mode = #tpu.pipeline_mode<synchronous>, transform_indices = @transform_1, window_bounds = array<i64: 512, 16>}, {pipeline_mode = #tpu.pipeline_mode<synchronous>, transform_indices = @transform_2, window_bounds = array<i64: 1, 16>}, {transform_indices = @transform_3, window_bounds = array<i64: 64, 16>}]} {
    %c0 = arith.constant 0 : index
    %c0_0 = arith.constant 0 : index
    %0 = vector.load %arg1[%c0, %c0_0] : memref<64x512xbf16, #tpu.memory_space<vmem>>, vector<64x512xbf16>
    %c0_1 = arith.constant 0 : index
    %c0_2 = arith.constant 0 : index
    %1 = vector.load %arg2[%c0_1, %c0_2] : memref<512x16xbf16, #tpu.memory_space<vmem>>, vector<512x16xbf16>
    %cst = arith.constant dense<0.000000e+00> : vector<64x16xf32>
    %2 = tpu.matmul %0, %1, %cst {dimension_numbers = #tpu.dot_dimension_numbers<[1], [0], [0], [1], [0, 0, 1, 1], [], []>} : vector<64x512xbf16>, vector<512x16xbf16>, vector<64x16xf32> -> vector<64x16xf32>
    %c0_3 = arith.constant 0 : index
    %c0_4 = arith.constant 0 : index
    %3 = vector.load %arg3[%c0_3, %c0_4] : memref<1x16xf32, #tpu.memory_space<vmem>>, vector<1x16xf32>
    %4 = vector.broadcast %3 : vector<1x16xf32> to vector<64x16xf32>
    %5 = arith.addf %2, %4 : vector<64x16xf32>
    %cst_5 = arith.constant 0.000000e+00 : f32
    %6 = vector.broadcast %cst_5 : f32 to vector<64x16xf32>
    %7 = arith.maximumf %5, %6 : vector<64x16xf32>
    %8 = arith.truncf %7 : vector<64x16xf32> to vector<64x16xbf16>
    %c0_6 = arith.constant 0 : index
    %c0_7 = arith.constant 0 : index
    %9 = vector.load %arg4[%c0_6, %c0_7] : memref<64x16xbf16, #tpu.memory_space<vmem>>, vector<64x16xbf16>
    tpu.vector_store %arg4[%c0_6, %c0_7], %8 {strides = array<i32>} : memref<64x16xbf16, #tpu.memory_space<vmem>>, vector<64x16xbf16>,
    return
  }
  func.func @transform_0(%arg0: i32) -> (i32, i32) {
    %c0_i32 = arith.constant 0 : i32
    %c0_i32_0 = arith.constant 0 : i32
    return %arg0, %c0_i32 : i32, i32
  }
  func.func @transform_1(%arg0: i32) -> (i32, i32) {
    %c0_i32 = arith.constant 0 : i32
    %c0_i32_0 = arith.constant 0 : i32
    %c0_i32_1 = arith.constant 0 : i32
    return %c0_i32, %c0_i32_0 : i32, i32
  }
  func.func @transform_2(%arg0: i32) -> (i32, i32) {
    %c0_i32 = arith.constant 0 : i32
    %c0_i32_0 = arith.constant 0 : i32
    %c0_i32_1 = arith.constant 0 : i32
    return %c0_i32, %c0_i32_0 : i32, i32
  }
  func.func @transform_3(%arg0: i32) -> (i32, i32) {
    %c0_i32 = arith.constant 0 : i32
    %c0_i32_0 = arith.constant 0 : i32
    return %arg0, %c0_i32 : i32, i32
  }
}

module attributes {stable_mosaic.version = 11 : i64} {
  func.func @_mm_bias_res_kernel(%arg0: i32, %arg1: memref<64x128xbf16, #tpu.memory_space<vmem>>, %arg2: memref<128x64xbf16, #tpu.memory_space<vmem>>, %arg3: memref<64x64xbf16, #tpu.memory_space<vmem>>, %arg4: memref<64x64xbf16, #tpu.memory_space<vmem>>, %arg5: memref<1x64xf32, #tpu.memory_space<vmem>>, %arg6: memref<64x64xbf16, #tpu.memory_space<vmem>>) attributes {dimension_semantics = [#tpu.dimension_semantics<parallel>], iteration_bounds = array<i64: 1>, scalar_prefetch = 0 : i64, scratch_operands = 0 : i64, tpu.core_type = #tpu.core_type<tc>, window_params = [{transform_indices = @transform_0, window_bounds = array<i64: 64, 128>}, {pipeline_mode = #tpu.pipeline_mode<synchronous>, transform_indices = @transform_1, window_bounds = array<i64: 128, 64>}, {transform_indices = @transform_2, window_bounds = array<i64: 64, 64>}, {pipeline_mode = #tpu.pipeline_mode<synchronous>, transform_indices = @transform_3, window_bounds = array<i64: 64, 64>}, {pipeline_mode = #tpu.pipeline_mode<synchronous>, transform_indices = @transform_4, window_bounds = array<i64: 1, 64>}, {transform_indices = @transform_5, window_bounds = array<i64: 64, 64>}]} {
    %c0 = arith.constant 0 : index
    %c0_0 = arith.constant 0 : index
    %0 = vector.load %arg1[%c0, %c0_0] : memref<64x128xbf16, #tpu.memory_space<vmem>>, vector<64x128xbf16>
    %c0_1 = arith.constant 0 : index
    %c0_2 = arith.constant 0 : index
    %1 = vector.load %arg2[%c0_1, %c0_2] : memref<128x64xbf16, #tpu.memory_space<vmem>>, vector<128x64xbf16>
    %cst = arith.constant dense<0.000000e+00> : vector<64x64xf32>
    %2 = tpu.matmul %0, %1, %cst {dimension_numbers = #tpu.dot_dimension_numbers<[1], [0], [0], [1], [0, 0, 1, 1], [], []>} : vector<64x128xbf16>, vector<128x64xbf16>, vector<64x64xf32> -> vector<64x64xf32>
    %c0_3 = arith.constant 0 : index
    %c0_4 = arith.constant 0 : index
    %3 = vector.load %arg3[%c0_3, %c0_4] : memref<64x64xbf16, #tpu.memory_space<vmem>>, vector<64x64xbf16>
    %c0_5 = arith.constant 0 : index
    %c0_6 = arith.constant 0 : index
    %4 = vector.load %arg4[%c0_5, %c0_6] : memref<64x64xbf16, #tpu.memory_space<vmem>>, vector<64x64xbf16>
    %cst_7 = arith.constant dense<0.000000e+00> : vector<64x64xf32>
    %5 = tpu.matmul %3, %4, %cst_7 {dimension_numbers = #tpu.dot_dimension_numbers<[1], [0], [0], [1], [0, 0, 1, 1], [], []>} : vector<64x64xbf16>, vector<64x64xbf16>, vector<64x64xf32> -> vector<64x64xf32>
    %6 = arith.addf %2, %5 : vector<64x64xf32>
    %c0_8 = arith.constant 0 : index
    %c0_9 = arith.constant 0 : index
    %7 = vector.load %arg5[%c0_8, %c0_9] : memref<1x64xf32, #tpu.memory_space<vmem>>, vector<1x64xf32>
    %8 = vector.broadcast %7 : vector<1x64xf32> to vector<64x64xf32>
    %9 = arith.addf %6, %8 : vector<64x64xf32>
    %cst_10 = arith.constant 0.000000e+00 : f32
    %10 = vector.broadcast %cst_10 : f32 to vector<64x64xf32>
    %11 = arith.maximumf %9, %10 : vector<64x64xf32>
    %12 = arith.truncf %11 : vector<64x64xf32> to vector<64x64xbf16>
    %c0_11 = arith.constant 0 : index
    %c0_12 = arith.constant 0 : index
    %13 = vector.load %arg6[%c0_11, %c0_12] : memref<64x64xbf16, #tpu.memory_space<vmem>>, vector<64x64xbf16>
    tpu.vector_store %arg6[%c0_11, %c0_12], %12 {strides = array<i32>} : memref<64x64xbf16, #tpu.memory_space<vmem>>, vector<64x64xbf16>,
    return
  }
  func.func @transform_0(%arg0: i32) -> (i32, i32) {
    %c0_i32 = arith.constant 0 : i32
    %c0_i32_0 = arith.constant 0 : i32
    return %arg0, %c0_i32 : i32, i32
  }
  func.func @transform_1(%arg0: i32) -> (i32, i32) {
    %c0_i32 = arith.constant 0 : i32
    %c0_i32_0 = arith.constant 0 : i32
    %c0_i32_1 = arith.constant 0 : i32
    return %c0_i32, %c0_i32_0 : i32, i32
  }
  func.func @transform_2(%arg0: i32) -> (i32, i32) {
    %c0_i32 = arith.constant 0 : i32
    %c0_i32_0 = arith.constant 0 : i32
    return %arg0, %c0_i32 : i32, i32
  }
  func.func @transform_3(%arg0: i32) -> (i32, i32) {
    %c0_i32 = arith.constant 0 : i32
    %c0_i32_0 = arith.constant 0 : i32
    %c0_i32_1 = arith.constant 0 : i32
    return %c0_i32, %c0_i32_0 : i32, i32
  }
  func.func @transform_4(%arg0: i32) -> (i32, i32) {
    %c0_i32 = arith.constant 0 : i32
    %c0_i32_0 = arith.constant 0 : i32
    %c0_i32_1 = arith.constant 0 : i32
    return %c0_i32, %c0_i32_0 : i32, i32
  }
  func.func @transform_5(%arg0: i32) -> (i32, i32) {
    %c0_i32 = arith.constant 0 : i32
    %c0_i32_0 = arith.constant 0 : i32
    return %arg0, %c0_i32 : i32, i32
  }
}

module attributes {stable_mosaic.version = 11 : i64} {
  func.func @_mm_bias_res_kernel(%arg0: i32, %arg1: memref<256x64xbf16, #tpu.memory_space<vmem>>, %arg2: memref<64x32xbf16, #tpu.memory_space<vmem>>, %arg3: memref<256x32xbf16, #tpu.memory_space<vmem>>, %arg4: memref<32x32xbf16, #tpu.memory_space<vmem>>, %arg5: memref<1x32xf32, #tpu.memory_space<vmem>>, %arg6: memref<256x32xf32, #tpu.memory_space<vmem>>) attributes {dimension_semantics = [#tpu.dimension_semantics<parallel>], iteration_bounds = array<i64: 2>, scalar_prefetch = 0 : i64, scratch_operands = 0 : i64, tpu.core_type = #tpu.core_type<tc>, window_params = [{transform_indices = @transform_0, window_bounds = array<i64: 256, 64>}, {pipeline_mode = #tpu.pipeline_mode<synchronous>, transform_indices = @transform_1, window_bounds = array<i64: 64, 32>}, {transform_indices = @transform_2, window_bounds = array<i64: 256, 32>}, {pipeline_mode = #tpu.pipeline_mode<synchronous>, transform_indices = @transform_3, window_bounds = array<i64: 32, 32>}, {pipeline_mode = #tpu.pipeline_mode<synchronous>, transform_indices = @transform_4, window_bounds = array<i64: 1, 32>}, {transform_indices = @transform_5, window_bounds = array<i64: 256, 32>}]} {
    %c0 = arith.constant 0 : index
    %c0_0 = arith.constant 0 : index
    %0 = vector.load %arg1[%c0, %c0_0] : memref<256x64xbf16, #tpu.memory_space<vmem>>, vector<256x64xbf16>
    %c0_1 = arith.constant 0 : index
    %c0_2 = arith.constant 0 : index
    %1 = vector.load %arg2[%c0_1, %c0_2] : memref<64x32xbf16, #tpu.memory_space<vmem>>, vector<64x32xbf16>
    %cst = arith.constant dense<0.000000e+00> : vector<256x32xf32>
    %2 = tpu.matmul %0, %1, %cst {dimension_numbers = #tpu.dot_dimension_numbers<[1], [0], [0], [1], [0, 0, 1, 1], [], []>} : vector<256x64xbf16>, vector<64x32xbf16>, vector<256x32xf32> -> vector<256x32xf32>
    %c0_3 = arith.constant 0 : index
    %c0_4 = arith.constant 0 : index
    %3 = vector.load %arg3[%c0_3, %c0_4] : memref<256x32xbf16, #tpu.memory_space<vmem>>, vector<256x32xbf16>
    %c0_5 = arith.constant 0 : index
    %c0_6 = arith.constant 0 : index
    %4 = vector.load %arg4[%c0_5, %c0_6] : memref<32x32xbf16, #tpu.memory_space<vmem>>, vector<32x32xbf16>
    %cst_7 = arith.constant dense<0.000000e+00> : vector<256x32xf32>
    %5 = tpu.matmul %3, %4, %cst_7 {dimension_numbers = #tpu.dot_dimension_numbers<[1], [0], [0], [1], [0, 0, 1, 1], [], []>} : vector<256x32xbf16>, vector<32x32xbf16>, vector<256x32xf32> -> vector<256x32xf32>
    %6 = arith.addf %2, %5 : vector<256x32xf32>
    %c0_8 = arith.constant 0 : index
    %c0_9 = arith.constant 0 : index
    %7 = vector.load %arg5[%c0_8, %c0_9] : memref<1x32xf32, #tpu.memory_space<vmem>>, vector<1x32xf32>
    %8 = vector.broadcast %7 : vector<1x32xf32> to vector<256x32xf32>
    %9 = arith.addf %6, %8 : vector<256x32xf32>
    %cst_10 = arith.constant 0.000000e+00 : f32
    %10 = vector.broadcast %cst_10 : f32 to vector<256x32xf32>
    %11 = arith.maximumf %9, %10 : vector<256x32xf32>
    %c0_11 = arith.constant 0 : index
    %c0_12 = arith.constant 0 : index
    %12 = vector.load %arg6[%c0_11, %c0_12] : memref<256x32xf32, #tpu.memory_space<vmem>>, vector<256x32xf32>
    tpu.vector_store %arg6[%c0_11, %c0_12], %11 {strides = array<i32>} : memref<256x32xf32, #tpu.memory_space<vmem>>, vector<256x32xf32>,
    return
  }
  func.func @transform_0(%arg0: i32) -> (i32, i32) {
    %c0_i32 = arith.constant 0 : i32
    %c0_i32_0 = arith.constant 0 : i32
    return %arg0, %c0_i32 : i32, i32
  }
  func.func @transform_1(%arg0: i32) -> (i32, i32) {
    %c0_i32 = arith.constant 0 : i32
    %c0_i32_0 = arith.constant 0 : i32
    %c0_i32_1 = arith.constant 0 : i32
    return %c0_i32, %c0_i32_0 : i32, i32
  }
  func.func @transform_2(%arg0: i32) -> (i32, i32) {
    %c0_i32 = arith.constant 0 : i32
    %c0_i32_0 = arith.constant 0 : i32
    return %arg0, %c0_i32 : i32, i32
  }
  func.func @transform_3(%arg0: i32) -> (i32, i32) {
    %c0_i32 = arith.constant 0 : i32
    %c0_i32_0 = arith.constant 0 : i32
    %c0_i32_1 = arith.constant 0 : i32
    return %c0_i32, %c0_i32_0 : i32, i32
  }
  func.func @transform_4(%arg0: i32) -> (i32, i32) {
    %c0_i32 = arith.constant 0 : i32
    %c0_i32_0 = arith.constant 0 : i32
    %c0_i32_1 = arith.constant 0 : i32
    return %c0_i32, %c0_i32_0 : i32, i32
  }
  func.func @transform_5(%arg0: i32) -> (i32, i32) {
    %c0_i32 = arith.constant 0 : i32
    %c0_i32_0 = arith.constant 0 : i32
    return %arg0, %c0_i32 : i32, i32
  }
}

</mosaic_0001>

<llo_original>
// kernel: hourglass_forward.6
$region0: #{hourglass_forward.6}
  #allocation0 [shape = 'u32[]', space=smem, size = 0x4, offset = 0x4, fixed_abs, tag = 'smem constant byte address 0x4 - core index']
  #allocation1 [shape = 'u32[144,128]{1,0:T(1,128)}', space=vmem, size = 0x12000, scoped, tag = 'internal scratch']
  %s0 = inlined_call_operand.vmem [shape: bf16[512,128], index: 0, kind: input, shape index: {}]
  %s1 = inlined_call_operand.vmem [shape: bf16[128,8], index: 1, kind: input, shape index: {}]
  %s2 = inlined_call_operand.vmem [shape: f32[1,8], index: 2, kind: input, shape index: {}]
  %s3 = inlined_call_operand.vmem [shape: bf16[512,8], index: 3, kind: output, shape index: {}]
  %s4 = sld [smem:[#allocation0]]
  $region45: #{hourglass_forward.6} parent=0
    _
  %s6 = ssub.s32 1, %s4
  %s7 = scalar_select 0, %s6, %s4
  loop: start=0, step=1, limit=4
  $region2: #{hourglass_forward.6} parent=0 // loop_pre_header
    _
  $region3: #{hourglass_forward.6} parent=0 // loop_header
    %s9 = sphi 0, %s13
    %p10 = scmp.ge.s32.totalorder %s9, 4
    %s19 = sphi 0, %s21
    %s22 = sphi 0, %s19
    %s23 = sphi 0, %s22
    %s39 = sphi 0, %s23
    %s43 = sphi 0, %s43
    %s45 = sphi 0, %s43
    %s46 = sphi 0, %s45
    %s60 = sphi 0, %s46
    %s64 = sphi 0, %s64
    %s66 = sphi 0, %s64
    %s67 = sphi 0, %s66
    %s81 = sphi 0, %s67
    %s87 = sphi 0, %s89
    %s90 = sphi 0, %s87
    %s91 = sphi 0, %s90
    %s107 = sphi 0, %s91
  $region4: #{hourglass_forward.6} parent=0 // loop_header_branch
    %12 = sbr.rel (%p10) target = $region8
  $region5: #{hourglass_forward.6} parent=0 // loop_body
    %s14 = ssub.s32 %s9, 1
    %s15 = ssub.s32 %s9, 2
    %s16 = sadd.s32 %s9, 1
    %s17 = ssub.s32 %s9, %s16
    %p18 = scmp.eq.s32.totalorder %s17, 0
    %s20 = sadd.s32 %s19, 1
    %s21 = scalar_select %p18, %s19, %s20
    %p24 = pneg %p18
    %p25 = scmp.eq.s32.totalorder %s9, 1
    %p26 = por %p24, %p25
    %p27 = scmp.ne.s32.totalorder %s19, %s22
    %p28 = scmp.eq.s32.totalorder %s9, 0
    %p29 = por %p27, %p28
    %p30 = scmp.ne.s32.totalorder %s19, %s22
    %p31 = scmp.eq.s32.totalorder %s14, 1
    %p32 = por %p30, %p31
    %p33 = scmp.ne.s32.totalorder %s22, %s23
    %p34 = scmp.eq.s32.totalorder %s14, 0
    %p35 = por %p33, %p34
    %p36 = scmp.ne.s32.totalorder %s22, %s23
    %p37 = scmp.eq.s32.totalorder %s15, 1
    %p38 = por %p36, %p37
    %p40 = scmp.ne.s32.totalorder %s23, %s39
    %p41 = scmp.eq.s32.totalorder %s15, 0
    %p42 = por %p40, %p41
    %s44 = sadd.s32 %s43, 1
    %p47 = scmp.eq.s32.totalorder %s9, 1
    %p48 = scmp.ne.s32.totalorder %s43, %s45
    %p49 = scmp.eq.s32.totalorder %s9, 0
    %p50 = por %p48, %p49
    %p51 = scmp.ne.s32.totalorder %s43, %s45
    %p52 = scmp.eq.s32.totalorder %s14, 1
    %p53 = por %p51, %p52
    %p54 = scmp.ne.s32.totalorder %s45, %s46
    %p55 = scmp.eq.s32.totalorder %s14, 0
    %p56 = por %p54, %p55
    %p57 = scmp.ne.s32.totalorder %s45, %s46
    %p58 = scmp.eq.s32.totalorder %s15, 1
    %p59 = por %p57, %p58
    %p61 = scmp.ne.s32.totalorder %s46, %s60
    %p62 = scmp.eq.s32.totalorder %s15, 0
    %p63 = por %p61, %p62
    %s65 = sadd.s32 %s64, 1
    %p68 = scmp.eq.s32.totalorder %s9, 1
    %p69 = scmp.ne.s32.totalorder %s64, %s66
    %p70 = scmp.eq.s32.totalorder %s9, 0
    %p71 = por %p69, %p70
    %p72 = scmp.ne.s32.totalorder %s64, %s66
    %p73 = scmp.eq.s32.totalorder %s14, 1
    %p74 = por %p72, %p73
    %p75 = scmp.ne.s32.totalorder %s66, %s67
    %p76 = scmp.eq.s32.totalorder %s14, 0
    %p77 = por %p75, %p76
    %p78 = scmp.ne.s32.totalorder %s66, %s67
    %p79 = scmp.eq.s32.totalorder %s15, 1
    %p80 = por %p78, %p79
    %p82 = scmp.ne.s32.totalorder %s67, %s81
    %p83 = scmp.eq.s32.totalorder %s15, 0
    %p84 = por %p82, %p83
    %s85 = ssub.s32 %s9, %s16
    %p86 = scmp.eq.s32.totalorder %s85, 0
    %s88 = sadd.s32 %s87, 1
    %s89 = scalar_select %p86, %s87, %s88
    %p92 = pneg %p86
    %p93 = scmp.eq.s32.totalorder %s9, 1
    %p94 = por %p92, %p93
    %p95 = scmp.ne.s32.totalorder %s87, %s90
    %p96 = scmp.eq.s32.totalorder %s9, 0
    %p97 = por %p95, %p96
    %p98 = scmp.ne.s32.totalorder %s87, %s90
    %p99 = scmp.eq.s32.totalorder %s14, 1
    %p100 = por %p98, %p99
    %p101 = scmp.ne.s32.totalorder %s90, %s91
    %p102 = scmp.eq.s32.totalorder %s14, 0
    %p103 = por %p101, %p102
    %p104 = scmp.ne.s32.totalorder %s90, %s91
    %p105 = scmp.eq.s32.totalorder %s15, 1
    %p106 = por %p104, %p105
    %p108 = scmp.ne.s32.totalorder %s91, %s107
    %p109 = scmp.eq.s32.totalorder %s15, 0
    %p110 = por %p108, %p109
    %p111 = scmp.le.s32.totalorder 1, %s9
    %p112 = scmp.lt.s32.totalorder %s9, 3
    %p113 = pnand %p111, %p112
    %p114 = pneg %p113
    // Predicated region
    $region9: #{hourglass_forward.6} parent=5 // pred_check
      _
    $region10: #{hourglass_forward.6} parent=5 // pred_check_branch
      %116 = sbr.rel (%p113) target = $region12
    $region11: #{hourglass_forward.6} parent=5 // pred_region
      %s117 = ssub.s32 %s9, 1
      // Predicated region
      $region13: #{hourglass_forward.6} parent=11 // pred_check
        %p118 = pneg %p56
      $region14: #{hourglass_forward.6} parent=11 // pred_check_branch
        %120 = sbr.rel (%p118) target = $region16
      $region15: #{hourglass_forward.6} parent=11 // pred_region
        _
      $region16: #{hourglass_forward.6} parent=11 // pred_fallthru
        _
      // Predicated region
      $region17: #{hourglass_forward.6} parent=11 // pred_check
        %p121 = pneg %p77
      $region18: #{hourglass_forward.6} parent=11 // pred_check_branch
        %123 = sbr.rel (%p121) target = $region20
      $region19: #{hourglass_forward.6} parent=11 // pred_region
        _
      $region20: #{hourglass_forward.6} parent=11 // pred_fallthru
        _
    $region12: #{hourglass_forward.6} parent=5 // pred_fallthru
      _
    %p124 = scmp.lt.s32.totalorder %s9, 2
    // Predicated region
    $region21: #{hourglass_forward.6} parent=5 // pred_check
      %p125 = pneg %p124
    $region22: #{hourglass_forward.6} parent=5 // pred_check_branch
      %127 = sbr.rel (%p125) target = $region24
    $region23: #{hourglass_forward.6} parent=5 // pred_region
      // Predicated region
      $region25: #{hourglass_forward.6} parent=23 // pred_check
        %p128 = pneg %p29
      $region26: #{hourglass_forward.6} parent=23 // pred_check_branch
        %130 = sbr.rel (%p128) target = $region28
      $region27: #{hourglass_forward.6} parent=23 // pred_region
        %s131 = smul.u32 32, %s9
        %p132 = scmp.lt.s32.totalorder %s131, 63
        %s133 = scalar_select %p132, %s131, 63
        %s134 = smul.addr %s133, 4
        %s135 = scalar_lea.vmem %s0, %s134
        %s136 = smul.u32 32, %s9
      $region28: #{hourglass_forward.6} parent=23 // pred_fallthru
        _
    $region24: #{hourglass_forward.6} parent=5 // pred_fallthru
      _
    %p137 = scmp.le.s32.totalorder 1, %s9
    %p138 = scmp.lt.s32.totalorder %s9, 3
    %p139 = pnand %p137, %p138
    %p140 = pneg %p139
    // Predicated region
    $region29: #{hourglass_forward.6} parent=5 // pred_check
      _
    $region30: #{hourglass_forward.6} parent=5 // pred_check_branch
      %142 = sbr.rel (%p139) target = $region32
    $region31: #{hourglass_forward.6} parent=5 // pred_region
      %s143 = ssub.s32 %s9, 1
      %s144 = smul.u32 32, %s14
      %p145 = scmp.lt.s32.totalorder %s144, 63
      %s146 = scalar_select %p145, %s144, 63
      %s147 = smul.addr %s146, 4
      %s148 = scalar_lea.vmem %s0, %s147
      %p149 = pneg %p35
      %p150 = pneg %p32
      %p151 = pneg %p56
      %p152 = pneg %p53
      %p153 = pneg %p77
      %p154 = pneg %p74
      %p155 = pneg %p103
      %p156 = pneg %p100
      %s157 = smul.u32 32, %s14
      %p158 = scmp.lt.s32.totalorder %s157, 63
      %s159 = scalar_select %p158, %s157, 63
      %s160 = smul.addr %s159, 4
      %s161 = scalar_lea.vmem %s3, %s160
      %s162 = smul.u32 32, %s14
      %p163 = scmp.lt.s32.totalorder %s162, 63
      %s164 = scalar_select %p163, %s162, 63
      %s165 = smul.addr %s164, 4
      %s166 = scalar_lea.vmem %s0, %s165
      %s167 = smul.u32 32, %s14
      %s168 = smul.u32 32, %s14
      %p169 = scmp.lt.s32.totalorder %s168, 63
      %s170 = scalar_select %p169, %s168, 63
      %s171 = smul.addr %s170, 4
      %s172 = scalar_lea.vmem %s3, %s171
      %s173 = smul.u32 32, %s14
      %v175 = vld [vmem:[%s166] sm:$0xf]
      %v176 = vld [vmem:[%s166 + $0x4] sm:$0xf]
      %v177 = vld [vmem:[%s166 + $0x8] sm:$0xf]
      %v178 = vld [vmem:[%s166 + $0xc] sm:$0xf]
      %v179 = vld [vmem:[%s166 + $0x10] sm:$0xf]
      %v180 = vld [vmem:[%s166 + $0x14] sm:$0xf]
      %v181 = vld [vmem:[%s166 + $0x18] sm:$0xf]
      %v182 = vld [vmem:[%s166 + $0x1c] sm:$0xf]
      %v183 = vld [vmem:[%s166 + $0x20] sm:$0xf]
      %v184 = vld [vmem:[%s166 + $0x24] sm:$0xf]
      %v185 = vld [vmem:[%s166 + $0x28] sm:$0xf]
      %v186 = vld [vmem:[%s166 + $0x2c] sm:$0xf]
      %v187 = vld [vmem:[%s166 + $0x30] sm:$0xf]
      %v188 = vld [vmem:[%s166 + $0x34] sm:$0xf]
      %v189 = vld [vmem:[%s166 + $0x38] sm:$0xf]
      %v190 = vld [vmem:[%s166 + $0x3c] sm:$0xf]
      %v191 = vld [vmem:[%s166 + $0x40] sm:$0xf]
      %v192 = vld [vmem:[%s166 + $0x44] sm:$0xf]
      %v193 = vld [vmem:[%s166 + $0x48] sm:$0xf]
      %v194 = vld [vmem:[%s166 + $0x4c] sm:$0xf]
      %v195 = vld [vmem:[%s166 + $0x50] sm:$0xf]
      %v196 = vld [vmem:[%s166 + $0x54] sm:$0xf]
      %v197 = vld [vmem:[%s166 + $0x58] sm:$0xf]
      %v198 = vld [vmem:[%s166 + $0x5c] sm:$0xf]
      %v199 = vld [vmem:[%s166 + $0x60] sm:$0xf]
      %v200 = vld [vmem:[%s166 + $0x64] sm:$0xf]
      %v201 = vld [vmem:[%s166 + $0x68] sm:$0xf]
      %v202 = vld [vmem:[%s166 + $0x6c] sm:$0xf]
      %v203 = vld [vmem:[%s166 + $0x70] sm:$0xf]
      %v204 = vld [vmem:[%s166 + $0x74] sm:$0xf]
      %v205 = vld [vmem:[%s166 + $0x78] sm:$0xf]
      %v206 = vld [vmem:[%s166 + $0x7c] sm:$0xf]
      %v207 = vld [vmem:[%s1] sm:$0xf]
      %v208 = vld [vmem:[%s1 + $0x4] sm:$0xf]
      %v209 = vld [vmem:[%s1 + $0x8] sm:$0xf]
      %v210 = vld [vmem:[%s1 + $0xc] sm:$0xf]
      %v211 = vld [vmem:[%s1 + $0x10] sm:$0xf]
      %v212 = vld [vmem:[%s1 + $0x14] sm:$0xf]
      %v213 = vld [vmem:[%s1 + $0x18] sm:$0xf]
      %v214 = vld [vmem:[%s1 + $0x1c] sm:$0xf]
      %v215 = vld [vmem:[%s1 + $0x20] sm:$0xf]
      %v216 = vld [vmem:[%s1 + $0x24] sm:$0xf]
      %v217 = vld [vmem:[%s1 + $0x28] sm:$0xf]
      %v218 = vld [vmem:[%s1 + $0x2c] sm:$0xf]
      %v219 = vld [vmem:[%s1 + $0x30] sm:$0xf]
      %v220 = vld [vmem:[%s1 + $0x34] sm:$0xf]
      %v221 = vld [vmem:[%s1 + $0x38] sm:$0xf]
      %v222 = vld [vmem:[%s1 + $0x3c] sm:$0xf]
      %v223 = vld [vmem:[%s2] sm:$0x1]
      %v225 = vlaneseq
      %v226 = vshrl.u32 %v225, 7
      %v227 = vsub.s32 0, %v226
      %v228 = vrot.slane %v223, %v227
      %v262 = vunpack.c.l.b16 %v175
      %v263 = vunpack.c.l.b16 %v176
      %v264 = vunpack.c.l.b16 %v177
      %v265 = vunpack.c.l.b16 %v178
      %v266 = vunpack.c.l.b16 %v179
      %v267 = vunpack.c.l.b16 %v180
      %v268 = vunpack.c.l.b16 %v181
      %v269 = vunpack.c.l.b16 %v182
      %v270 = vunpack.c.l.b16 %v183
      %v271 = vunpack.c.l.b16 %v184
      %v272 = vunpack.c.l.b16 %v185
      %v273 = vunpack.c.l.b16 %v186
      %v274 = vunpack.c.l.b16 %v187
      %v275 = vunpack.c.l.b16 %v188
      %v276 = vunpack.c.l.b16 %v189
      %v277 = vunpack.c.l.b16 %v190
      %v278 = vunpack.c.l.b16 %v191
      %v279 = vunpack.c.l.b16 %v192
      %v280 = vunpack.c.l.b16 %v193
      %v281 = vunpack.c.l.b16 %v194
      %v282 = vunpack.c.l.b16 %v195
      %v283 = vunpack.c.l.b16 %v196
      %v284 = vunpack.c.l.b16 %v197
      %v285 = vunpack.c.l.b16 %v198
      %v286 = vunpack.c.l.b16 %v199
      %v287 = vunpack.c.l.b16 %v200
      %v288 = vunpack.c.l.b16 %v201
      %v289 = vunpack.c.l.b16 %v202
      %v290 = vunpack.c.l.b16 %v203
      %v291 = vunpack.c.l.b16 %v204
      %v292 = vunpack.c.l.b16 %v205
      %v293 = vunpack.c.l.b16 %v206
      %v294 = vpack.c.b16 %v263, %v262
      %v295 = vpack.c.b16 %v265, %v264
      %v296 = vpack.c.b16 %v267, %v266
      %v297 = vpack.c.b16 %v269, %v268
      %v298 = vpack.c.b16 %v271, %v270
      %v299 = vpack.c.b16 %v273, %v272
      %v300 = vpack.c.b16 %v275, %v274
      %v301 = vpack.c.b16 %v277, %v276
      %v302 = vpack.c.b16 %v279, %v278
      %v303 = vpack.c.b16 %v281, %v280
      %v304 = vpack.c.b16 %v283, %v282
      %v305 = vpack.c.b16 %v285, %v284
      %v306 = vpack.c.b16 %v287, %v286
      %v307 = vpack.c.b16 %v289, %v288
      %v308 = vpack.c.b16 %v291, %v290
      %v309 = vpack.c.b16 %v293, %v292
      %v342 = vunpack.c.l.b16 %v207
      %v343 = vunpack.c.l.b16 %v208
      %v344 = vunpack.c.l.b16 %v209
      %v345 = vunpack.c.l.b16 %v210
      %v346 = vunpack.c.l.b16 %v211
      %v347 = vunpack.c.l.b16 %v212
      %v348 = vunpack.c.l.b16 %v213
      %v349 = vunpack.c.l.b16 %v214
      %v350 = vunpack.c.l.b16 %v215
      %v351 = vunpack.c.l.b16 %v216
      %v352 = vunpack.c.l.b16 %v217
      %v353 = vunpack.c.l.b16 %v218
      %v354 = vunpack.c.l.b16 %v219
      %v355 = vunpack.c.l.b16 %v220
      %v356 = vunpack.c.l.b16 %v221
      %v357 = vunpack.c.l.b16 %v222
      %v358 = vpack.c.b16 %v343, %v342
      %v359 = vpack.c.b16 %v345, %v344
      %v360 = vpack.c.b16 %v347, %v346
      %v361 = vpack.c.b16 %v349, %v348
      %v362 = vpack.c.b16 %v351, %v350
      %v363 = vpack.c.b16 %v353, %v352
      %v364 = vpack.c.b16 %v355, %v354
      %v365 = vpack.c.b16 %v357, %v356
      %374 = vmatprep.subr.bf16.mxu0 0
      %375 = vmatpush1.bf16.msra.mxu0 %v358
      %376 = vmatprep.subr.bf16.mxu0 0
      %377 = vmatpush1.bf16.msra.mxu0 %v359
      %378 = vmatprep.subr.bf16.mxu0 0
      %379 = vmatpush1.bf16.msra.mxu0 %v360
      %380 = vmatprep.subr.bf16.mxu0 0
      %381 = vmatpush1.bf16.msra.mxu0 %v361
      %382 = vmatprep.subr.bf16.mxu0 0
      %383 = vmatpush1.bf16.msra.mxu0 %v362
      %384 = vmatprep.subr.bf16.mxu0 0
      %385 = vmatpush1.bf16.msra.mxu0 %v363
      %386 = vmatprep.subr.bf16.mxu0 0
      %387 = vmatpush1.bf16.msra.mxu0 %v364
      %388 = vmatprep.subr.bf16.mxu0 0
      %389 = vmatpush1.bf16.msra.mxu0 %v365
      %390 = vmatprep.subr.bf16.mxu0 0
      %391 = vmatpush1.bf16.msra.mxu0 0
      %392 = vmatprep.subr.bf16.mxu0 0
      %393 = vmatpush1.bf16.msra.mxu0 0
      %394 = vmatprep.subr.bf16.mxu0 0
      %395 = vmatpush1.bf16.msra.mxu0 0
      %396 = vmatprep.subr.bf16.mxu0 0
      %397 = vmatpush1.bf16.msra.mxu0 0
      %398 = vmatprep.subr.bf16.mxu0 0
      %399 = vmatpush1.bf16.msra.mxu0 0
      %400 = vmatprep.subr.bf16.mxu0 0
      %401 = vmatpush1.bf16.msra.mxu0 0
      %402 = vmatprep.subr.bf16.mxu0 0
      %403 = vmatpush1.bf16.msra.mxu0 0
      %404 = vmatprep.subr.bf16.mxu0 0
      %405 = vmatpush1.bf16.msra.mxu0 0
      %406 = vmatprep.mubr.bf16.mxu0 0
      %407 = vmatmul.mubr.bf16.gmra.mrb[0].mxu0 %v294
      %v408 = vpop.f32.mrb[0].mxu0
      %v409 = vadd.f32 %v228, %v408
      %v410 = vpop.f32.mrb[0].mxu0
      %v411 = vpop.f32.mrb[0].mxu0
      %v412 = vadd.f32 %v228, %v411
      %v413 = vpop.f32.mrb[0].mxu0
      %414 = vmatprep.mubr.bf16.mxu0 0
      %415 = vmatmul.mubr.bf16.gmra.mrb[0].mxu0 %v295
      %v416 = vpop.f32.mrb[0].mxu0
      %v417 = vadd.f32 %v228, %v416
      %v418 = vpop.f32.mrb[0].mxu0
      %v419 = vpop.f32.mrb[0].mxu0
      %v420 = vadd.f32 %v228, %v419
      %v421 = vpop.f32.mrb[0].mxu0
      %422 = vmatprep.mubr.bf16.mxu0 0
      %423 = vmatmul.mubr.bf16.gmra.mrb[0].mxu0 %v296
      %v424 = vpop.f32.mrb[0].mxu0
      %v425 = vadd.f32 %v228, %v424
      %v426 = vpop.f32.mrb[0].mxu0
      %v427 = vpop.f32.mrb[0].mxu0
      %v428 = vadd.f32 %v228, %v427
      %v429 = vpop.f32.mrb[0].mxu0
      %430 = vmatprep.mubr.bf16.mxu0 0
      %431 = vmatmul.mubr.bf16.gmra.mrb[0].mxu0 %v297
      %v432 = vpop.f32.mrb[0].mxu0
      %v433 = vadd.f32 %v228, %v432
      %v434 = vpop.f32.mrb[0].mxu0
      %v435 = vpop.f32.mrb[0].mxu0
      %v436 = vadd.f32 %v228, %v435
      %v437 = vpop.f32.mrb[0].mxu0
      %438 = vmatprep.mubr.bf16.mxu0 0
      %439 = vmatmul.mubr.bf16.gmra.mrb[0].mxu0 %v298
      %v440 = vpop.f32.mrb[0].mxu0
      %v441 = vadd.f32 %v228, %v440
      %v442 = vpop.f32.mrb[0].mxu0
      %v443 = vpop.f32.mrb[0].mxu0
      %v444 = vadd.f32 %v228, %v443
      %v445 = vpop.f32.mrb[0].mxu0
      %446 = vmatprep.mubr.bf16.mxu0 0
      %447 = vmatmul.mubr.bf16.gmra.mrb[0].mxu0 %v299
      %v448 = vpop.f32.mrb[0].mxu0
      %v449 = vadd.f32 %v228, %v448
      %v450 = vpop.f32.mrb[0].mxu0
      %v451 = vpop.f32.mrb[0].mxu0
      %v452 = vadd.f32 %v228, %v451
      %v453 = vpop.f32.mrb[0].mxu0
      %454 = vmatprep.mubr.bf16.mxu0 0
      %455 = vmatmul.mubr.bf16.gmra.mrb[0].mxu0 %v300
      %v456 = vpop.f32.mrb[0].mxu0
      %v457 = vadd.f32 %v228, %v456
      %v458 = vpop.f32.mrb[0].mxu0
      %v459 = vpop.f32.mrb[0].mxu0
      %v460 = vadd.f32 %v228, %v459
      %v461 = vpop.f32.mrb[0].mxu0
      %462 = vmatprep.mubr.bf16.mxu0 0
      %463 = vmatmul.mubr.bf16.gmra.mrb[0].mxu0 %v301
      %v464 = vpop.f32.mrb[0].mxu0
      %v465 = vadd.f32 %v228, %v464
      %v466 = vpop.f32.mrb[0].mxu0
      %v467 = vpop.f32.mrb[0].mxu0
      %v468 = vadd.f32 %v228, %v467
      %v469 = vpop.f32.mrb[0].mxu0
      %470 = vmatprep.mubr.bf16.mxu0 0
      %471 = vmatmul.mubr.bf16.gmra.mrb[0].mxu0 %v302
      %v472 = vpop.f32.mrb[0].mxu0
      %v473 = vadd.f32 %v228, %v472
      %v474 = vpop.f32.mrb[0].mxu0
      %v475 = vpop.f32.mrb[0].mxu0
      %v476 = vadd.f32 %v228, %v475
      %v477 = vpop.f32.mrb[0].mxu0
      %478 = vmatprep.mubr.bf16.mxu0 0
      %479 = vmatmul.mubr.bf16.gmra.mrb[0].mxu0 %v303
      %v480 = vpop.f32.mrb[0].mxu0
      %v481 = vadd.f32 %v228, %v480
      %v482 = vpop.f32.mrb[0].mxu0
      %v483 = vpop.f32.mrb[0].mxu0
      %v484 = vadd.f32 %v228, %v483
      %v485 = vpop.f32.mrb[0].mxu0
      %486 = vmatprep.mubr.bf16.mxu0 0
      %487 = vmatmul.mubr.bf16.gmra.mrb[0].mxu0 %v304
      %v488 = vpop.f32.mrb[0].mxu0
      %v489 = vadd.f32 %v228, %v488
      %v490 = vpop.f32.mrb[0].mxu0
      %v491 = vpop.f32.mrb[0].mxu0
      %v492 = vadd.f32 %v228, %v491
      %v493 = vpop.f32.mrb[0].mxu0
      %494 = vmatprep.mubr.bf16.mxu0 0
      %495 = vmatmul.mubr.bf16.gmra.mrb[0].mxu0 %v305
      %v496 = vpop.f32.mrb[0].mxu0
      %v497 = vadd.f32 %v228, %v496
      %v498 = vpop.f32.mrb[0].mxu0
      %v499 = vpop.f32.mrb[0].mxu0
      %v500 = vadd.f32 %v228, %v499
      %v501 = vpop.f32.mrb[0].mxu0
      %502 = vmatprep.mubr.bf16.mxu0 0
      %503 = vmatmul.mubr.bf16.gmra.mrb[0].mxu0 %v306
      %v504 = vpop.f32.mrb[0].mxu0
      %v505 = vadd.f32 %v228, %v504
      %v506 = vpop.f32.mrb[0].mxu0
      %v507 = vpop.f32.mrb[0].mxu0
      %v508 = vadd.f32 %v228, %v507
      %v509 = vpop.f32.mrb[0].mxu0
      %510 = vmatprep.mubr.bf16.mxu0 0
      %511 = vmatmul.mubr.bf16.gmra.mrb[0].mxu0 %v307
      %v512 = vpop.f32.mrb[0].mxu0
      %v513 = vadd.f32 %v228, %v512
      %v514 = vpop.f32.mrb[0].mxu0
      %v515 = vpop.f32.mrb[0].mxu0
      %v516 = vadd.f32 %v228, %v515
      %v517 = vpop.f32.mrb[0].mxu0
      %518 = vmatprep.mubr.bf16.mxu0 0
      %519 = vmatmul.mubr.bf16.gmra.mrb[0].mxu0 %v308
      %v520 = vpop.f32.mrb[0].mxu0
      %v521 = vadd.f32 %v228, %v520
      %v522 = vpop.f32.mrb[0].mxu0
      %v523 = vpop.f32.mrb[0].mxu0
      %v524 = vadd.f32 %v228, %v523
      %v525 = vpop.f32.mrb[0].mxu0
      %526 = vmatprep.mubr.bf16.mxu0 0
      %527 = vmatmul.mubr.bf16.gmra.mrb[0].mxu0 %v309
      %v528 = vpop.f32.mrb[0].mxu0
      %v529 = vadd.f32 %v228, %v528
      %v530 = vpop.f32.mrb[0].mxu0
      %v531 = vpop.f32.mrb[0].mxu0
      %v532 = vadd.f32 %v228, %v531
      %v533 = vpop.f32.mrb[0].mxu0
      %534 = vdwg.mxu0
      %v535 = vmax.f32 %v409, 0.0
      %v536 = vmax.f32 %v412, 0.0
      %v537 = vmax.f32 %v417, 0.0
      %v538 = vmax.f32 %v420, 0.0
      %v539 = vmax.f32 %v425, 0.0
      %v540 = vmax.f32 %v428, 0.0
      %v541 = vmax.f32 %v433, 0.0
      %v542 = vmax.f32 %v436, 0.0
      %v543 = vmax.f32 %v441, 0.0
      %v544 = vmax.f32 %v444, 0.0
      %v545 = vmax.f32 %v449, 0.0
      %v546 = vmax.f32 %v452, 0.0
      %v547 = vmax.f32 %v457, 0.0
      %v548 = vmax.f32 %v460, 0.0
      %v549 = vmax.f32 %v465, 0.0
      %v550 = vmax.f32 %v468, 0.0
      %v551 = vmax.f32 %v473, 0.0
      %v552 = vmax.f32 %v476, 0.0
      %v553 = vmax.f32 %v481, 0.0
      %v554 = vmax.f32 %v484, 0.0
      %v555 = vmax.f32 %v489, 0.0
      %v556 = vmax.f32 %v492, 0.0
      %v557 = vmax.f32 %v497, 0.0
      %v558 = vmax.f32 %v500, 0.0
      %v559 = vmax.f32 %v505, 0.0
      %v560 = vmax.f32 %v508, 0.0
      %v561 = vmax.f32 %v513, 0.0
      %v562 = vmax.f32 %v516, 0.0
      %v563 = vmax.f32 %v521, 0.0
      %v564 = vmax.f32 %v524, 0.0
      %v565 = vmax.f32 %v529, 0.0
      %v566 = vmax.f32 %v532, 0.0
      %v567 = vpack.c.bf16 %v536, %v535
      %v568 = vpack.c.bf16 %v538, %v537
      %v569 = vpack.c.bf16 %v540, %v539
      %v570 = vpack.c.bf16 %v542, %v541
      %v571 = vpack.c.bf16 %v544, %v543
      %v572 = vpack.c.bf16 %v546, %v545
      %v573 = vpack.c.bf16 %v548, %v547
      %v574 = vpack.c.bf16 %v550, %v549
      %v575 = vpack.c.bf16 %v552, %v551
      %v576 = vpack.c.bf16 %v554, %v553
      %v577 = vpack.c.bf16 %v556, %v555
      %v578 = vpack.c.bf16 %v558, %v557
      %v579 = vpack.c.bf16 %v560, %v559
      %v580 = vpack.c.bf16 %v562, %v561
      %v581 = vpack.c.bf16 %v564, %v563
      %v582 = vpack.c.bf16 %v566, %v565
      %v599 = vunpack.c.l.b16 %v567
      %v600 = vunpack.c.h.b16 %v567
      %v601 = vunpack.c.l.b16 %v568
      %v602 = vunpack.c.h.b16 %v568
      %v603 = vunpack.c.l.b16 %v569
      %v604 = vunpack.c.h.b16 %v569
      %v605 = vunpack.c.l.b16 %v570
      %v606 = vunpack.c.h.b16 %v570
      %v607 = vunpack.c.l.b16 %v571
      %v608 = vunpack.c.h.b16 %v571
      %v609 = vunpack.c.l.b16 %v572
      %v610 = vunpack.c.h.b16 %v572
      %v611 = vunpack.c.l.b16 %v573
      %v612 = vunpack.c.h.b16 %v573
      %v613 = vunpack.c.l.b16 %v574
      %v614 = vunpack.c.h.b16 %v574
      %v615 = vunpack.c.l.b16 %v575
      %v616 = vunpack.c.h.b16 %v575
      %v617 = vunpack.c.l.b16 %v576
      %v618 = vunpack.c.h.b16 %v576
      %v619 = vunpack.c.l.b16 %v577
      %v620 = vunpack.c.h.b16 %v577
      %v621 = vunpack.c.l.b16 %v578
      %v622 = vunpack.c.h.b16 %v578
      %v623 = vunpack.c.l.b16 %v579
      %v624 = vunpack.c.h.b16 %v579
      %v625 = vunpack.c.l.b16 %v580
      %v626 = vunpack.c.h.b16 %v580
      %v627 = vunpack.c.l.b16 %v581
      %v628 = vunpack.c.h.b16 %v581
      %v629 = vunpack.c.l.b16 %v582
      %v630 = vunpack.c.h.b16 %v582
      %v631 = vpack.c.b16 %v599, %v599
      %v632 = vpack.c.b16 %v600, %v600
      %v633 = vpack.c.b16 %v601, %v601
      %v634 = vpack.c.b16 %v602, %v602
      %v635 = vpack.c.b16 %v603, %v603
      %v636 = vpack.c.b16 %v604, %v604
      %v637 = vpack.c.b16 %v605, %v605
      %v638 = vpack.c.b16 %v606, %v606
      %v639 = vpack.c.b16 %v607, %v607
      %v640 = vpack.c.b16 %v608, %v608
      %v641 = vpack.c.b16 %v609, %v609
      %v642 = vpack.c.b16 %v610, %v610
      %v643 = vpack.c.b16 %v611, %v611
      %v644 = vpack.c.b16 %v612, %v612
      %v645 = vpack.c.b16 %v613, %v613
      %v646 = vpack.c.b16 %v614, %v614
      %v647 = vpack.c.b16 %v615, %v615
      %v648 = vpack.c.b16 %v616, %v616
      %v649 = vpack.c.b16 %v617, %v617
      %v650 = vpack.c.b16 %v618, %v618
      %v651 = vpack.c.b16 %v619, %v619
      %v652 = vpack.c.b16 %v620, %v620
      %v653 = vpack.c.b16 %v621, %v621
      %v654 = vpack.c.b16 %v622, %v622
      %v655 = vpack.c.b16 %v623, %v623
      %v656 = vpack.c.b16 %v624, %v624
      %v657 = vpack.c.b16 %v625, %v625
      %v658 = vpack.c.b16 %v626, %v626
      %v659 = vpack.c.b16 %v627, %v627
      %v660 = vpack.c.b16 %v628, %v628
      %v661 = vpack.c.b16 %v629, %v629
      %v662 = vpack.c.b16 %v630, %v630
      %vm695 = vcmask 60416
      %696 = vst.msk [vmem:[%s172] sm:$0xf] %vm695, %v631
      %697 = vst.msk [vmem:[%s172 + $0x4] sm:$0xf] %vm695, %v632
      %698 = vst.msk [vmem:[%s172 + $0x8] sm:$0xf] %vm695, %v633
      %699 = vst.msk [vmem:[%s172 + $0xc] sm:$0xf] %vm695, %v634
      %700 = vst.msk [vmem:[%s172 + $0x10] sm:$0xf] %vm695, %v635
      %701 = vst.msk [vmem:[%s172 + $0x14] sm:$0xf] %vm695, %v636
      %702 = vst.msk [vmem:[%s172 + $0x18] sm:$0xf] %vm695, %v637
      %703 = vst.msk [vmem:[%s172 + $0x1c] sm:$0xf] %vm695, %v638
      %704 = vst.msk [vmem:[%s172 + $0x20] sm:$0xf] %vm695, %v639
      %705 = vst.msk [vmem:[%s172 + $0x24] sm:$0xf] %vm695, %v640
      %706 = vst.msk [vmem:[%s172 + $0x28] sm:$0xf] %vm695, %v641
      %707 = vst.msk [vmem:[%s172 + $0x2c] sm:$0xf] %vm695, %v642
      %708 = vst.msk [vmem:[%s172 + $0x30] sm:$0xf] %vm695, %v643
      %709 = vst.msk [vmem:[%s172 + $0x34] sm:$0xf] %vm695, %v644
      %710 = vst.msk [vmem:[%s172 + $0x38] sm:$0xf] %vm695, %v645
      %711 = vst.msk [vmem:[%s172 + $0x3c] sm:$0xf] %vm695, %v646
      %712 = vst.msk [vmem:[%s172 + $0x40] sm:$0xf] %vm695, %v647
      %713 = vst.msk [vmem:[%s172 + $0x44] sm:$0xf] %vm695, %v648
      %714 = vst.msk [vmem:[%s172 + $0x48] sm:$0xf] %vm695, %v649
      %715 = vst.msk [vmem:[%s172 + $0x4c] sm:$0xf] %vm695, %v650
      %716 = vst.msk [vmem:[%s172 + $0x50] sm:$0xf] %vm695, %v651
      %717 = vst.msk [vmem:[%s172 + $0x54] sm:$0xf] %vm695, %v652
      %718 = vst.msk [vmem:[%s172 + $0x58] sm:$0xf] %vm695, %v653
      %719 = vst.msk [vmem:[%s172 + $0x5c] sm:$0xf] %vm695, %v654
      %720 = vst.msk [vmem:[%s172 + $0x60] sm:$0xf] %vm695, %v655
      %721 = vst.msk [vmem:[%s172 + $0x64] sm:$0xf] %vm695, %v656
      %722 = vst.msk [vmem:[%s172 + $0x68] sm:$0xf] %vm695, %v657
      %723 = vst.msk [vmem:[%s172 + $0x6c] sm:$0xf] %vm695, %v658
      %724 = vst.msk [vmem:[%s172 + $0x70] sm:$0xf] %vm695, %v659
      %725 = vst.msk [vmem:[%s172 + $0x74] sm:$0xf] %vm695, %v660
      %726 = vst.msk [vmem:[%s172 + $0x78] sm:$0xf] %vm695, %v661
      %727 = vst.msk [vmem:[%s172 + $0x7c] sm:$0xf] %vm695, %v662
      %s728 = smul.u32 32, %s14
      %p729 = scmp.lt.s32.totalorder %s728, 63
      %s730 = scalar_select %p729, %s728, 63
      %s731 = smul.addr %s730, 4
      %s732 = scalar_lea.vmem %s3, %s731
      // Predicated region
      $region33: #{hourglass_forward.6} parent=31 // pred_check
        %p733 = pneg %p100
      $region34: #{hourglass_forward.6} parent=31 // pred_check_branch
        %735 = sbr.rel (%p733) target = $region36
      $region35: #{hourglass_forward.6} parent=31 // pred_region
        %s736 = smul.u32 32, %s14
      $region36: #{hourglass_forward.6} parent=31 // pred_fallthru
        _
    $region32: #{hourglass_forward.6} parent=5 // pred_fallthru
      _
    %p737 = scmp.le.s32.totalorder 2, %s9
    // Predicated region
    $region37: #{hourglass_forward.6} parent=5 // pred_check
      %p738 = pneg %p737
    $region38: #{hourglass_forward.6} parent=5 // pred_check_branch
      %740 = sbr.rel (%p738) target = $region40
    $region39: #{hourglass_forward.6} parent=5 // pred_region
      %s741 = ssub.s32 %s9, 2
      // Predicated region
      $region41: #{hourglass_forward.6} parent=39 // pred_check
        %p742 = pneg %p106
      $region42: #{hourglass_forward.6} parent=39 // pred_check_branch
        %744 = sbr.rel (%p742) target = $region44
      $region43: #{hourglass_forward.6} parent=39 // pred_region
        %s745 = smul.u32 32, %s15
        %p746 = scmp.lt.s32.totalorder %s745, 63
        %s747 = scalar_select %p746, %s745, 63
        %s748 = smul.addr %s747, 4
        %s749 = scalar_lea.vmem %s3, %s748
      $region44: #{hourglass_forward.6} parent=39 // pred_fallthru
        _
    $region40: #{hourglass_forward.6} parent=5 // pred_fallthru
      _
  $region6: #{hourglass_forward.6} parent=0 // loop_footer
    %s13 = sadd.s32 1, %s9
  $region7: #{hourglass_forward.6} parent=0 // loop_footer_branch
    %8 = sbr.rel target = $region3
  $region8: #{hourglass_forward.6} parent=0 // loop_exit
    _

// kernel: hourglass_forward.7
$region0: #{hourglass_forward.7}
  #allocation0 [shape = 'u32[]', space=smem, size = 0x4, offset = 0x4, fixed_abs, tag = 'smem constant byte address 0x4 - core index']
  #allocation1 [shape = 'u32[144,128]{1,0:T(1,128)}', space=vmem, size = 0x12000, scoped, tag = 'internal scratch']
  %s0 = inlined_call_operand.vmem [shape: bf16[512,256], index: 0, kind: input, shape index: {}]
  %s1 = inlined_call_operand.vmem [shape: bf16[256,8], index: 1, kind: input, shape index: {}]
  %s2 = inlined_call_operand.vmem [shape: f32[1,8], index: 2, kind: input, shape index: {}]
  %s3 = inlined_call_operand.vmem [shape: bf16[512,8], index: 3, kind: output, shape index: {}]
  %s4 = sld [smem:[#allocation0]]
  $region45: #{hourglass_forward.7} parent=0
    _
  %s6 = ssub.s32 1, %s4
  %s7 = scalar_select 0, %s6, %s4
  loop: start=0, step=1, limit=4
  $region2: #{hourglass_forward.7} parent=0 // loop_pre_header
    _
  $region3: #{hourglass_forward.7} parent=0 // loop_header
    %s9 = sphi 0, %s13
    %p10 = scmp.ge.s32.totalorder %s9, 4
    %s19 = sphi 0, %s21
    %s22 = sphi 0, %s19
    %s23 = sphi 0, %s22
    %s39 = sphi 0, %s23
    %s43 = sphi 0, %s43
    %s45 = sphi 0, %s43
    %s46 = sphi 0, %s45
    %s60 = sphi 0, %s46
    %s64 = sphi 0, %s64
    %s66 = sphi 0, %s64
    %s67 = sphi 0, %s66
    %s81 = sphi 0, %s67
    %s87 = sphi 0, %s89
    %s90 = sphi 0, %s87
    %s91 = sphi 0, %s90
    %s107 = sphi 0, %s91
  $region4: #{hourglass_forward.7} parent=0 // loop_header_branch
    %12 = sbr.rel (%p10) target = $region8
  $region5: #{hourglass_forward.7} parent=0 // loop_body
    %s14 = ssub.s32 %s9, 1
    %s15 = ssub.s32 %s9, 2
    %s16 = sadd.s32 %s9, 1
    %s17 = ssub.s32 %s9, %s16
    %p18 = scmp.eq.s32.totalorder %s17, 0
    %s20 = sadd.s32 %s19, 1
    %s21 = scalar_select %p18, %s19, %s20
    %p24 = pneg %p18
    %p25 = scmp.eq.s32.totalorder %s9, 1
    %p26 = por %p24, %p25
    %p27 = scmp.ne.s32.totalorder %s19, %s22
    %p28 = scmp.eq.s32.totalorder %s9, 0
    %p29 = por %p27, %p28
    %p30 = scmp.ne.s32.totalorder %s19, %s22
    %p31 = scmp.eq.s32.totalorder %s14, 1
    %p32 = por %p30, %p31
    %p33 = scmp.ne.s32.totalorder %s22, %s23
    %p34 = scmp.eq.s32.totalorder %s14, 0
    %p35 = por %p33, %p34
    %p36 = scmp.ne.s32.totalorder %s22, %s23
    %p37 = scmp.eq.s32.totalorder %s15, 1
    %p38 = por %p36, %p37
    %p40 = scmp.ne.s32.totalorder %s23, %s39
    %p41 = scmp.eq.s32.totalorder %s15, 0
    %p42 = por %p40, %p41
    %s44 = sadd.s32 %s43, 1
    %p47 = scmp.eq.s32.totalorder %s9, 1
    %p48 = scmp.ne.s32.totalorder %s43, %s45
    %p49 = scmp.eq.s32.totalorder %s9, 0
    %p50 = por %p48, %p49
    %p51 = scmp.ne.s32.totalorder %s43, %s45
    %p52 = scmp.eq.s32.totalorder %s14, 1
    %p53 = por %p51, %p52
    %p54 = scmp.ne.s32.totalorder %s45, %s46
    %p55 = scmp.eq.s32.totalorder %s14, 0
    %p56 = por %p54, %p55
    %p57 = scmp.ne.s32.totalorder %s45, %s46
    %p58 = scmp.eq.s32.totalorder %s15, 1
    %p59 = por %p57, %p58
    %p61 = scmp.ne.s32.totalorder %s46, %s60
    %p62 = scmp.eq.s32.totalorder %s15, 0
    %p63 = por %p61, %p62
    %s65 = sadd.s32 %s64, 1
    %p68 = scmp.eq.s32.totalorder %s9, 1
    %p69 = scmp.ne.s32.totalorder %s64, %s66
    %p70 = scmp.eq.s32.totalorder %s9, 0
    %p71 = por %p69, %p70
    %p72 = scmp.ne.s32.totalorder %s64, %s66
    %p73 = scmp.eq.s32.totalorder %s14, 1
    %p74 = por %p72, %p73
    %p75 = scmp.ne.s32.totalorder %s66, %s67
    %p76 = scmp.eq.s32.totalorder %s14, 0
    %p77 = por %p75, %p76
    %p78 = scmp.ne.s32.totalorder %s66, %s67
    %p79 = scmp.eq.s32.totalorder %s15, 1
    %p80 = por %p78, %p79
    %p82 = scmp.ne.s32.totalorder %s67, %s81
    %p83 = scmp.eq.s32.totalorder %s15, 0
    %p84 = por %p82, %p83
    %s85 = ssub.s32 %s9, %s16
    %p86 = scmp.eq.s32.totalorder %s85, 0
    %s88 = sadd.s32 %s87, 1
    %s89 = scalar_select %p86, %s87, %s88
    %p92 = pneg %p86
    %p93 = scmp.eq.s32.totalorder %s9, 1
    %p94 = por %p92, %p93
    %p95 = scmp.ne.s32.totalorder %s87, %s90
    %p96 = scmp.eq.s32.totalorder %s9, 0
    %p97 = por %p95, %p96
    %p98 = scmp.ne.s32.totalorder %s87, %s90
    %p99 = scmp.eq.s32.totalorder %s14, 1
    %p100 = por %p98, %p99
    %p101 = scmp.ne.s32.totalorder %s90, %s91
    %p102 = scmp.eq.s32.totalorder %s14, 0
    %p103 = por %p101, %p102
    %p104 = scmp.ne.s32.totalorder %s90, %s91
    %p105 = scmp.eq.s32.totalorder %s15, 1
    %p106 = por %p104, %p105
    %p108 = scmp.ne.s32.totalorder %s91, %s107
    %p109 = scmp.eq.s32.totalorder %s15, 0
    %p110 = por %p108, %p109
    %p111 = scmp.le.s32.totalorder 1, %s9
    %p112 = scmp.lt.s32.totalorder %s9, 3
    %p113 = pnand %p111, %p112
    %p114 = pneg %p113
    // Predicated region
    $region9: #{hourglass_forward.7} parent=5 // pred_check
      _
    $region10: #{hourglass_forward.7} parent=5 // pred_check_branch
      %116 = sbr.rel (%p113) target = $region12
    $region11: #{hourglass_forward.7} parent=5 // pred_region
      %s117 = ssub.s32 %s9, 1
      // Predicated region
      $region13: #{hourglass_forward.7} parent=11 // pred_check
        %p118 = pneg %p56
      $region14: #{hourglass_forward.7} parent=11 // pred_check_branch
        %120 = sbr.rel (%p118) target = $region16
      $region15: #{hourglass_forward.7} parent=11 // pred_region
        _
      $region16: #{hourglass_forward.7} parent=11 // pred_fallthru
        _
      // Predicated region
      $region17: #{hourglass_forward.7} parent=11 // pred_check
        %p121 = pneg %p77
      $region18: #{hourglass_forward.7} parent=11 // pred_check_branch
        %123 = sbr.rel (%p121) target = $region20
      $region19: #{hourglass_forward.7} parent=11 // pred_region
        _
      $region20: #{hourglass_forward.7} parent=11 // pred_fallthru
        _
    $region12: #{hourglass_forward.7} parent=5 // pred_fallthru
      _
    %p124 = scmp.lt.s32.totalorder %s9, 2
    // Predicated region
    $region21: #{hourglass_forward.7} parent=5 // pred_check
      %p125 = pneg %p124
    $region22: #{hourglass_forward.7} parent=5 // pred_check_branch
      %127 = sbr.rel (%p125) target = $region24
    $region23: #{hourglass_forward.7} parent=5 // pred_region
      // Predicated region
      $region25: #{hourglass_forward.7} parent=23 // pred_check
        %p128 = pneg %p29
      $region26: #{hourglass_forward.7} parent=23 // pred_check_branch
        %130 = sbr.rel (%p128) target = $region28
      $region27: #{hourglass_forward.7} parent=23 // pred_region
        %s131 = smul.u32 32, %s9
        %p132 = scmp.lt.s32.totalorder %s131, 63
        %s133 = scalar_select %p132, %s131, 63
        %s134 = smul.addr %s133, 2
        %s135 = smul.addr %s134, 4
        %s136 = scalar_lea.vmem %s0, %s135
        %s137 = smul.u32 32, %s9
      $region28: #{hourglass_forward.7} parent=23 // pred_fallthru
        _
    $region24: #{hourglass_forward.7} parent=5 // pred_fallthru
      _
    %p138 = scmp.le.s32.totalorder 1, %s9
    %p139 = scmp.lt.s32.totalorder %s9, 3
    %p140 = pnand %p138, %p139
    %p141 = pneg %p140
    // Predicated region
    $region29: #{hourglass_forward.7} parent=5 // pred_check
      _
    $region30: #{hourglass_forward.7} parent=5 // pred_check_branch
      %143 = sbr.rel (%p140) target = $region32
    $region31: #{hourglass_forward.7} parent=5 // pred_region
      %s144 = ssub.s32 %s9, 1
      %s145 = smul.u32 32, %s14
      %p146 = scmp.lt.s32.totalorder %s145, 63
      %s147 = scalar_select %p146, %s145, 63
      %s148 = smul.addr %s147, 2
      %s149 = smul.addr %s148, 4
      %s150 = scalar_lea.vmem %s0, %s149
      %p151 = pneg %p35
      %p152 = pneg %p32
      %p153 = pneg %p56
      %p154 = pneg %p53
      %p155 = pneg %p77
      %p156 = pneg %p74
      %p157 = pneg %p103
      %p158 = pneg %p100
      %s159 = smul.u32 32, %s14
      %p160 = scmp.lt.s32.totalorder %s159, 63
      %s161 = scalar_select %p160, %s159, 63
      %s162 = smul.addr %s161, 4
      %s163 = scalar_lea.vmem %s3, %s162
      %s164 = smul.u32 32, %s14
      %p165 = scmp.lt.s32.totalorder %s164, 63
      %s166 = scalar_select %p165, %s164, 63
      %s167 = smul.addr %s166, 2
      %s168 = smul.addr %s167, 4
      %s169 = scalar_lea.vmem %s0, %s168
      %s170 = smul.u32 32, %s14
      %s171 = smul.u32 32, %s14
      %p172 = scmp.lt.s32.totalorder %s171, 63
      %s173 = scalar_select %p172, %s171, 63
      %s174 = smul.addr %s173, 4
      %s175 = scalar_lea.vmem %s3, %s174
      %s176 = smul.u32 32, %s14
      %v178 = vld [vmem:[%s169] sm:$0xff]
      %v179 = vld [vmem:[%s169 + $0x8] sm:$0xff]
      %v180 = vld [vmem:[%s169 + $0x10] sm:$0xff]
      %v181 = vld [vmem:[%s169 + $0x18] sm:$0xff]
      %v182 = vld [vmem:[%s169 + $0x20] sm:$0xff]
      %v183 = vld [vmem:[%s169 + $0x28] sm:$0xff]
      %v184 = vld [vmem:[%s169 + $0x30] sm:$0xff]
      %v185 = vld [vmem:[%s169 + $0x38] sm:$0xff]
      %v186 = vld [vmem:[%s169 + $0x40] sm:$0xff]
      %v187 = vld [vmem:[%s169 + $0x48] sm:$0xff]
      %v188 = vld [vmem:[%s169 + $0x50] sm:$0xff]
      %v189 = vld [vmem:[%s169 + $0x58] sm:$0xff]
      %v190 = vld [vmem:[%s169 + $0x60] sm:$0xff]
      %v191 = vld [vmem:[%s169 + $0x68] sm:$0xff]
      %v192 = vld [vmem:[%s169 + $0x70] sm:$0xff]
      %v193 = vld [vmem:[%s169 + $0x78] sm:$0xff]
      %v194 = vld [vmem:[%s169 + $0x80] sm:$0xff]
      %v195 = vld [vmem:[%s169 + $0x88] sm:$0xff]
      %v196 = vld [vmem:[%s169 + $0x90] sm:$0xff]
      %v197 = vld [vmem:[%s169 + $0x98] sm:$0xff]
      %v198 = vld [vmem:[%s169 + $0xa0] sm:$0xff]
      %v199 = vld [vmem:[%s169 + $0xa8] sm:$0xff]
      %v200 = vld [vmem:[%s169 + $0xb0] sm:$0xff]
      %v201 = vld [vmem:[%s169 + $0xb8] sm:$0xff]
      %v202 = vld [vmem:[%s169 + $0xc0] sm:$0xff]
      %v203 = vld [vmem:[%s169 + $0xc8] sm:$0xff]
      %v204 = vld [vmem:[%s169 + $0xd0] sm:$0xff]
      %v205 = vld [vmem:[%s169 + $0xd8] sm:$0xff]
      %v206 = vld [vmem:[%s169 + $0xe0] sm:$0xff]
      %v207 = vld [vmem:[%s169 + $0xe8] sm:$0xff]
      %v208 = vld [vmem:[%s169 + $0xf0] sm:$0xff]
      %v209 = vld [vmem:[%s169 + $0xf8] sm:$0xff]
      %v210 = vld [vmem:[%s1] sm:$0xf]
      %v211 = vld [vmem:[%s1 + $0x4] sm:$0xf]
      %v212 = vld [vmem:[%s1 + $0x8] sm:$0xf]
      %v213 = vld [vmem:[%s1 + $0xc] sm:$0xf]
      %v214 = vld [vmem:[%s1 + $0x10] sm:$0xf]
      %v215 = vld [vmem:[%s1 + $0x14] sm:$0xf]
      %v216 = vld [vmem:[%s1 + $0x18] sm:$0xf]
      %v217 = vld [vmem:[%s1 + $0x1c] sm:$0xf]
      %v218 = vld [vmem:[%s1 + $0x20] sm:$0xf]
      %v219 = vld [vmem:[%s1 + $0x24] sm:$0xf]
      %v220 = vld [vmem:[%s1 + $0x28] sm:$0xf]
      %v221 = vld [vmem:[%s1 + $0x2c] sm:$0xf]
      %v222 = vld [vmem:[%s1 + $0x30] sm:$0xf]
      %v223 = vld [vmem:[%s1 + $0x34] sm:$0xf]
      %v224 = vld [vmem:[%s1 + $0x38] sm:$0xf]
      %v225 = vld [vmem:[%s1 + $0x3c] sm:$0xf]
      %v226 = vld [vmem:[%s1 + $0x40] sm:$0xf]
      %v227 = vld [vmem:[%s1 + $0x44] sm:$0xf]
      %v228 = vld [vmem:[%s1 + $0x48] sm:$0xf]
      %v229 = vld [vmem:[%s1 + $0x4c] sm:$0xf]
      %v230 = vld [vmem:[%s1 + $0x50] sm:$0xf]
      %v231 = vld [vmem:[%s1 + $0x54] sm:$0xf]
      %v232 = vld [vmem:[%s1 + $0x58] sm:$0xf]
      %v233 = vld [vmem:[%s1 + $0x5c] sm:$0xf]
      %v234 = vld [vmem:[%s1 + $0x60] sm:$0xf]
      %v235 = vld [vmem:[%s1 + $0x64] sm:$0xf]
      %v236 = vld [vmem:[%s1 + $0x68] sm:$0xf]
      %v237 = vld [vmem:[%s1 + $0x6c] sm:$0xf]
      %v238 = vld [vmem:[%s1 + $0x70] sm:$0xf]
      %v239 = vld [vmem:[%s1 + $0x74] sm:$0xf]
      %v240 = vld [vmem:[%s1 + $0x78] sm:$0xf]
      %v241 = vld [vmem:[%s1 + $0x7c] sm:$0xf]
      %v242 = vld [vmem:[%s2] sm:$0x1]
      %v244 = vlaneseq
      %v245 = vshrl.u32 %v244, 7
      %v246 = vsub.s32 0, %v245
      %v247 = vrot.slane %v242, %v246
      %v281 = vunpack.c.l.b16 %v178
      %v282 = vunpack.c.h.b16 %v178
      %v283 = vunpack.c.l.b16 %v179
      %v284 = vunpack.c.h.b16 %v179
      %v285 = vunpack.c.l.b16 %v180
      %v286 = vunpack.c.h.b16 %v180
      %v287 = vunpack.c.l.b16 %v181
      %v288 = vunpack.c.h.b16 %v181
      %v289 = vunpack.c.l.b16 %v182
      %v290 = vunpack.c.h.b16 %v182
      %v291 = vunpack.c.l.b16 %v183
      %v292 = vunpack.c.h.b16 %v183
      %v293 = vunpack.c.l.b16 %v184
      %v294 = vunpack.c.h.b16 %v184
      %v295 = vunpack.c.l.b16 %v185
      %v296 = vunpack.c.h.b16 %v185
      %v297 = vunpack.c.l.b16 %v186
      %v298 = vunpack.c.h.b16 %v186
      %v299 = vunpack.c.l.b16 %v187
      %v300 = vunpack.c.h.b16 %v187
      %v301 = vunpack.c.l.b16 %v188
      %v302 = vunpack.c.h.b16 %v188
      %v303 = vunpack.c.l.b16 %v189
      %v304 = vunpack.c.h.b16 %v189
      %v305 = vunpack.c.l.b16 %v190
      %v306 = vunpack.c.h.b16 %v190
      %v307 = vunpack.c.l.b16 %v191
      %v308 = vunpack.c.h.b16 %v191
      %v309 = vunpack.c.l.b16 %v192
      %v310 = vunpack.c.h.b16 %v192
      %v311 = vunpack.c.l.b16 %v193
      %v312 = vunpack.c.h.b16 %v193
      %v313 = vunpack.c.l.b16 %v194
      %v314 = vunpack.c.h.b16 %v194
      %v315 = vunpack.c.l.b16 %v195
      %v316 = vunpack.c.h.b16 %v195
      %v317 = vunpack.c.l.b16 %v196
      %v318 = vunpack.c.h.b16 %v196
      %v319 = vunpack.c.l.b16 %v197
      %v320 = vunpack.c.h.b16 %v197
      %v321 = vunpack.c.l.b16 %v198
      %v322 = vunpack.c.h.b16 %v198
      %v323 = vunpack.c.l.b16 %v199
      %v324 = vunpack.c.h.b16 %v199
      %v325 = vunpack.c.l.b16 %v200
      %v326 = vunpack.c.h.b16 %v200
      %v327 = vunpack.c.l.b16 %v201
      %v328 = vunpack.c.h.b16 %v201
      %v329 = vunpack.c.l.b16 %v202
      %v330 = vunpack.c.h.b16 %v202
      %v331 = vunpack.c.l.b16 %v203
      %v332 = vunpack.c.h.b16 %v203
      %v333 = vunpack.c.l.b16 %v204
      %v334 = vunpack.c.h.b16 %v204
      %v335 = vunpack.c.l.b16 %v205
      %v336 = vunpack.c.h.b16 %v205
      %v337 = vunpack.c.l.b16 %v206
      %v338 = vunpack.c.h.b16 %v206
      %v339 = vunpack.c.l.b16 %v207
      %v340 = vunpack.c.h.b16 %v207
      %v341 = vunpack.c.l.b16 %v208
      %v342 = vunpack.c.h.b16 %v208
      %v343 = vunpack.c.l.b16 %v209
      %v344 = vunpack.c.h.b16 %v209
      %v345 = vpack.c.b16 %v283, %v281
      %v346 = vpack.c.b16 %v284, %v282
      %v347 = vpack.c.b16 %v287, %v285
      %v348 = vpack.c.b16 %v288, %v286
      %v349 = vpack.c.b16 %v291, %v289
      %v350 = vpack.c.b16 %v292, %v290
      %v351 = vpack.c.b16 %v295, %v293
      %v352 = vpack.c.b16 %v296, %v294
      %v353 = vpack.c.b16 %v299, %v297
      %v354 = vpack.c.b16 %v300, %v298
      %v355 = vpack.c.b16 %v303, %v301
      %v356 = vpack.c.b16 %v304, %v302
      %v357 = vpack.c.b16 %v307, %v305
      %v358 = vpack.c.b16 %v308, %v306
      %v359 = vpack.c.b16 %v311, %v309
      %v360 = vpack.c.b16 %v312, %v310
      %v361 = vpack.c.b16 %v315, %v313
      %v362 = vpack.c.b16 %v316, %v314
      %v363 = vpack.c.b16 %v319, %v317
      %v364 = vpack.c.b16 %v320, %v318
      %v365 = vpack.c.b16 %v323, %v321
      %v366 = vpack.c.b16 %v324, %v322
      %v367 = vpack.c.b16 %v327, %v325
      %v368 = vpack.c.b16 %v328, %v326
      %v369 = vpack.c.b16 %v331, %v329
      %v370 = vpack.c.b16 %v332, %v330
      %v371 = vpack.c.b16 %v335, %v333
      %v372 = vpack.c.b16 %v336, %v334
      %v373 = vpack.c.b16 %v339, %v337
      %v374 = vpack.c.b16 %v340, %v338
      %v375 = vpack.c.b16 %v343, %v341
      %v376 = vpack.c.b16 %v344, %v342
      %v441 = vunpack.c.l.b16 %v210
      %v442 = vunpack.c.l.b16 %v211
      %v443 = vunpack.c.l.b16 %v212
      %v444 = vunpack.c.l.b16 %v213
      %v445 = vunpack.c.l.b16 %v214
      %v446 = vunpack.c.l.b16 %v215
      %v447 = vunpack.c.l.b16 %v216
      %v448 = vunpack.c.l.b16 %v217
      %v449 = vunpack.c.l.b16 %v218
      %v450 = vunpack.c.l.b16 %v219
      %v451 = vunpack.c.l.b16 %v220
      %v452 = vunpack.c.l.b16 %v221
      %v453 = vunpack.c.l.b16 %v222
      %v454 = vunpack.c.l.b16 %v223
      %v455 = vunpack.c.l.b16 %v224
      %v456 = vunpack.c.l.b16 %v225
      %v457 = vunpack.c.l.b16 %v226
      %v458 = vunpack.c.l.b16 %v227
      %v459 = vunpack.c.l.b16 %v228
      %v460 = vunpack.c.l.b16 %v229
      %v461 = vunpack.c.l.b16 %v230
      %v462 = vunpack.c.l.b16 %v231
      %v463 = vunpack.c.l.b16 %v232
      %v464 = vunpack.c.l.b16 %v233
      %v465 = vunpack.c.l.b16 %v234
      %v466 = vunpack.c.l.b16 %v235
      %v467 = vunpack.c.l.b16 %v236
      %v468 = vunpack.c.l.b16 %v237
      %v469 = vunpack.c.l.b16 %v238
      %v470 = vunpack.c.l.b16 %v239
      %v471 = vunpack.c.l.b16 %v240
      %v472 = vunpack.c.l.b16 %v241
      %v473 = vpack.c.b16 %v442, %v441
      %v474 = vpack.c.b16 %v444, %v443
      %v475 = vpack.c.b16 %v446, %v445
      %v476 = vpack.c.b16 %v448, %v447
      %v477 = vpack.c.b16 %v450, %v449
      %v478 = vpack.c.b16 %v452, %v451
      %v479 = vpack.c.b16 %v454, %v453
      %v480 = vpack.c.b16 %v456, %v455
      %v481 = vpack.c.b16 %v458, %v457
      %v482 = vpack.c.b16 %v460, %v459
      %v483 = vpack.c.b16 %v462, %v461
      %v484 = vpack.c.b16 %v464, %v463
      %v485 = vpack.c.b16 %v466, %v465
      %v486 = vpack.c.b16 %v468, %v467
      %v487 = vpack.c.b16 %v470, %v469
      %v488 = vpack.c.b16 %v472, %v471
      %505 = vmatprep.subr.bf16.mxu0 0
      %506 = vmatpush1.bf16.msra.mxu0 %v473
      %507 = vmatprep.subr.bf16.mxu0 0
      %508 = vmatpush1.bf16.msra.mxu0 %v474
      %509 = vmatprep.subr.bf16.mxu0 0
      %510 = vmatpush1.bf16.msra.mxu0 %v475
      %511 = vmatprep.subr.bf16.mxu0 0
      %512 = vmatpush1.bf16.msra.mxu0 %v476
      %513 = vmatprep.subr.bf16.mxu0 0
      %514 = vmatpush1.bf16.msra.mxu0 %v477
      %515 = vmatprep.subr.bf16.mxu0 0
      %516 = vmatpush1.bf16.msra.mxu0 %v478
      %517 = vmatprep.subr.bf16.mxu0 0
      %518 = vmatpush1.bf16.msra.mxu0 %v479
      %519 = vmatprep.subr.bf16.mxu0 0
      %520 = vmatpush1.bf16.msra.mxu0 %v480
      %521 = vmatprep.subr.bf16.mxu0 0
      %522 = vmatpush1.bf16.msra.mxu0 %v481
      %523 = vmatprep.subr.bf16.mxu0 0
      %524 = vmatpush1.bf16.msra.mxu0 %v482
      %525 = vmatprep.subr.bf16.mxu0 0
      %526 = vmatpush1.bf16.msra.mxu0 %v483
      %527 = vmatprep.subr.bf16.mxu0 0
      %528 = vmatpush1.bf16.msra.mxu0 %v484
      %529 = vmatprep.subr.bf16.mxu0 0
      %530 = vmatpush1.bf16.msra.mxu0 %v485
      %531 = vmatprep.subr.bf16.mxu0 0
      %532 = vmatpush1.bf16.msra.mxu0 %v486
      %533 = vmatprep.subr.bf16.mxu0 0
      %534 = vmatpush1.bf16.msra.mxu0 %v487
      %535 = vmatprep.subr.bf16.mxu0 0
      %536 = vmatpush1.bf16.msra.mxu0 %v488
      %537 = vmatprep.mubr.bf16.mxu0 %v346
      %538 = vmatmul.mubr.bf16.gmra.mrb[0].mxu0 %v345
      %v539 = vpop.f32.mrb[0].mxu0
      %v540 = vadd.f32 %v247, %v539
      %v541 = vpop.f32.mrb[0].mxu0
      %v542 = vpop.f32.mrb[0].mxu0
      %v543 = vadd.f32 %v247, %v542
      %v544 = vpop.f32.mrb[0].mxu0
      %545 = vmatprep.mubr.bf16.mxu0 %v348
      %546 = vmatmul.mubr.bf16.gmra.mrb[0].mxu0 %v347
      %v547 = vpop.f32.mrb[0].mxu0
      %v548 = vadd.f32 %v247, %v547
      %v549 = vpop.f32.mrb[0].mxu0
      %v550 = vpop.f32.mrb[0].mxu0
      %v551 = vadd.f32 %v247, %v550
      %v552 = vpop.f32.mrb[0].mxu0
      %553 = vmatprep.mubr.bf16.mxu0 %v350
      %554 = vmatmul.mubr.bf16.gmra.mrb[0].mxu0 %v349
      %v555 = vpop.f32.mrb[0].mxu0
      %v556 = vadd.f32 %v247, %v555
      %v557 = vpop.f32.mrb[0].mxu0
      %v558 = vpop.f32.mrb[0].mxu0
      %v559 = vadd.f32 %v247, %v558
      %v560 = vpop.f32.mrb[0].mxu0
      %561 = vmatprep.mubr.bf16.mxu0 %v352
      %562 = vmatmul.mubr.bf16.gmra.mrb[0].mxu0 %v351
      %v563 = vpop.f32.mrb[0].mxu0
      %v564 = vadd.f32 %v247, %v563
      %v565 = vpop.f32.mrb[0].mxu0
      %v566 = vpop.f32.mrb[0].mxu0
      %v567 = vadd.f32 %v247, %v566
      %v568 = vpop.f32.mrb[0].mxu0
      %569 = vmatprep.mubr.bf16.mxu0 %v354
      %570 = vmatmul.mubr.bf16.gmra.mrb[0].mxu0 %v353
      %v571 = vpop.f32.mrb[0].mxu0
      %v572 = vadd.f32 %v247, %v571
      %v573 = vpop.f32.mrb[0].mxu0
      %v574 = vpop.f32.mrb[0].mxu0
      %v575 = vadd.f32 %v247, %v574
      %v576 = vpop.f32.mrb[0].mxu0
      %577 = vmatprep.mubr.bf16.mxu0 %v356
      %578 = vmatmul.mubr.bf16.gmra.mrb[0].mxu0 %v355
      %v579 = vpop.f32.mrb[0].mxu0
      %v580 = vadd.f32 %v247, %v579
      %v581 = vpop.f32.mrb[0].mxu0
      %v582 = vpop.f32.mrb[0].mxu0
      %v583 = vadd.f32 %v247, %v582
      %v584 = vpop.f32.mrb[0].mxu0
      %585 = vmatprep.mubr.bf16.mxu0 %v358
      %586 = vmatmul.mubr.bf16.gmra.mrb[0].mxu0 %v357
      %v587 = vpop.f32.mrb[0].mxu0
      %v588 = vadd.f32 %v247, %v587
      %v589 = vpop.f32.mrb[0].mxu0
      %v590 = vpop.f32.mrb[0].mxu0
      %v591 = vadd.f32 %v247, %v590
      %v592 = vpop.f32.mrb[0].mxu0
      %593 = vmatprep.mubr.bf16.mxu0 %v360
      %594 = vmatmul.mubr.bf16.gmra.mrb[0].mxu0 %v359
      %v595 = vpop.f32.mrb[0].mxu0
      %v596 = vadd.f32 %v247, %v595
      %v597 = vpop.f32.mrb[0].mxu0
      %v598 = vpop.f32.mrb[0].mxu0
      %v599 = vadd.f32 %v247, %v598
      %v600 = vpop.f32.mrb[0].mxu0
      %601 = vmatprep.mubr.bf16.mxu0 %v362
      %602 = vmatmul.mubr.bf16.gmra.mrb[0].mxu0 %v361
      %v603 = vpop.f32.mrb[0].mxu0
      %v604 = vadd.f32 %v247, %v603
      %v605 = vpop.f32.mrb[0].mxu0
      %v606 = vpop.f32.mrb[0].mxu0
      %v607 = vadd.f32 %v247, %v606
      %v608 = vpop.f32.mrb[0].mxu0
      %609 = vmatprep.mubr.bf16.mxu0 %v364
      %610 = vmatmul.mubr.bf16.gmra.mrb[0].mxu0 %v363
      %v611 = vpop.f32.mrb[0].mxu0
      %v612 = vadd.f32 %v247, %v611
      %v613 = vpop.f32.mrb[0].mxu0
      %v614 = vpop.f32.mrb[0].mxu0
      %v615 = vadd.f32 %v247, %v614
      %v616 = vpop.f32.mrb[0].mxu0
      %617 = vmatprep.mubr.bf16.mxu0 %v366
      %618 = vmatmul.mubr.bf16.gmra.mrb[0].mxu0 %v365
      %v619 = vpop.f32.mrb[0].mxu0
      %v620 = vadd.f32 %v247, %v619
      %v621 = vpop.f32.mrb[0].mxu0
      %v622 = vpop.f32.mrb[0].mxu0
      %v623 = vadd.f32 %v247, %v622
      %v624 = vpop.f32.mrb[0].mxu0
      %625 = vmatprep.mubr.bf16.mxu0 %v368
      %626 = vmatmul.mubr.bf16.gmra.mrb[0].mxu0 %v367
      %v627 = vpop.f32.mrb[0].mxu0
      %v628 = vadd.f32 %v247, %v627
      %v629 = vpop.f32.mrb[0].mxu0
      %v630 = vpop.f32.mrb[0].mxu0
      %v631 = vadd.f32 %v247, %v630
      %v632 = vpop.f32.mrb[0].mxu0
      %633 = vmatprep.mubr.bf16.mxu0 %v370
      %634 = vmatmul.mubr.bf16.gmra.mrb[0].mxu0 %v369
      %v635 = vpop.f32.mrb[0].mxu0
      %v636 = vadd.f32 %v247, %v635
      %v637 = vpop.f32.mrb[0].mxu0
      %v638 = vpop.f32.mrb[0].mxu0
      %v639 = vadd.f32 %v247, %v638
      %v640 = vpop.f32.mrb[0].mxu0
      %641 = vmatprep.mubr.bf16.mxu0 %v372
      %642 = vmatmul.mubr.bf16.gmra.mrb[0].mxu0 %v371
      %v643 = vpop.f32.mrb[0].mxu0
      %v644 = vadd.f32 %v247, %v643
      %v645 = vpop.f32.mrb[0].mxu0
      %v646 = vpop.f32.mrb[0].mxu0
      %v647 = vadd.f32 %v247, %v646
      %v648 = vpop.f32.mrb[0].mxu0
      %649 = vmatprep.mubr.bf16.mxu0 %v374
      %650 = vmatmul.mubr.bf16.gmra.mrb[0].mxu0 %v373
      %v651 = vpop.f32.mrb[0].mxu0
      %v652 = vadd.f32 %v247, %v651
      %v653 = vpop.f32.mrb[0].mxu0
      %v654 = vpop.f32.mrb[0].mxu0
      %v655 = vadd.f32 %v247, %v654
      %v656 = vpop.f32.mrb[0].mxu0
      %657 = vmatprep.mubr.bf16.mxu0 %v376
      %658 = vmatmul.mubr.bf16.gmra.mrb[0].mxu0 %v375
      %v659 = vpop.f32.mrb[0].mxu0
      %v660 = vadd.f32 %v247, %v659
      %v661 = vpop.f32.mrb[0].mxu0
      %v662 = vpop.f32.mrb[0].mxu0
      %v663 = vadd.f32 %v247, %v662
      %v664 = vpop.f32.mrb[0].mxu0
      %665 = vdwg.mxu0
      %v666 = vmax.f32 %v540, 0.0
      %v667 = vmax.f32 %v543, 0.0
      %v668 = vmax.f32 %v548, 0.0
      %v669 = vmax.f32 %v551, 0.0
      %v670 = vmax.f32 %v556, 0.0
      %v671 = vmax.f32 %v559, 0.0
      %v672 = vmax.f32 %v564, 0.0
      %v673 = vmax.f32 %v567, 0.0
      %v674 = vmax.f32 %v572, 0.0
      %v675 = vmax.f32 %v575, 0.0
      %v676 = vmax.f32 %v580, 0.0
      %v677 = vmax.f32 %v583, 0.0
      %v678 = vmax.f32 %v588, 0.0
      %v679 = vmax.f32 %v591, 0.0
      %v680 = vmax.f32 %v596, 0.0
      %v681 = vmax.f32 %v599, 0.0
      %v682 = vmax.f32 %v604, 0.0
      %v683 = vmax.f32 %v607, 0.0
      %v684 = vmax.f32 %v612, 0.0
      %v685 = vmax.f32 %v615, 0.0
      %v686 = vmax.f32 %v620, 0.0
      %v687 = vmax.f32 %v623, 0.0
      %v688 = vmax.f32 %v628, 0.0
      %v689 = vmax.f32 %v631, 0.0
      %v690 = vmax.f32 %v636, 0.0
      %v691 = vmax.f32 %v639, 0.0
      %v692 = vmax.f32 %v644, 0.0
      %v693 = vmax.f32 %v647, 0.0
      %v694 = vmax.f32 %v652, 0.0
      %v695 = vmax.f32 %v655, 0.0
      %v696 = vmax.f32 %v660, 0.0
      %v697 = vmax.f32 %v663, 0.0
      %v698 = vpack.c.bf16 %v667, %v666
      %v699 = vpack.c.bf16 %v669, %v668
      %v700 = vpack.c.bf16 %v671, %v670
      %v701 = vpack.c.bf16 %v673, %v672
      %v702 = vpack.c.bf16 %v675, %v674
      %v703 = vpack.c.bf16 %v677, %v676
      %v704 = vpack.c.bf16 %v679, %v678
      %v705 = vpack.c.bf16 %v681, %v680
      %v706 = vpack.c.bf16 %v683, %v682
      %v707 = vpack.c.bf16 %v685, %v684
      %v708 = vpack.c.bf16 %v687, %v686
      %v709 = vpack.c.bf16 %v689, %v688
      %v710 = vpack.c.bf16 %v691, %v690
      %v711 = vpack.c.bf16 %v693, %v692
      %v712 = vpack.c.bf16 %v695, %v694
      %v713 = vpack.c.bf16 %v697, %v696
      %v730 = vunpack.c.l.b16 %v698
      %v731 = vunpack.c.h.b16 %v698
      %v732 = vunpack.c.l.b16 %v699
      %v733 = vunpack.c.h.b16 %v699
      %v734 = vunpack.c.l.b16 %v700
      %v735 = vunpack.c.h.b16 %v700
      %v736 = vunpack.c.l.b16 %v701
      %v737 = vunpack.c.h.b16 %v701
      %v738 = vunpack.c.l.b16 %v702
      %v739 = vunpack.c.h.b16 %v702
      %v740 = vunpack.c.l.b16 %v703
      %v741 = vunpack.c.h.b16 %v703
      %v742 = vunpack.c.l.b16 %v704
      %v743 = vunpack.c.h.b16 %v704
      %v744 = vunpack.c.l.b16 %v705
      %v745 = vunpack.c.h.b16 %v705
      %v746 = vunpack.c.l.b16 %v706
      %v747 = vunpack.c.h.b16 %v706
      %v748 = vunpack.c.l.b16 %v707
      %v749 = vunpack.c.h.b16 %v707
      %v750 = vunpack.c.l.b16 %v708
      %v751 = vunpack.c.h.b16 %v708
      %v752 = vunpack.c.l.b16 %v709
      %v753 = vunpack.c.h.b16 %v709
      %v754 = vunpack.c.l.b16 %v710
      %v755 = vunpack.c.h.b16 %v710
      %v756 = vunpack.c.l.b16 %v711
      %v757 = vunpack.c.h.b16 %v711
      %v758 = vunpack.c.l.b16 %v712
      %v759 = vunpack.c.h.b16 %v712
      %v760 = vunpack.c.l.b16 %v713
      %v761 = vunpack.c.h.b16 %v713
      %v762 = vpack.c.b16 %v730, %v730
      %v763 = vpack.c.b16 %v731, %v731
      %v764 = vpack.c.b16 %v732, %v732
      %v765 = vpack.c.b16 %v733, %v733
      %v766 = vpack.c.b16 %v734, %v734
      %v767 = vpack.c.b16 %v735, %v735
      %v768 = vpack.c.b16 %v736, %v736
      %v769 = vpack.c.b16 %v737, %v737
      %v770 = vpack.c.b16 %v738, %v738
      %v771 = vpack.c.b16 %v739, %v739
      %v772 = vpack.c.b16 %v740, %v740
      %v773 = vpack.c.b16 %v741, %v741
      %v774 = vpack.c.b16 %v742, %v742
      %v775 = vpack.c.b16 %v743, %v743
      %v776 = vpack.c.b16 %v744, %v744
      %v777 = vpack.c.b16 %v745, %v745
      %v778 = vpack.c.b16 %v746, %v746
      %v779 = vpack.c.b16 %v747, %v747
      %v780 = vpack.c.b16 %v748, %v748
      %v781 = vpack.c.b16 %v749, %v749
      %v782 = vpack.c.b16 %v750, %v750
      %v783 = vpack.c.b16 %v751, %v751
      %v784 = vpack.c.b16 %v752, %v752
      %v785 = vpack.c.b16 %v753, %v753
      %v786 = vpack.c.b16 %v754, %v754
      %v787 = vpack.c.b16 %v755, %v755
      %v788 = vpack.c.b16 %v756, %v756
      %v789 = vpack.c.b16 %v757, %v757
      %v790 = vpack.c.b16 %v758, %v758
      %v791 = vpack.c.b16 %v759, %v759
      %v792 = vpack.c.b16 %v760, %v760
      %v793 = vpack.c.b16 %v761, %v761
      %vm826 = vcmask 60416
      %827 = vst.msk [vmem:[%s175] sm:$0xf] %vm826, %v762
      %828 = vst.msk [vmem:[%s175 + $0x4] sm:$0xf] %vm826, %v763
      %829 = vst.msk [vmem:[%s175 + $0x8] sm:$0xf] %vm826, %v764
      %830 = vst.msk [vmem:[%s175 + $0xc] sm:$0xf] %vm826, %v765
      %831 = vst.msk [vmem:[%s175 + $0x10] sm:$0xf] %vm826, %v766
      %832 = vst.msk [vmem:[%s175 + $0x14] sm:$0xf] %vm826, %v767
      %833 = vst.msk [vmem:[%s175 + $0x18] sm:$0xf] %vm826, %v768
      %834 = vst.msk [vmem:[%s175 + $0x1c] sm:$0xf] %vm826, %v769
      %835 = vst.msk [vmem:[%s175 + $0x20] sm:$0xf] %vm826, %v770
      %836 = vst.msk [vmem:[%s175 + $0x24] sm:$0xf] %vm826, %v771
      %837 = vst.msk [vmem:[%s175 + $0x28] sm:$0xf] %vm826, %v772
      %838 = vst.msk [vmem:[%s175 + $0x2c] sm:$0xf] %vm826, %v773
      %839 = vst.msk [vmem:[%s175 + $0x30] sm:$0xf] %vm826, %v774
      %840 = vst.msk [vmem:[%s175 + $0x34] sm:$0xf] %vm826, %v775
      %841 = vst.msk [vmem:[%s175 + $0x38] sm:$0xf] %vm826, %v776
      %842 = vst.msk [vmem:[%s175 + $0x3c] sm:$0xf] %vm826, %v777
      %843 = vst.msk [vmem:[%s175 + $0x40] sm:$0xf] %vm826, %v778
      %844 = vst.msk [vmem:[%s175 + $0x44] sm:$0xf] %vm826, %v779
      %845 = vst.msk [vmem:[%s175 + $0x48] sm:$0xf] %vm826, %v780
      %846 = vst.msk [vmem:[%s175 + $0x4c] sm:$0xf] %vm826, %v781
      %847 = vst.msk [vmem:[%s175 + $0x50] sm:$0xf] %vm826, %v782
      %848 = vst.msk [vmem:[%s175 + $0x54] sm:$0xf] %vm826, %v783
      %849 = vst.msk [vmem:[%s175 + $0x58] sm:$0xf] %vm826, %v784
      %850 = vst.msk [vmem:[%s175 + $0x5c] sm:$0xf] %vm826, %v785
      %851 = vst.msk [vmem:[%s175 + $0x60] sm:$0xf] %vm826, %v786
      %852 = vst.msk [vmem:[%s175 + $0x64] sm:$0xf] %vm826, %v787
      %853 = vst.msk [vmem:[%s175 + $0x68] sm:$0xf] %vm826, %v788
      %854 = vst.msk [vmem:[%s175 + $0x6c] sm:$0xf] %vm826, %v789
      %855 = vst.msk [vmem:[%s175 + $0x70] sm:$0xf] %vm826, %v790
      %856 = vst.msk [vmem:[%s175 + $0x74] sm:$0xf] %vm826, %v791
      %857 = vst.msk [vmem:[%s175 + $0x78] sm:$0xf] %vm826, %v792
      %858 = vst.msk [vmem:[%s175 + $0x7c] sm:$0xf] %vm826, %v793
      %s859 = smul.u32 32, %s14
      %p860 = scmp.lt.s32.totalorder %s859, 63
      %s861 = scalar_select %p860, %s859, 63
      %s862 = smul.addr %s861, 4
      %s863 = scalar_lea.vmem %s3, %s862
      // Predicated region
      $region33: #{hourglass_forward.7} parent=31 // pred_check
        %p864 = pneg %p100
      $region34: #{hourglass_forward.7} parent=31 // pred_check_branch
        %866 = sbr.rel (%p864) target = $region36
      $region35: #{hourglass_forward.7} parent=31 // pred_region
        %s867 = smul.u32 32, %s14
      $region36: #{hourglass_forward.7} parent=31 // pred_fallthru
        _
    $region32: #{hourglass_forward.7} parent=5 // pred_fallthru
      _
    %p868 = scmp.le.s32.totalorder 2, %s9
    // Predicated region
    $region37: #{hourglass_forward.7} parent=5 // pred_check
      %p869 = pneg %p868
    $region38: #{hourglass_forward.7} parent=5 // pred_check_branch
      %871 = sbr.rel (%p869) target = $region40
    $region39: #{hourglass_forward.7} parent=5 // pred_region
      %s872 = ssub.s32 %s9, 2
      // Predicated region
      $region41: #{hourglass_forward.7} parent=39 // pred_check
        %p873 = pneg %p106
      $region42: #{hourglass_forward.7} parent=39 // pred_check_branch
        %875 = sbr.rel (%p873) target = $region44
      $region43: #{hourglass_forward.7} parent=39 // pred_region
        %s876 = smul.u32 32, %s15
        %p877 = scmp.lt.s32.totalorder %s876, 63
        %s878 = scalar_select %p877, %s876, 63
        %s879 = smul.addr %s878, 4
        %s880 = scalar_lea.vmem %s3, %s879
      $region44: #{hourglass_forward.7} parent=39 // pred_fallthru
        _
    $region40: #{hourglass_forward.7} parent=5 // pred_fallthru
      _
  $region6: #{hourglass_forward.7} parent=0 // loop_footer
    %s13 = sadd.s32 1, %s9
  $region7: #{hourglass_forward.7} parent=0 // loop_footer_branch
    %8 = sbr.rel target = $region3
  $region8: #{hourglass_forward.7} parent=0 // loop_exit
    _

// kernel: hourglass_forward.8
$region0: #{hourglass_forward.8}
  #allocation0 [shape = 'u32[]', space=smem, size = 0x4, offset = 0x4, fixed_abs, tag = 'smem constant byte address 0x4 - core index']
  #allocation1 [shape = 'u32[144,128]{1,0:T(1,128)}', space=vmem, size = 0x12000, scoped, tag = 'internal scratch']
  %s0 = inlined_call_operand.vmem [shape: bf16[64,256], index: 0, kind: input, shape index: {}]
  %s1 = inlined_call_operand.vmem [shape: bf16[256,16], index: 1, kind: input, shape index: {}]
  %s2 = inlined_call_operand.vmem [shape: f32[1,16], index: 2, kind: input, shape index: {}]
  %s3 = inlined_call_operand.vmem [shape: bf16[64,16], index: 3, kind: output, shape index: {}]
  %s4 = sld [smem:[#allocation0]]
  $region22: #{hourglass_forward.8} parent=0
    _
  %s6 = ssub.s32 1, %s4
  %s7 = scalar_select 0, %s6, %s4
  // Predicated region
  $region2: #{hourglass_forward.8} parent=0 // pred_check
    _
  $region3: #{hourglass_forward.8} parent=0 // pred_check_branch
    %9 = sbr.rel (0) target = $region5
  $region4: #{hourglass_forward.8} parent=0 // pred_region
    _
  $region5: #{hourglass_forward.8} parent=0 // pred_fallthru
    _
  // Predicated region
  $region6: #{hourglass_forward.8} parent=0 // pred_check
    _
  $region7: #{hourglass_forward.8} parent=0 // pred_check_branch
    %11 = sbr.rel (0) target = $region9
  $region8: #{hourglass_forward.8} parent=0 // pred_region
    _
  $region9: #{hourglass_forward.8} parent=0 // pred_fallthru
    _
  // Predicated region
  $region10: #{hourglass_forward.8} parent=0 // pred_check
    _
  $region11: #{hourglass_forward.8} parent=0 // pred_check_branch
    %13 = sbr.rel (0) target = $region13
  $region12: #{hourglass_forward.8} parent=0 // pred_region
    _
  $region13: #{hourglass_forward.8} parent=0 // pred_fallthru
    _
  %v15 = vld [vmem:[%s0] sm:$0xff]
  %v16 = vld [vmem:[%s0 + $0x8] sm:$0xff]
  %v17 = vld [vmem:[%s0 + $0x10] sm:$0xff]
  %v18 = vld [vmem:[%s0 + $0x18] sm:$0xff]
  %v19 = vld [vmem:[%s0 + $0x20] sm:$0xff]
  %v20 = vld [vmem:[%s0 + $0x28] sm:$0xff]
  %v21 = vld [vmem:[%s0 + $0x30] sm:$0xff]
  %v22 = vld [vmem:[%s0 + $0x38] sm:$0xff]
  %v23 = vld [vmem:[%s1] sm:$0xf]
  %v24 = vld [vmem:[%s1 + $0x4] sm:$0xf]
  %v25 = vld [vmem:[%s1 + $0x8] sm:$0xf]
  %v26 = vld [vmem:[%s1 + $0xc] sm:$0xf]
  %v27 = vld [vmem:[%s1 + $0x10] sm:$0xf]
  %v28 = vld [vmem:[%s1 + $0x14] sm:$0xf]
  %v29 = vld [vmem:[%s1 + $0x18] sm:$0xf]
  %v30 = vld [vmem:[%s1 + $0x1c] sm:$0xf]
  %v31 = vld [vmem:[%s1 + $0x20] sm:$0xf]
  %v32 = vld [vmem:[%s1 + $0x24] sm:$0xf]
  %v33 = vld [vmem:[%s1 + $0x28] sm:$0xf]
  %v34 = vld [vmem:[%s1 + $0x2c] sm:$0xf]
  %v35 = vld [vmem:[%s1 + $0x30] sm:$0xf]
  %v36 = vld [vmem:[%s1 + $0x34] sm:$0xf]
  %v37 = vld [vmem:[%s1 + $0x38] sm:$0xf]
  %v38 = vld [vmem:[%s1 + $0x3c] sm:$0xf]
  %v39 = vld [vmem:[%s1 + $0x40] sm:$0xf]
  %v40 = vld [vmem:[%s1 + $0x44] sm:$0xf]
  %v41 = vld [vmem:[%s1 + $0x48] sm:$0xf]
  %v42 = vld [vmem:[%s1 + $0x4c] sm:$0xf]
  %v43 = vld [vmem:[%s1 + $0x50] sm:$0xf]
  %v44 = vld [vmem:[%s1 + $0x54] sm:$0xf]
  %v45 = vld [vmem:[%s1 + $0x58] sm:$0xf]
  %v46 = vld [vmem:[%s1 + $0x5c] sm:$0xf]
  %v47 = vld [vmem:[%s1 + $0x60] sm:$0xf]
  %v48 = vld [vmem:[%s1 + $0x64] sm:$0xf]
  %v49 = vld [vmem:[%s1 + $0x68] sm:$0xf]
  %v50 = vld [vmem:[%s1 + $0x6c] sm:$0xf]
  %v51 = vld [vmem:[%s1 + $0x70] sm:$0xf]
  %v52 = vld [vmem:[%s1 + $0x74] sm:$0xf]
  %v53 = vld [vmem:[%s1 + $0x78] sm:$0xf]
  %v54 = vld [vmem:[%s1 + $0x7c] sm:$0xf]
  %v55 = vld [vmem:[%s2] sm:$0x1]
  %v57 = vlaneseq
  %v58 = vshrl.u32 %v57, 7
  %v59 = vsub.s32 0, %v58
  %v60 = vrot.slane %v55, %v59
  %v70 = vunpack.c.l.b16 %v15
  %v71 = vunpack.c.h.b16 %v15
  %v72 = vunpack.c.l.b16 %v16
  %v73 = vunpack.c.h.b16 %v16
  %v74 = vunpack.c.l.b16 %v17
  %v75 = vunpack.c.h.b16 %v17
  %v76 = vunpack.c.l.b16 %v18
  %v77 = vunpack.c.h.b16 %v18
  %v78 = vunpack.c.l.b16 %v19
  %v79 = vunpack.c.h.b16 %v19
  %v80 = vunpack.c.l.b16 %v20
  %v81 = vunpack.c.h.b16 %v20
  %v82 = vunpack.c.l.b16 %v21
  %v83 = vunpack.c.h.b16 %v21
  %v84 = vunpack.c.l.b16 %v22
  %v85 = vunpack.c.h.b16 %v22
  %v86 = vpack.c.b16 %v72, %v70
  %v87 = vpack.c.b16 %v73, %v71
  %v88 = vpack.c.b16 %v76, %v74
  %v89 = vpack.c.b16 %v77, %v75
  %v90 = vpack.c.b16 %v80, %v78
  %v91 = vpack.c.b16 %v81, %v79
  %v92 = vpack.c.b16 %v84, %v82
  %v93 = vpack.c.b16 %v85, %v83
  %v134 = vunpack.c.l.b16 %v23
  %v135 = vunpack.c.l.b16 %v24
  %v136 = vunpack.c.l.b16 %v25
  %v137 = vunpack.c.l.b16 %v26
  %v138 = vunpack.c.l.b16 %v27
  %v139 = vunpack.c.l.b16 %v28
  %v140 = vunpack.c.l.b16 %v29
  %v141 = vunpack.c.l.b16 %v30
  %v142 = vunpack.c.l.b16 %v31
  %v143 = vunpack.c.l.b16 %v32
  %v144 = vunpack.c.l.b16 %v33
  %v145 = vunpack.c.l.b16 %v34
  %v146 = vunpack.c.l.b16 %v35
  %v147 = vunpack.c.l.b16 %v36
  %v148 = vunpack.c.l.b16 %v37
  %v149 = vunpack.c.l.b16 %v38
  %v150 = vunpack.c.l.b16 %v39
  %v151 = vunpack.c.l.b16 %v40
  %v152 = vunpack.c.l.b16 %v41
  %v153 = vunpack.c.l.b16 %v42
  %v154 = vunpack.c.l.b16 %v43
  %v155 = vunpack.c.l.b16 %v44
  %v156 = vunpack.c.l.b16 %v45
  %v157 = vunpack.c.l.b16 %v46
  %v158 = vunpack.c.l.b16 %v47
  %v159 = vunpack.c.l.b16 %v48
  %v160 = vunpack.c.l.b16 %v49
  %v161 = vunpack.c.l.b16 %v50
  %v162 = vunpack.c.l.b16 %v51
  %v163 = vunpack.c.l.b16 %v52
  %v164 = vunpack.c.l.b16 %v53
  %v165 = vunpack.c.l.b16 %v54
  %v166 = vpack.c.b16 %v135, %v134
  %v167 = vpack.c.b16 %v137, %v136
  %v168 = vpack.c.b16 %v139, %v138
  %v169 = vpack.c.b16 %v141, %v140
  %v170 = vpack.c.b16 %v143, %v142
  %v171 = vpack.c.b16 %v145, %v144
  %v172 = vpack.c.b16 %v147, %v146
  %v173 = vpack.c.b16 %v149, %v148
  %v174 = vpack.c.b16 %v151, %v150
  %v175 = vpack.c.b16 %v153, %v152
  %v176 = vpack.c.b16 %v155, %v154
  %v177 = vpack.c.b16 %v157, %v156
  %v178 = vpack.c.b16 %v159, %v158
  %v179 = vpack.c.b16 %v161, %v160
  %v180 = vpack.c.b16 %v163, %v162
  %v181 = vpack.c.b16 %v165, %v164
  %198 = vmatprep.subr.bf16.mxu0 0
  %199 = vmatpush1.bf16.msra.mxu0 %v166
  %200 = vmatprep.subr.bf16.mxu0 0
  %201 = vmatpush1.bf16.msra.mxu0 %v167
  %202 = vmatprep.subr.bf16.mxu0 0
  %203 = vmatpush1.bf16.msra.mxu0 %v168
  %204 = vmatprep.subr.bf16.mxu0 0
  %205 = vmatpush1.bf16.msra.mxu0 %v169
  %206 = vmatprep.subr.bf16.mxu0 0
  %207 = vmatpush1.bf16.msra.mxu0 %v170
  %208 = vmatprep.subr.bf16.mxu0 0
  %209 = vmatpush1.bf16.msra.mxu0 %v171
  %210 = vmatprep.subr.bf16.mxu0 0
  %211 = vmatpush1.bf16.msra.mxu0 %v172
  %212 = vmatprep.subr.bf16.mxu0 0
  %213 = vmatpush1.bf16.msra.mxu0 %v173
  %214 = vmatprep.subr.bf16.mxu0 0
  %215 = vmatpush1.bf16.msra.mxu0 %v174
  %216 = vmatprep.subr.bf16.mxu0 0
  %217 = vmatpush1.bf16.msra.mxu0 %v175
  %218 = vmatprep.subr.bf16.mxu0 0
  %219 = vmatpush1.bf16.msra.mxu0 %v176
  %220 = vmatprep.subr.bf16.mxu0 0
  %221 = vmatpush1.bf16.msra.mxu0 %v177
  %222 = vmatprep.subr.bf16.mxu0 0
  %223 = vmatpush1.bf16.msra.mxu0 %v178
  %224 = vmatprep.subr.bf16.mxu0 0
  %225 = vmatpush1.bf16.msra.mxu0 %v179
  %226 = vmatprep.subr.bf16.mxu0 0
  %227 = vmatpush1.bf16.msra.mxu0 %v180
  %228 = vmatprep.subr.bf16.mxu0 0
  %229 = vmatpush1.bf16.msra.mxu0 %v181
  %230 = vmatprep.mubr.bf16.mxu0 %v87
  %231 = vmatmul.mubr.bf16.gmra.mrb[0].mxu0 %v86
  %v232 = vpop.f32.mrb[0].mxu0
  %v233 = vadd.f32 %v60, %v232
  %v234 = vpop.f32.mrb[0].mxu0
  %v235 = vpop.f32.mrb[0].mxu0
  %v236 = vadd.f32 %v60, %v235
  %v237 = vpop.f32.mrb[0].mxu0
  %238 = vmatprep.mubr.bf16.mxu0 %v89
  %239 = vmatmul.mubr.bf16.gmra.mrb[0].mxu0 %v88
  %v240 = vpop.f32.mrb[0].mxu0
  %v241 = vadd.f32 %v60, %v240
  %v242 = vpop.f32.mrb[0].mxu0
  %v243 = vpop.f32.mrb[0].mxu0
  %v244 = vadd.f32 %v60, %v243
  %v245 = vpop.f32.mrb[0].mxu0
  %246 = vmatprep.mubr.bf16.mxu0 %v91
  %247 = vmatmul.mubr.bf16.gmra.mrb[0].mxu0 %v90
  %v248 = vpop.f32.mrb[0].mxu0
  %v249 = vadd.f32 %v60, %v248
  %v250 = vpop.f32.mrb[0].mxu0
  %v251 = vpop.f32.mrb[0].mxu0
  %v252 = vadd.f32 %v60, %v251
  %v253 = vpop.f32.mrb[0].mxu0
  %254 = vmatprep.mubr.bf16.mxu0 %v93
  %255 = vmatmul.mubr.bf16.gmra.mrb[0].mxu0 %v92
  %v256 = vpop.f32.mrb[0].mxu0
  %v257 = vadd.f32 %v60, %v256
  %v258 = vpop.f32.mrb[0].mxu0
  %v259 = vpop.f32.mrb[0].mxu0
  %v260 = vadd.f32 %v60, %v259
  %v261 = vpop.f32.mrb[0].mxu0
  %262 = vdwg.mxu0
  %v263 = vmax.f32 %v233, 0.0
  %v264 = vmax.f32 %v236, 0.0
  %v265 = vmax.f32 %v241, 0.0
  %v266 = vmax.f32 %v244, 0.0
  %v267 = vmax.f32 %v249, 0.0
  %v268 = vmax.f32 %v252, 0.0
  %v269 = vmax.f32 %v257, 0.0
  %v270 = vmax.f32 %v260, 0.0
  %v271 = vpack.c.bf16 %v264, %v263
  %v272 = vpack.c.bf16 %v266, %v265
  %v273 = vpack.c.bf16 %v268, %v267
  %v274 = vpack.c.bf16 %v270, %v269
  %v279 = vunpack.c.l.b16 %v271
  %v280 = vunpack.c.h.b16 %v271
  %v281 = vunpack.c.l.b16 %v272
  %v282 = vunpack.c.h.b16 %v272
  %v283 = vunpack.c.l.b16 %v273
  %v284 = vunpack.c.h.b16 %v273
  %v285 = vunpack.c.l.b16 %v274
  %v286 = vunpack.c.h.b16 %v274
  %v287 = vpack.c.b16 %v279, %v279
  %v288 = vpack.c.b16 %v280, %v280
  %v289 = vpack.c.b16 %v281, %v281
  %v290 = vpack.c.b16 %v282, %v282
  %v291 = vpack.c.b16 %v283, %v283
  %v292 = vpack.c.b16 %v284, %v284
  %v293 = vpack.c.b16 %v285, %v285
  %v294 = vpack.c.b16 %v286, %v286
  %vm303 = vcmask 125952
  %304 = vst.msk [vmem:[%s3] sm:$0xf] %vm303, %v287
  %305 = vst.msk [vmem:[%s3 + $0x4] sm:$0xf] %vm303, %v288
  %306 = vst.msk [vmem:[%s3 + $0x8] sm:$0xf] %vm303, %v289
  %307 = vst.msk [vmem:[%s3 + $0xc] sm:$0xf] %vm303, %v290
  %308 = vst.msk [vmem:[%s3 + $0x10] sm:$0xf] %vm303, %v291
  %309 = vst.msk [vmem:[%s3 + $0x14] sm:$0xf] %vm303, %v292
  %310 = vst.msk [vmem:[%s3 + $0x18] sm:$0xf] %vm303, %v293
  %311 = vst.msk [vmem:[%s3 + $0x1c] sm:$0xf] %vm303, %v294
  // Predicated region
  $region14: #{hourglass_forward.8} parent=0 // pred_check
    _
  $region15: #{hourglass_forward.8} parent=0 // pred_check_branch
    %313 = sbr.rel (0) target = $region17
  $region16: #{hourglass_forward.8} parent=0 // pred_region
    _
  $region17: #{hourglass_forward.8} parent=0 // pred_fallthru
    _
  // Predicated region
  $region18: #{hourglass_forward.8} parent=0 // pred_check
    _
  $region19: #{hourglass_forward.8} parent=0 // pred_check_branch
    %315 = sbr.rel (0) target = $region21
  $region20: #{hourglass_forward.8} parent=0 // pred_region
    _
  $region21: #{hourglass_forward.8} parent=0 // pred_fallthru
    _

// kernel: hourglass_forward.9
$region0: #{hourglass_forward.9}
  #allocation0 [shape = 'u32[]', space=smem, size = 0x4, offset = 0x4, fixed_abs, tag = 'smem constant byte address 0x4 - core index']
  #allocation1 [shape = 'u32[144,128]{1,0:T(1,128)}', space=vmem, size = 0x12000, scoped, tag = 'internal scratch']
  %s0 = inlined_call_operand.vmem [shape: bf16[64,512], index: 0, kind: input, shape index: {}]
  %s1 = inlined_call_operand.vmem [shape: bf16[512,16], index: 1, kind: input, shape index: {}]
  %s2 = inlined_call_operand.vmem [shape: f32[1,16], index: 2, kind: input, shape index: {}]
  %s3 = inlined_call_operand.vmem [shape: bf16[64,16], index: 3, kind: output, shape index: {}]
  %s4 = sld [smem:[#allocation0]]
  $region22: #{hourglass_forward.9} parent=0
    _
  %s6 = ssub.s32 1, %s4
  %s7 = scalar_select 0, %s6, %s4
  // Predicated region
  $region2: #{hourglass_forward.9} parent=0 // pred_check
    _
  $region3: #{hourglass_forward.9} parent=0 // pred_check_branch
    %9 = sbr.rel (0) target = $region5
  $region4: #{hourglass_forward.9} parent=0 // pred_region
    _
  $region5: #{hourglass_forward.9} parent=0 // pred_fallthru
    _
  // Predicated region
  $region6: #{hourglass_forward.9} parent=0 // pred_check
    _
  $region7: #{hourglass_forward.9} parent=0 // pred_check_branch
    %11 = sbr.rel (0) target = $region9
  $region8: #{hourglass_forward.9} parent=0 // pred_region
    _
  $region9: #{hourglass_forward.9} parent=0 // pred_fallthru
    _
  // Predicated region
  $region10: #{hourglass_forward.9} parent=0 // pred_check
    _
  $region11: #{hourglass_forward.9} parent=0 // pred_check_branch
    %13 = sbr.rel (0) target = $region13
  $region12: #{hourglass_forward.9} parent=0 // pred_region
    _
  $region13: #{hourglass_forward.9} parent=0 // pred_fallthru
    _
  %v15 = vld [vmem:[%s0] sm:$0xff]
  %v16 = vld [vmem:[%s0 + $0x8] sm:$0xff]
  %v17 = vld [vmem:[%s0 + $0x10] sm:$0xff]
  %v18 = vld [vmem:[%s0 + $0x18] sm:$0xff]
  %v19 = vld [vmem:[%s0 + $0x20] sm:$0xff]
  %v20 = vld [vmem:[%s0 + $0x28] sm:$0xff]
  %v21 = vld [vmem:[%s0 + $0x30] sm:$0xff]
  %v22 = vld [vmem:[%s0 + $0x38] sm:$0xff]
  %v23 = vld [vmem:[%s0 + $0x40] sm:$0xff]
  %v24 = vld [vmem:[%s0 + $0x48] sm:$0xff]
  %v25 = vld [vmem:[%s0 + $0x50] sm:$0xff]
  %v26 = vld [vmem:[%s0 + $0x58] sm:$0xff]
  %v27 = vld [vmem:[%s0 + $0x60] sm:$0xff]
  %v28 = vld [vmem:[%s0 + $0x68] sm:$0xff]
  %v29 = vld [vmem:[%s0 + $0x70] sm:$0xff]
  %v30 = vld [vmem:[%s0 + $0x78] sm:$0xff]
  %v31 = vld [vmem:[%s1] sm:$0xf]
  %v32 = vld [vmem:[%s1 + $0x4] sm:$0xf]
  %v33 = vld [vmem:[%s1 + $0x8] sm:$0xf]
  %v34 = vld [vmem:[%s1 + $0xc] sm:$0xf]
  %v35 = vld [vmem:[%s1 + $0x10] sm:$0xf]
  %v36 = vld [vmem:[%s1 + $0x14] sm:$0xf]
  %v37 = vld [vmem:[%s1 + $0x18] sm:$0xf]
  %v38 = vld [vmem:[%s1 + $0x1c] sm:$0xf]
  %v39 = vld [vmem:[%s1 + $0x20] sm:$0xf]
  %v40 = vld [vmem:[%s1 + $0x24] sm:$0xf]
  %v41 = vld [vmem:[%s1 + $0x28] sm:$0xf]
  %v42 = vld [vmem:[%s1 + $0x2c] sm:$0xf]
  %v43 = vld [vmem:[%s1 + $0x30] sm:$0xf]
  %v44 = vld [vmem:[%s1 + $0x34] sm:$0xf]
  %v45 = vld [vmem:[%s1 + $0x38] sm:$0xf]
  %v46 = vld [vmem:[%s1 + $0x3c] sm:$0xf]
  %v47 = vld [vmem:[%s1 + $0x40] sm:$0xf]
  %v48 = vld [vmem:[%s1 + $0x44] sm:$0xf]
  %v49 = vld [vmem:[%s1 + $0x48] sm:$0xf]
  %v50 = vld [vmem:[%s1 + $0x4c] sm:$0xf]
  %v51 = vld [vmem:[%s1 + $0x50] sm:$0xf]
  %v52 = vld [vmem:[%s1 + $0x54] sm:$0xf]
  %v53 = vld [vmem:[%s1 + $0x58] sm:$0xf]
  %v54 = vld [vmem:[%s1 + $0x5c] sm:$0xf]
  %v55 = vld [vmem:[%s1 + $0x60] sm:$0xf]
  %v56 = vld [vmem:[%s1 + $0x64] sm:$0xf]
  %v57 = vld [vmem:[%s1 + $0x68] sm:$0xf]
  %v58 = vld [vmem:[%s1 + $0x6c] sm:$0xf]
  %v59 = vld [vmem:[%s1 + $0x70] sm:$0xf]
  %v60 = vld [vmem:[%s1 + $0x74] sm:$0xf]
  %v61 = vld [vmem:[%s1 + $0x78] sm:$0xf]
  %v62 = vld [vmem:[%s1 + $0x7c] sm:$0xf]
  %v63 = vld [vmem:[%s1 + $0x80] sm:$0xf]
  %v64 = vld [vmem:[%s1 + $0x84] sm:$0xf]
  %v65 = vld [vmem:[%s1 + $0x88] sm:$0xf]
  %v66 = vld [vmem:[%s1 + $0x8c] sm:$0xf]
  %v67 = vld [vmem:[%s1 + $0x90] sm:$0xf]
  %v68 = vld [vmem:[%s1 + $0x94] sm:$0xf]
  %v69 = vld [vmem:[%s1 + $0x98] sm:$0xf]
  %v70 = vld [vmem:[%s1 + $0x9c] sm:$0xf]
  %v71 = vld [vmem:[%s1 + $0xa0] sm:$0xf]
  %v72 = vld [vmem:[%s1 + $0xa4] sm:$0xf]
  %v73 = vld [vmem:[%s1 + $0xa8] sm:$0xf]
  %v74 = vld [vmem:[%s1 + $0xac] sm:$0xf]
  %v75 = vld [vmem:[%s1 + $0xb0] sm:$0xf]
  %v76 = vld [vmem:[%s1 + $0xb4] sm:$0xf]
  %v77 = vld [vmem:[%s1 + $0xb8] sm:$0xf]
  %v78 = vld [vmem:[%s1 + $0xbc] sm:$0xf]
  %v79 = vld [vmem:[%s1 + $0xc0] sm:$0xf]
  %v80 = vld [vmem:[%s1 + $0xc4] sm:$0xf]
  %v81 = vld [vmem:[%s1 + $0xc8] sm:$0xf]
  %v82 = vld [vmem:[%s1 + $0xcc] sm:$0xf]
  %v83 = vld [vmem:[%s1 + $0xd0] sm:$0xf]
  %v84 = vld [vmem:[%s1 + $0xd4] sm:$0xf]
  %v85 = vld [vmem:[%s1 + $0xd8] sm:$0xf]
  %v86 = vld [vmem:[%s1 + $0xdc] sm:$0xf]
  %v87 = vld [vmem:[%s1 + $0xe0] sm:$0xf]
  %v88 = vld [vmem:[%s1 + $0xe4] sm:$0xf]
  %v89 = vld [vmem:[%s1 + $0xe8] sm:$0xf]
  %v90 = vld [vmem:[%s1 + $0xec] sm:$0xf]
  %v91 = vld [vmem:[%s1 + $0xf0] sm:$0xf]
  %v92 = vld [vmem:[%s1 + $0xf4] sm:$0xf]
  %v93 = vld [vmem:[%s1 + $0xf8] sm:$0xf]
  %v94 = vld [vmem:[%s1 + $0xfc] sm:$0xf]
  %v95 = vld [vmem:[%s2] sm:$0x1]
  %v97 = vlaneseq
  %v98 = vshrl.u32 %v97, 7
  %v99 = vsub.s32 0, %v98
  %v100 = vrot.slane %v95, %v99
  %v118 = vunpack.c.l.b16 %v15
  %v119 = vunpack.c.h.b16 %v15
  %v120 = vunpack.c.l.b16 %v16
  %v121 = vunpack.c.h.b16 %v16
  %v122 = vunpack.c.l.b16 %v17
  %v123 = vunpack.c.h.b16 %v17
  %v124 = vunpack.c.l.b16 %v18
  %v125 = vunpack.c.h.b16 %v18
  %v126 = vunpack.c.l.b16 %v19
  %v127 = vunpack.c.h.b16 %v19
  %v128 = vunpack.c.l.b16 %v20
  %v129 = vunpack.c.h.b16 %v20
  %v130 = vunpack.c.l.b16 %v21
  %v131 = vunpack.c.h.b16 %v21
  %v132 = vunpack.c.l.b16 %v22
  %v133 = vunpack.c.h.b16 %v22
  %v134 = vunpack.c.l.b16 %v23
  %v135 = vunpack.c.h.b16 %v23
  %v136 = vunpack.c.l.b16 %v24
  %v137 = vunpack.c.h.b16 %v24
  %v138 = vunpack.c.l.b16 %v25
  %v139 = vunpack.c.h.b16 %v25
  %v140 = vunpack.c.l.b16 %v26
  %v141 = vunpack.c.h.b16 %v26
  %v142 = vunpack.c.l.b16 %v27
  %v143 = vunpack.c.h.b16 %v27
  %v144 = vunpack.c.l.b16 %v28
  %v145 = vunpack.c.h.b16 %v28
  %v146 = vunpack.c.l.b16 %v29
  %v147 = vunpack.c.h.b16 %v29
  %v148 = vunpack.c.l.b16 %v30
  %v149 = vunpack.c.h.b16 %v30
  %v150 = vpack.c.b16 %v122, %v118
  %v151 = vpack.c.b16 %v123, %v119
  %v152 = vpack.c.b16 %v124, %v120
  %v153 = vpack.c.b16 %v125, %v121
  %v154 = vpack.c.b16 %v130, %v126
  %v155 = vpack.c.b16 %v131, %v127
  %v156 = vpack.c.b16 %v132, %v128
  %v157 = vpack.c.b16 %v133, %v129
  %v158 = vpack.c.b16 %v138, %v134
  %v159 = vpack.c.b16 %v139, %v135
  %v160 = vpack.c.b16 %v140, %v136
  %v161 = vpack.c.b16 %v141, %v137
  %v162 = vpack.c.b16 %v146, %v142
  %v163 = vpack.c.b16 %v147, %v143
  %v164 = vpack.c.b16 %v148, %v144
  %v165 = vpack.c.b16 %v149, %v145
  %v246 = vunpack.c.l.b16 %v31
  %v247 = vunpack.c.l.b16 %v32
  %v248 = vunpack.c.l.b16 %v33
  %v249 = vunpack.c.l.b16 %v34
  %v250 = vunpack.c.l.b16 %v35
  %v251 = vunpack.c.l.b16 %v36
  %v252 = vunpack.c.l.b16 %v37
  %v253 = vunpack.c.l.b16 %v38
  %v254 = vunpack.c.l.b16 %v39
  %v255 = vunpack.c.l.b16 %v40
  %v256 = vunpack.c.l.b16 %v41
  %v257 = vunpack.c.l.b16 %v42
  %v258 = vunpack.c.l.b16 %v43
  %v259 = vunpack.c.l.b16 %v44
  %v260 = vunpack.c.l.b16 %v45
  %v261 = vunpack.c.l.b16 %v46
  %v262 = vunpack.c.l.b16 %v47
  %v263 = vunpack.c.l.b16 %v48
  %v264 = vunpack.c.l.b16 %v49
  %v265 = vunpack.c.l.b16 %v50
  %v266 = vunpack.c.l.b16 %v51
  %v267 = vunpack.c.l.b16 %v52
  %v268 = vunpack.c.l.b16 %v53
  %v269 = vunpack.c.l.b16 %v54
  %v270 = vunpack.c.l.b16 %v55
  %v271 = vunpack.c.l.b16 %v56
  %v272 = vunpack.c.l.b16 %v57
  %v273 = vunpack.c.l.b16 %v58
  %v274 = vunpack.c.l.b16 %v59
  %v275 = vunpack.c.l.b16 %v60
  %v276 = vunpack.c.l.b16 %v61
  %v277 = vunpack.c.l.b16 %v62
  %v278 = vunpack.c.l.b16 %v63
  %v279 = vunpack.c.l.b16 %v64
  %v280 = vunpack.c.l.b16 %v65
  %v281 = vunpack.c.l.b16 %v66
  %v282 = vunpack.c.l.b16 %v67
  %v283 = vunpack.c.l.b16 %v68
  %v284 = vunpack.c.l.b16 %v69
  %v285 = vunpack.c.l.b16 %v70
  %v286 = vunpack.c.l.b16 %v71
  %v287 = vunpack.c.l.b16 %v72
  %v288 = vunpack.c.l.b16 %v73
  %v289 = vunpack.c.l.b16 %v74
  %v290 = vunpack.c.l.b16 %v75
  %v291 = vunpack.c.l.b16 %v76
  %v292 = vunpack.c.l.b16 %v77
  %v293 = vunpack.c.l.b16 %v78
  %v294 = vunpack.c.l.b16 %v79
  %v295 = vunpack.c.l.b16 %v80
  %v296 = vunpack.c.l.b16 %v81
  %v297 = vunpack.c.l.b16 %v82
  %v298 = vunpack.c.l.b16 %v83
  %v299 = vunpack.c.l.b16 %v84
  %v300 = vunpack.c.l.b16 %v85
  %v301 = vunpack.c.l.b16 %v86
  %v302 = vunpack.c.l.b16 %v87
  %v303 = vunpack.c.l.b16 %v88
  %v304 = vunpack.c.l.b16 %v89
  %v305 = vunpack.c.l.b16 %v90
  %v306 = vunpack.c.l.b16 %v91
  %v307 = vunpack.c.l.b16 %v92
  %v308 = vunpack.c.l.b16 %v93
  %v309 = vunpack.c.l.b16 %v94
  %v310 = vpack.c.b16 %v247, %v246
  %v311 = vpack.c.b16 %v249, %v248
  %v312 = vpack.c.b16 %v251, %v250
  %v313 = vpack.c.b16 %v253, %v252
  %v314 = vpack.c.b16 %v255, %v254
  %v315 = vpack.c.b16 %v257, %v256
  %v316 = vpack.c.b16 %v259, %v258
  %v317 = vpack.c.b16 %v261, %v260
  %v318 = vpack.c.b16 %v263, %v262
  %v319 = vpack.c.b16 %v265, %v264
  %v320 = vpack.c.b16 %v267, %v266
  %v321 = vpack.c.b16 %v269, %v268
  %v322 = vpack.c.b16 %v271, %v270
  %v323 = vpack.c.b16 %v273, %v272
  %v324 = vpack.c.b16 %v275, %v274
  %v325 = vpack.c.b16 %v277, %v276
  %v326 = vpack.c.b16 %v279, %v278
  %v327 = vpack.c.b16 %v281, %v280
  %v328 = vpack.c.b16 %v283, %v282
  %v329 = vpack.c.b16 %v285, %v284
  %v330 = vpack.c.b16 %v287, %v286
  %v331 = vpack.c.b16 %v289, %v288
  %v332 = vpack.c.b16 %v291, %v290
  %v333 = vpack.c.b16 %v293, %v292
  %v334 = vpack.c.b16 %v295, %v294
  %v335 = vpack.c.b16 %v297, %v296
  %v336 = vpack.c.b16 %v299, %v298
  %v337 = vpack.c.b16 %v301, %v300
  %v338 = vpack.c.b16 %v303, %v302
  %v339 = vpack.c.b16 %v305, %v304
  %v340 = vpack.c.b16 %v307, %v306
  %v341 = vpack.c.b16 %v309, %v308
  %374 = vmatprep.subr.bf16.mxu0 0
  %375 = vmatpush1.bf16.msra.mxu0 %v310
  %376 = vmatprep.subr.bf16.mxu0 0
  %377 = vmatpush1.bf16.msra.mxu0 %v311
  %378 = vmatprep.subr.bf16.mxu0 0
  %379 = vmatpush1.bf16.msra.mxu0 %v312
  %380 = vmatprep.subr.bf16.mxu0 0
  %381 = vmatpush1.bf16.msra.mxu0 %v313
  %382 = vmatprep.subr.bf16.mxu0 0
  %383 = vmatpush1.bf16.msra.mxu0 %v314
  %384 = vmatprep.subr.bf16.mxu0 0
  %385 = vmatpush1.bf16.msra.mxu0 %v315
  %386 = vmatprep.subr.bf16.mxu0 0
  %387 = vmatpush1.bf16.msra.mxu0 %v316
  %388 = vmatprep.subr.bf16.mxu0 0
  %389 = vmatpush1.bf16.msra.mxu0 %v317
  %390 = vmatprep.subr.bf16.mxu0 0
  %391 = vmatpush1.bf16.msra.mxu0 %v318
  %392 = vmatprep.subr.bf16.mxu0 0
  %393 = vmatpush1.bf16.msra.mxu0 %v319
  %394 = vmatprep.subr.bf16.mxu0 0
  %395 = vmatpush1.bf16.msra.mxu0 %v320
  %396 = vmatprep.subr.bf16.mxu0 0
  %397 = vmatpush1.bf16.msra.mxu0 %v321
  %398 = vmatprep.subr.bf16.mxu0 0
  %399 = vmatpush1.bf16.msra.mxu0 %v322
  %400 = vmatprep.subr.bf16.mxu0 0
  %401 = vmatpush1.bf16.msra.mxu0 %v323
  %402 = vmatprep.subr.bf16.mxu0 0
  %403 = vmatpush1.bf16.msra.mxu0 %v324
  %404 = vmatprep.subr.bf16.mxu0 0
  %405 = vmatpush1.bf16.msra.mxu0 %v325
  %406 = vmatprep.mubr.bf16.mxu0 %v151
  %407 = vmatmul.mubr.bf16.gmra.mrb[0].mxu0 %v150
  %v408 = vpop.f32.mrb[0].mxu0
  %v409 = vadd.f32 %v100, %v408
  %v410 = vpop.f32.mrb[0].mxu0
  %v411 = vpop.f32.mrb[0].mxu0
  %v412 = vadd.f32 %v100, %v411
  %v413 = vpop.f32.mrb[0].mxu0
  %414 = vmatprep.mubr.bf16.mxu0 %v155
  %415 = vmatmul.mubr.bf16.gmra.mrb[0].mxu0 %v154
  %v416 = vpop.f32.mrb[0].mxu0
  %v417 = vadd.f32 %v100, %v416
  %v418 = vpop.f32.mrb[0].mxu0
  %v419 = vpop.f32.mrb[0].mxu0
  %v420 = vadd.f32 %v100, %v419
  %v421 = vpop.f32.mrb[0].mxu0
  %422 = vmatprep.mubr.bf16.mxu0 %v159
  %423 = vmatmul.mubr.bf16.gmra.mrb[0].mxu0 %v158
  %v424 = vpop.f32.mrb[0].mxu0
  %v425 = vadd.f32 %v100, %v424
  %v426 = vpop.f32.mrb[0].mxu0
  %v427 = vpop.f32.mrb[0].mxu0
  %v428 = vadd.f32 %v100, %v427
  %v429 = vpop.f32.mrb[0].mxu0
  %430 = vmatprep.mubr.bf16.mxu0 %v163
  %431 = vmatmul.mubr.bf16.gmra.mrb[0].mxu0 %v162
  %v432 = vpop.f32.mrb[0].mxu0
  %v433 = vadd.f32 %v100, %v432
  %v434 = vpop.f32.mrb[0].mxu0
  %v435 = vpop.f32.mrb[0].mxu0
  %v436 = vadd.f32 %v100, %v435
  %v437 = vpop.f32.mrb[0].mxu0
  %438 = vdwg.mxu0
  %439 = vmatprep.subr.bf16.mxu0 0
  %440 = vmatpush1.bf16.msra.mxu0 %v326
  %441 = vmatprep.subr.bf16.mxu0 0
  %442 = vmatpush1.bf16.msra.mxu0 %v327
  %443 = vmatprep.subr.bf16.mxu0 0
  %444 = vmatpush1.bf16.msra.mxu0 %v328
  %445 = vmatprep.subr.bf16.mxu0 0
  %446 = vmatpush1.bf16.msra.mxu0 %v329
  %447 = vmatprep.subr.bf16.mxu0 0
  %448 = vmatpush1.bf16.msra.mxu0 %v330
  %449 = vmatprep.subr.bf16.mxu0 0
  %450 = vmatpush1.bf16.msra.mxu0 %v331
  %451 = vmatprep.subr.bf16.mxu0 0
  %452 = vmatpush1.bf16.msra.mxu0 %v332
  %453 = vmatprep.subr.bf16.mxu0 0
  %454 = vmatpush1.bf16.msra.mxu0 %v333
  %455 = vmatprep.subr.bf16.mxu0 0
  %456 = vmatpush1.bf16.msra.mxu0 %v334
  %457 = vmatprep.subr.bf16.mxu0 0
  %458 = vmatpush1.bf16.msra.mxu0 %v335
  %459 = vmatprep.subr.bf16.mxu0 0
  %460 = vmatpush1.bf16.msra.mxu0 %v336
  %461 = vmatprep.subr.bf16.mxu0 0
  %462 = vmatpush1.bf16.msra.mxu0 %v337
  %463 = vmatprep.subr.bf16.mxu0 0
  %464 = vmatpush1.bf16.msra.mxu0 %v338
  %465 = vmatprep.subr.bf16.mxu0 0
  %466 = vmatpush1.bf16.msra.mxu0 %v339
  %467 = vmatprep.subr.bf16.mxu0 0
  %468 = vmatpush1.bf16.msra.mxu0 %v340
  %469 = vmatprep.subr.bf16.mxu0 0
  %470 = vmatpush1.bf16.msra.mxu0 %v341
  %471 = vmatprep.mubr.bf16.mxu0 %v153
  %472 = vmatmul.mubr.bf16.gmra.mrb[0].mxu0 %v152
  %v473 = vpop.f32.mrb[0].mxu0
  %v474 = vadd.f32 %v409, %v473
  %v475 = vpop.f32.mrb[0].mxu0
  %v476 = vpop.f32.mrb[0].mxu0
  %v477 = vadd.f32 %v412, %v476
  %v478 = vpop.f32.mrb[0].mxu0
  %479 = vmatprep.mubr.bf16.mxu0 %v157
  %480 = vmatmul.mubr.bf16.gmra.mrb[0].mxu0 %v156
  %v481 = vpop.f32.mrb[0].mxu0
  %v482 = vadd.f32 %v417, %v481
  %v483 = vpop.f32.mrb[0].mxu0
  %v484 = vpop.f32.mrb[0].mxu0
  %v485 = vadd.f32 %v420, %v484
  %v486 = vpop.f32.mrb[0].mxu0
  %487 = vmatprep.mubr.bf16.mxu0 %v161
  %488 = vmatmul.mubr.bf16.gmra.mrb[0].mxu0 %v160
  %v489 = vpop.f32.mrb[0].mxu0
  %v490 = vadd.f32 %v425, %v489
  %v491 = vpop.f32.mrb[0].mxu0
  %v492 = vpop.f32.mrb[0].mxu0
  %v493 = vadd.f32 %v428, %v492
  %v494 = vpop.f32.mrb[0].mxu0
  %495 = vmatprep.mubr.bf16.mxu0 %v165
  %496 = vmatmul.mubr.bf16.gmra.mrb[0].mxu0 %v164
  %v497 = vpop.f32.mrb[0].mxu0
  %v498 = vadd.f32 %v433, %v497
  %v499 = vpop.f32.mrb[0].mxu0
  %v500 = vpop.f32.mrb[0].mxu0
  %v501 = vadd.f32 %v436, %v500
  %v502 = vpop.f32.mrb[0].mxu0
  %503 = vdwg.mxu0
  %v504 = vmax.f32 %v474, 0.0
  %v505 = vmax.f32 %v477, 0.0
  %v506 = vmax.f32 %v482, 0.0
  %v507 = vmax.f32 %v485, 0.0
  %v508 = vmax.f32 %v490, 0.0
  %v509 = vmax.f32 %v493, 0.0
  %v510 = vmax.f32 %v498, 0.0
  %v511 = vmax.f32 %v501, 0.0
  %v512 = vpack.c.bf16 %v505, %v504
  %v513 = vpack.c.bf16 %v507, %v506
  %v514 = vpack.c.bf16 %v509, %v508
  %v515 = vpack.c.bf16 %v511, %v510
  %v520 = vunpack.c.l.b16 %v512
  %v521 = vunpack.c.h.b16 %v512
  %v522 = vunpack.c.l.b16 %v513
  %v523 = vunpack.c.h.b16 %v513
  %v524 = vunpack.c.l.b16 %v514
  %v525 = vunpack.c.h.b16 %v514
  %v526 = vunpack.c.l.b16 %v515
  %v527 = vunpack.c.h.b16 %v515
  %v528 = vpack.c.b16 %v520, %v520
  %v529 = vpack.c.b16 %v521, %v521
  %v530 = vpack.c.b16 %v522, %v522
  %v531 = vpack.c.b16 %v523, %v523
  %v532 = vpack.c.b16 %v524, %v524
  %v533 = vpack.c.b16 %v525, %v525
  %v534 = vpack.c.b16 %v526, %v526
  %v535 = vpack.c.b16 %v527, %v527
  %vm544 = vcmask 125952
  %545 = vst.msk [vmem:[%s3] sm:$0xf] %vm544, %v528
  %546 = vst.msk [vmem:[%s3 + $0x4] sm:$0xf] %vm544, %v529
  %547 = vst.msk [vmem:[%s3 + $0x8] sm:$0xf] %vm544, %v530
  %548 = vst.msk [vmem:[%s3 + $0xc] sm:$0xf] %vm544, %v531
  %549 = vst.msk [vmem:[%s3 + $0x10] sm:$0xf] %vm544, %v532
  %550 = vst.msk [vmem:[%s3 + $0x14] sm:$0xf] %vm544, %v533
  %551 = vst.msk [vmem:[%s3 + $0x18] sm:$0xf] %vm544, %v534
  %552 = vst.msk [vmem:[%s3 + $0x1c] sm:$0xf] %vm544, %v535
  // Predicated region
  $region14: #{hourglass_forward.9} parent=0 // pred_check
    _
  $region15: #{hourglass_forward.9} parent=0 // pred_check_branch
    %554 = sbr.rel (0) target = $region17
  $region16: #{hourglass_forward.9} parent=0 // pred_region
    _
  $region17: #{hourglass_forward.9} parent=0 // pred_fallthru
    _
  // Predicated region
  $region18: #{hourglass_forward.9} parent=0 // pred_check
    _
  $region19: #{hourglass_forward.9} parent=0 // pred_check_branch
    %556 = sbr.rel (0) target = $region21
  $region20: #{hourglass_forward.9} parent=0 // pred_region
    _
  $region21: #{hourglass_forward.9} parent=0 // pred_fallthru
    _

// kernel: tile.13
$region0: #{tile.13}
  #allocation0 [shape = 's32[1]{0}', space=sflag, size = 0x4, scoped, tag = 'scoped memory for tile.13']
  %s0 = inlined_call_operand.vmem [shape: f32[8], index: 0, kind: input, shape index: {}]
  %s1 = inlined_call_operand.vmem [shape: f32[8,8], index: 1, kind: output, shape index: {}]
  // Predicated region
  $region2: #{tile.13} parent=0 // pred_check
    _
  $region3: #{tile.13} parent=0 // pred_check_branch
    %3 = sbr.rel (0) target = $region5
  $region4: #{tile.13} parent=0 // pred_region
    _
  $region5: #{tile.13} parent=0 // pred_fallthru
    _
  %v4 = vld [vmem:[%s0] ss:$0 sm:$0xff]
  %5 = vst [vmem:[%s1] sm:$0xff] %v4

// kernel: tile.14
$region0: #{tile.14}
  %s0 = inlined_call_operand.vmem [shape: f32[8,8], index: 0, kind: input, shape index: {}]
  %s1 = inlined_call_operand.vmem [shape: f32[1,64], index: 1, kind: output, shape index: {}]
  $region1: #{tile.14} parent=0
    #allocation0 [shape = 'u8[4096]{0}', space=vmem, size = 0x1000, scoped, tag = 'scoped mem for output reshape']
    %v2 = vld [vmem:[%s0] sm:$0x1]
    %vm3 = vcmask 64512
    %4 = vst.msk [vmem:[#allocation0] sm:$0x1] %vm3, %v2
    %s5 = scalar_lea.vmem %s0, 7
    %v6 = vld [vmem:[%s5] sm:$0x1]
    %7 = vrot.lane.b32.xlu0 %v6, 56
    %v8 = vpop.permute.xlu0 %7
    %vm9 = vcmask 523712
    %10 = vst.msk [vmem:[#allocation0] sm:$0x1] %vm9, %v8
    %s11 = scalar_lea.vmem %s0, 6
    %v12 = vld [vmem:[%s11] sm:$0x1]
    %13 = vrot.lane.b32.xlu0 %v12, 48
    %v14 = vpop.permute.xlu0 %13
    %vm15 = vcmask 458112
    %16 = vst.msk [vmem:[#allocation0] sm:$0x1] %vm15, %v14
    %s17 = scalar_lea.vmem %s0, 5
    %v18 = vld [vmem:[%s17] sm:$0x1]
    %19 = vrot.lane.b32.xlu0 %v18, 40
    %v20 = vpop.permute.xlu0 %19
    %vm21 = vcmask 392512
    %22 = vst.msk [vmem:[#allocation0] sm:$0x1] %vm21, %v20
    %s23 = scalar_lea.vmem %s0, 4
    %v24 = vld [vmem:[%s23] sm:$0x1]
    %25 = vrot.lane.b32.xlu0 %v24, 32
    %v26 = vpop.permute.xlu0 %25
    %vm27 = vcmask 326912
    %28 = vst.msk [vmem:[#allocation0] sm:$0x1] %vm27, %v26
    %s29 = scalar_lea.vmem %s0, 3
    %v30 = vld [vmem:[%s29] sm:$0x1]
    %31 = vrot.lane.b32.xlu0 %v30, 24
    %v32 = vpop.permute.xlu0 %31
    %vm33 = vcmask 261312
    %34 = vst.msk [vmem:[#allocation0] sm:$0x1] %vm33, %v32
    %s35 = scalar_lea.vmem %s0, 2
    %v36 = vld [vmem:[%s35] sm:$0x1]
    %37 = vrot.lane.b32.xlu0 %v36, 16
    %v38 = vpop.permute.xlu0 %37
    %vm39 = vcmask 195712
    %40 = vst.msk [vmem:[#allocation0] sm:$0x1] %vm39, %v38
    %s41 = scalar_lea.vmem %s0, 1
    %v42 = vld [vmem:[%s41] sm:$0x1]
    %43 = vrot.lane.b32.xlu0 %v42, 8
    %v44 = vpop.permute.xlu0 %43
    %vm45 = vcmask 130112
    %46 = vst.msk [vmem:[#allocation0] sm:$0x1] %vm45, %v44
    %s48 = sshllo.u32 0, 1
    %v50 = vld [vmem:[#allocation0] sm:%s48]
    %s51 = sshllo.u32 0, 1
    %52 = vst [vmem:[%s1] sm:%s51] %v50

// kernel: hourglass_forward.10
$region0: #{hourglass_forward.10}
  #allocation0 [shape = 'u32[]', space=smem, size = 0x4, offset = 0x4, fixed_abs, tag = 'smem constant byte address 0x4 - core index']
  #allocation1 [shape = 'u32[144,128]{1,0:T(1,128)}', space=vmem, size = 0x12000, scoped, tag = 'internal scratch']
  %s0 = inlined_call_operand.vmem [shape: bf16[64,128], index: 0, kind: input, shape index: {}]
  %s1 = inlined_call_operand.vmem [shape: bf16[128,64], index: 1, kind: input, shape index: {}]
  %s2 = inlined_call_operand.vmem [shape: bf16[64,64], index: 2, kind: input, shape index: {}]
  %s3 = inlined_call_operand.vmem [shape: bf16[64,64], index: 3, kind: input, shape index: {}]
  %s4 = inlined_call_operand.vmem [shape: f32[1,64], index: 4, kind: input, shape index: {}]
  %s5 = inlined_call_operand.vmem [shape: bf16[64,64], index: 5, kind: output, shape index: {}]
  %s6 = sld [smem:[#allocation0]]
  $region30: #{hourglass_forward.10} parent=0
    _
  %s8 = ssub.s32 1, %s6
  %s9 = scalar_select 0, %s8, %s6
  // Predicated region
  $region2: #{hourglass_forward.10} parent=0 // pred_check
    _
  $region3: #{hourglass_forward.10} parent=0 // pred_check_branch
    %11 = sbr.rel (0) target = $region5
  $region4: #{hourglass_forward.10} parent=0 // pred_region
    _
  $region5: #{hourglass_forward.10} parent=0 // pred_fallthru
    _
  // Predicated region
  $region6: #{hourglass_forward.10} parent=0 // pred_check
    _
  $region7: #{hourglass_forward.10} parent=0 // pred_check_branch
    %13 = sbr.rel (0) target = $region9
  $region8: #{hourglass_forward.10} parent=0 // pred_region
    _
  $region9: #{hourglass_forward.10} parent=0 // pred_fallthru
    _
  // Predicated region
  $region10: #{hourglass_forward.10} parent=0 // pred_check
    _
  $region11: #{hourglass_forward.10} parent=0 // pred_check_branch
    %15 = sbr.rel (0) target = $region13
  $region12: #{hourglass_forward.10} parent=0 // pred_region
    _
  $region13: #{hourglass_forward.10} parent=0 // pred_fallthru
    _
  // Predicated region
  $region14: #{hourglass_forward.10} parent=0 // pred_check
    _
  $region15: #{hourglass_forward.10} parent=0 // pred_check_branch
    %17 = sbr.rel (0) target = $region17
  $region16: #{hourglass_forward.10} parent=0 // pred_region
    _
  $region17: #{hourglass_forward.10} parent=0 // pred_fallthru
    _
  // Predicated region
  $region18: #{hourglass_forward.10} parent=0 // pred_check
    _
  $region19: #{hourglass_forward.10} parent=0 // pred_check_branch
    %19 = sbr.rel (0) target = $region21
  $region20: #{hourglass_forward.10} parent=0 // pred_region
    _
  $region21: #{hourglass_forward.10} parent=0 // pred_fallthru
    _
  %v21 = vld [vmem:[%s0] sm:$0xf]
  %v22 = vld [vmem:[%s0 + $0x4] sm:$0xf]
  %v23 = vld [vmem:[%s0 + $0x8] sm:$0xf]
  %v24 = vld [vmem:[%s0 + $0xc] sm:$0xf]
  %v25 = vld [vmem:[%s0 + $0x10] sm:$0xf]
  %v26 = vld [vmem:[%s0 + $0x14] sm:$0xf]
  %v27 = vld [vmem:[%s0 + $0x18] sm:$0xf]
  %v28 = vld [vmem:[%s0 + $0x1c] sm:$0xf]
  %v29 = vld [vmem:[%s1] sm:$0xf]
  %v30 = vld [vmem:[%s1 + $0x4] sm:$0xf]
  %v31 = vld [vmem:[%s1 + $0x8] sm:$0xf]
  %v32 = vld [vmem:[%s1 + $0xc] sm:$0xf]
  %v33 = vld [vmem:[%s1 + $0x10] sm:$0xf]
  %v34 = vld [vmem:[%s1 + $0x14] sm:$0xf]
  %v35 = vld [vmem:[%s1 + $0x18] sm:$0xf]
  %v36 = vld [vmem:[%s1 + $0x1c] sm:$0xf]
  %v37 = vld [vmem:[%s1 + $0x20] sm:$0xf]
  %v38 = vld [vmem:[%s1 + $0x24] sm:$0xf]
  %v39 = vld [vmem:[%s1 + $0x28] sm:$0xf]
  %v40 = vld [vmem:[%s1 + $0x2c] sm:$0xf]
  %v41 = vld [vmem:[%s1 + $0x30] sm:$0xf]
  %v42 = vld [vmem:[%s1 + $0x34] sm:$0xf]
  %v43 = vld [vmem:[%s1 + $0x38] sm:$0xf]
  %v44 = vld [vmem:[%s1 + $0x3c] sm:$0xf]
  %v45 = vld [vmem:[%s2] sm:$0xf]
  %v46 = vld [vmem:[%s2 + $0x4] sm:$0xf]
  %v47 = vld [vmem:[%s2 + $0x8] sm:$0xf]
  %v48 = vld [vmem:[%s2 + $0xc] sm:$0xf]
  %v49 = vld [vmem:[%s2 + $0x10] sm:$0xf]
  %v50 = vld [vmem:[%s2 + $0x14] sm:$0xf]
  %v51 = vld [vmem:[%s2 + $0x18] sm:$0xf]
  %v52 = vld [vmem:[%s2 + $0x1c] sm:$0xf]
  %v53 = vld [vmem:[%s3] sm:$0xf]
  %v54 = vld [vmem:[%s3 + $0x4] sm:$0xf]
  %v55 = vld [vmem:[%s3 + $0x8] sm:$0xf]
  %v56 = vld [vmem:[%s3 + $0xc] sm:$0xf]
  %v57 = vld [vmem:[%s3 + $0x10] sm:$0xf]
  %v58 = vld [vmem:[%s3 + $0x14] sm:$0xf]
  %v59 = vld [vmem:[%s3 + $0x18] sm:$0xf]
  %v60 = vld [vmem:[%s3 + $0x1c] sm:$0xf]
  %v69 = vunpack.c.l.b16 %v45
  %v70 = vunpack.c.l.b16 %v46
  %v71 = vunpack.c.l.b16 %v47
  %v72 = vunpack.c.l.b16 %v48
  %v73 = vunpack.c.l.b16 %v49
  %v74 = vunpack.c.l.b16 %v50
  %v75 = vunpack.c.l.b16 %v51
  %v76 = vunpack.c.l.b16 %v52
  %v77 = vpack.c.b16 %v70, %v69
  %v78 = vpack.c.b16 %v72, %v71
  %v79 = vpack.c.b16 %v74, %v73
  %v80 = vpack.c.b16 %v76, %v75
  %v89 = vunpack.c.l.b16 %v53
  %v90 = vunpack.c.l.b16 %v54
  %v91 = vunpack.c.l.b16 %v55
  %v92 = vunpack.c.l.b16 %v56
  %v93 = vunpack.c.l.b16 %v57
  %v94 = vunpack.c.l.b16 %v58
  %v95 = vunpack.c.l.b16 %v59
  %v96 = vunpack.c.l.b16 %v60
  %v97 = vpack.c.b16 %v90, %v89
  %v98 = vpack.c.b16 %v92, %v91
  %v99 = vpack.c.b16 %v94, %v93
  %v100 = vpack.c.b16 %v96, %v95
  %vm105 = vcmask 523264
  %v107 = vsel %vm105, %v77, 0
  %v110 = vsel %vm105, %v78, 0
  %v113 = vsel %vm105, %v79, 0
  %v116 = vsel %vm105, %v80, 0
  %118 = vmatprep.subr.bf16.mxu0 0
  %119 = vmatpush1.bf16.msra.mxu0 %v97
  %120 = vmatprep.subr.bf16.mxu0 0
  %121 = vmatpush1.bf16.msra.mxu0 %v98
  %122 = vmatprep.subr.bf16.mxu0 0
  %123 = vmatpush1.bf16.msra.mxu0 %v99
  %124 = vmatprep.subr.bf16.mxu0 0
  %125 = vmatpush1.bf16.msra.mxu0 %v100
  %126 = vmatprep.subr.bf16.mxu0 0
  %127 = vmatpush1.bf16.msra.mxu0 0
  %128 = vmatprep.subr.bf16.mxu0 0
  %129 = vmatpush1.bf16.msra.mxu0 0
  %130 = vmatprep.subr.bf16.mxu0 0
  %131 = vmatpush1.bf16.msra.mxu0 0
  %132 = vmatprep.subr.bf16.mxu0 0
  %133 = vmatpush1.bf16.msra.mxu0 0
  %134 = vmatprep.subr.bf16.mxu0 0
  %135 = vmatpush1.bf16.msra.mxu0 0
  %136 = vmatprep.subr.bf16.mxu0 0
  %137 = vmatpush1.bf16.msra.mxu0 0
  %138 = vmatprep.subr.bf16.mxu0 0
  %139 = vmatpush1.bf16.msra.mxu0 0
  %140 = vmatprep.subr.bf16.mxu0 0
  %141 = vmatpush1.bf16.msra.mxu0 0
  %142 = vmatprep.subr.bf16.mxu0 0
  %143 = vmatpush1.bf16.msra.mxu0 0
  %144 = vmatprep.subr.bf16.mxu0 0
  %145 = vmatpush1.bf16.msra.mxu0 0
  %146 = vmatprep.subr.bf16.mxu0 0
  %147 = vmatpush1.bf16.msra.mxu0 0
  %148 = vmatprep.subr.bf16.mxu0 0
  %149 = vmatpush1.bf16.msra.mxu0 0
  %150 = vmatprep.mubr.bf16.mxu0 0
  %151 = vmatmul.mubr.bf16.gmra.mrb[0].mxu0 %v107
  %v152 = vpop.f32.mrb[0].mxu0
  %v153 = vadd.f32 0.0, %v152
  %v154 = vpop.f32.mrb[0].mxu0
  %v155 = vpop.f32.mrb[0].mxu0
  %v156 = vadd.f32 0.0, %v155
  %v157 = vpop.f32.mrb[0].mxu0
  %158 = vmatprep.mubr.bf16.mxu0 0
  %159 = vmatmul.mubr.bf16.gmra.mrb[0].mxu0 %v110
  %v160 = vpop.f32.mrb[0].mxu0
  %v161 = vadd.f32 0.0, %v160
  %v162 = vpop.f32.mrb[0].mxu0
  %v163 = vpop.f32.mrb[0].mxu0
  %v164 = vadd.f32 0.0, %v163
  %v165 = vpop.f32.mrb[0].mxu0
  %166 = vmatprep.mubr.bf16.mxu0 0
  %167 = vmatmul.mubr.bf16.gmra.mrb[0].mxu0 %v113
  %v168 = vpop.f32.mrb[0].mxu0
  %v169 = vadd.f32 0.0, %v168
  %v170 = vpop.f32.mrb[0].mxu0
  %v171 = vpop.f32.mrb[0].mxu0
  %v172 = vadd.f32 0.0, %v171
  %v173 = vpop.f32.mrb[0].mxu0
  %174 = vmatprep.mubr.bf16.mxu0 0
  %175 = vmatmul.mubr.bf16.gmra.mrb[0].mxu0 %v116
  %v176 = vpop.f32.mrb[0].mxu0
  %v177 = vadd.f32 0.0, %v176
  %v178 = vpop.f32.mrb[0].mxu0
  %v179 = vpop.f32.mrb[0].mxu0
  %v180 = vadd.f32 0.0, %v179
  %v181 = vpop.f32.mrb[0].mxu0
  %182 = vdwg.mxu0
  %v191 = vunpack.c.l.b16 %v21
  %v192 = vunpack.c.l.b16 %v22
  %v193 = vunpack.c.l.b16 %v23
  %v194 = vunpack.c.l.b16 %v24
  %v195 = vunpack.c.l.b16 %v25
  %v196 = vunpack.c.l.b16 %v26
  %v197 = vunpack.c.l.b16 %v27
  %v198 = vunpack.c.l.b16 %v28
  %v199 = vpack.c.b16 %v192, %v191
  %v200 = vpack.c.b16 %v194, %v193
  %v201 = vpack.c.b16 %v196, %v195
  %v202 = vpack.c.b16 %v198, %v197
  %v223 = vunpack.c.l.b16 %v29
  %v224 = vunpack.c.l.b16 %v30
  %v225 = vunpack.c.l.b16 %v31
  %v226 = vunpack.c.l.b16 %v32
  %v227 = vunpack.c.l.b16 %v33
  %v228 = vunpack.c.l.b16 %v34
  %v229 = vunpack.c.l.b16 %v35
  %v230 = vunpack.c.l.b16 %v36
  %v231 = vunpack.c.l.b16 %v37
  %v232 = vunpack.c.l.b16 %v38
  %v233 = vunpack.c.l.b16 %v39
  %v234 = vunpack.c.l.b16 %v40
  %v235 = vunpack.c.l.b16 %v41
  %v236 = vunpack.c.l.b16 %v42
  %v237 = vunpack.c.l.b16 %v43
  %v238 = vunpack.c.l.b16 %v44
  %v239 = vpack.c.b16 %v224, %v223
  %v240 = vpack.c.b16 %v226, %v225
  %v241 = vpack.c.b16 %v228, %v227
  %v242 = vpack.c.b16 %v230, %v229
  %v243 = vpack.c.b16 %v232, %v231
  %v244 = vpack.c.b16 %v234, %v233
  %v245 = vpack.c.b16 %v236, %v235
  %v246 = vpack.c.b16 %v238, %v237
  %255 = vmatprep.subr.bf16.mxu0 0
  %256 = vmatpush1.bf16.msra.mxu0 %v239
  %257 = vmatprep.subr.bf16.mxu0 0
  %258 = vmatpush1.bf16.msra.mxu0 %v240
  %259 = vmatprep.subr.bf16.mxu0 0
  %260 = vmatpush1.bf16.msra.mxu0 %v241
  %261 = vmatprep.subr.bf16.mxu0 0
  %262 = vmatpush1.bf16.msra.mxu0 %v242
  %263 = vmatprep.subr.bf16.mxu0 0
  %264 = vmatpush1.bf16.msra.mxu0 %v243
  %265 = vmatprep.subr.bf16.mxu0 0
  %266 = vmatpush1.bf16.msra.mxu0 %v244
  %267 = vmatprep.subr.bf16.mxu0 0
  %268 = vmatpush1.bf16.msra.mxu0 %v245
  %269 = vmatprep.subr.bf16.mxu0 0
  %270 = vmatpush1.bf16.msra.mxu0 %v246
  %271 = vmatprep.subr.bf16.mxu0 0
  %272 = vmatpush1.bf16.msra.mxu0 0
  %273 = vmatprep.subr.bf16.mxu0 0
  %274 = vmatpush1.bf16.msra.mxu0 0
  %275 = vmatprep.subr.bf16.mxu0 0
  %276 = vmatpush1.bf16.msra.mxu0 0
  %277 = vmatprep.subr.bf16.mxu0 0
  %278 = vmatpush1.bf16.msra.mxu0 0
  %279 = vmatprep.subr.bf16.mxu0 0
  %280 = vmatpush1.bf16.msra.mxu0 0
  %281 = vmatprep.subr.bf16.mxu0 0
  %282 = vmatpush1.bf16.msra.mxu0 0
  %283 = vmatprep.subr.bf16.mxu0 0
  %284 = vmatpush1.bf16.msra.mxu0 0
  %285 = vmatprep.subr.bf16.mxu0 0
  %286 = vmatpush1.bf16.msra.mxu0 0
  %287 = vmatprep.mubr.bf16.mxu0 0
  %288 = vmatmul.mubr.bf16.gmra.mrb[0].mxu0 %v199
  %v289 = vpop.f32.mrb[0].mxu0
  %v290 = vadd.f32 %v153, %v289
  %v291 = vpop.f32.mrb[0].mxu0
  %v292 = vpop.f32.mrb[0].mxu0
  %v293 = vadd.f32 %v156, %v292
  %v294 = vpop.f32.mrb[0].mxu0
  %295 = vmatprep.mubr.bf16.mxu0 0
  %296 = vmatmul.mubr.bf16.gmra.mrb[0].mxu0 %v200
  %v297 = vpop.f32.mrb[0].mxu0
  %v298 = vadd.f32 %v161, %v297
  %v299 = vpop.f32.mrb[0].mxu0
  %v300 = vpop.f32.mrb[0].mxu0
  %v301 = vadd.f32 %v164, %v300
  %v302 = vpop.f32.mrb[0].mxu0
  %303 = vmatprep.mubr.bf16.mxu0 0
  %304 = vmatmul.mubr.bf16.gmra.mrb[0].mxu0 %v201
  %v305 = vpop.f32.mrb[0].mxu0
  %v306 = vadd.f32 %v169, %v305
  %v307 = vpop.f32.mrb[0].mxu0
  %v308 = vpop.f32.mrb[0].mxu0
  %v309 = vadd.f32 %v172, %v308
  %v310 = vpop.f32.mrb[0].mxu0
  %311 = vmatprep.mubr.bf16.mxu0 0
  %312 = vmatmul.mubr.bf16.gmra.mrb[0].mxu0 %v202
  %v313 = vpop.f32.mrb[0].mxu0
  %v314 = vadd.f32 %v177, %v313
  %v315 = vpop.f32.mrb[0].mxu0
  %v316 = vpop.f32.mrb[0].mxu0
  %v317 = vadd.f32 %v180, %v316
  %v318 = vpop.f32.mrb[0].mxu0
  %319 = vdwg.mxu0
  %v320 = vld [vmem:[%s4] sm:$0x1]
  %v322 = vlaneseq
  %v323 = vshrl.u32 %v322, 7
  %v324 = vsub.s32 0, %v323
  %v325 = vrot.slane %v320, %v324
  %v327 = vadd.f32 %v290, %v325
  %v328 = vadd.f32 %v293, %v325
  %v329 = vadd.f32 %v298, %v325
  %v330 = vadd.f32 %v301, %v325
  %v331 = vadd.f32 %v306, %v325
  %v332 = vadd.f32 %v309, %v325
  %v333 = vadd.f32 %v314, %v325
  %v334 = vadd.f32 %v317, %v325
  %v335 = vmax.f32 %v327, 0.0
  %v336 = vmax.f32 %v328, 0.0
  %v337 = vmax.f32 %v329, 0.0
  %v338 = vmax.f32 %v330, 0.0
  %v339 = vmax.f32 %v331, 0.0
  %v340 = vmax.f32 %v332, 0.0
  %v341 = vmax.f32 %v333, 0.0
  %v342 = vmax.f32 %v334, 0.0
  %v343 = vpack.c.bf16 %v336, %v335
  %v344 = vpack.c.bf16 %v338, %v337
  %v345 = vpack.c.bf16 %v340, %v339
  %v346 = vpack.c.bf16 %v342, %v341
  %v351 = vunpack.c.l.b16 %v343
  %v352 = vunpack.c.h.b16 %v343
  %v353 = vunpack.c.l.b16 %v344
  %v354 = vunpack.c.h.b16 %v344
  %v355 = vunpack.c.l.b16 %v345
  %v356 = vunpack.c.h.b16 %v345
  %v357 = vunpack.c.l.b16 %v346
  %v358 = vunpack.c.h.b16 %v346
  %v359 = vpack.c.b16 %v351, %v351
  %v360 = vpack.c.b16 %v352, %v352
  %v361 = vpack.c.b16 %v353, %v353
  %v362 = vpack.c.b16 %v354, %v354
  %v363 = vpack.c.b16 %v355, %v355
  %v364 = vpack.c.b16 %v356, %v356
  %v365 = vpack.c.b16 %v357, %v357
  %v366 = vpack.c.b16 %v358, %v358
  %vm375 = vcmask 519168
  %376 = vst.msk [vmem:[%s5] sm:$0xf] %vm375, %v359
  %377 = vst.msk [vmem:[%s5 + $0x4] sm:$0xf] %vm375, %v360
  %378 = vst.msk [vmem:[%s5 + $0x8] sm:$0xf] %vm375, %v361
  %379 = vst.msk [vmem:[%s5 + $0xc] sm:$0xf] %vm375, %v362
  %380 = vst.msk [vmem:[%s5 + $0x10] sm:$0xf] %vm375, %v363
  %381 = vst.msk [vmem:[%s5 + $0x14] sm:$0xf] %vm375, %v364
  %382 = vst.msk [vmem:[%s5 + $0x18] sm:$0xf] %vm375, %v365
  %383 = vst.msk [vmem:[%s5 + $0x1c] sm:$0xf] %vm375, %v366
  // Predicated region
  $region22: #{hourglass_forward.10} parent=0 // pred_check
    _
  $region23: #{hourglass_forward.10} parent=0 // pred_check_branch
    %385 = sbr.rel (0) target = $region25
  $region24: #{hourglass_forward.10} parent=0 // pred_region
    _
  $region25: #{hourglass_forward.10} parent=0 // pred_fallthru
    _
  // Predicated region
  $region26: #{hourglass_forward.10} parent=0 // pred_check
    _
  $region27: #{hourglass_forward.10} parent=0 // pred_check_branch
    %387 = sbr.rel (0) target = $region29
  $region28: #{hourglass_forward.10} parent=0 // pred_region
    _
  $region29: #{hourglass_forward.10} parent=0 // pred_fallthru
    _

// kernel: tile.18
$region0: #{tile.18}
  #allocation0 [shape = 's32[1]{0}', space=sflag, size = 0x4, scoped, tag = 'scoped memory for tile.18']
  %s0 = inlined_call_operand.vmem [shape: f32[4], index: 0, kind: input, shape index: {}]
  %s1 = inlined_call_operand.vmem [shape: f32[8,4], index: 1, kind: output, shape index: {}]
  // Predicated region
  $region2: #{tile.18} parent=0 // pred_check
    _
  $region3: #{tile.18} parent=0 // pred_check_branch
    %3 = sbr.rel (0) target = $region5
  $region4: #{tile.18} parent=0 // pred_region
    _
  $region5: #{tile.18} parent=0 // pred_fallthru
    _
  %v4 = vld [vmem:[%s0] ss:$0 sm:$0xff]
  %5 = vst [vmem:[%s1] sm:$0xff] %v4

// kernel: tile.19
$region0: #{tile.19}
  %s0 = inlined_call_operand.vmem [shape: f32[8,4], index: 0, kind: input, shape index: {}]
  %s1 = inlined_call_operand.vmem [shape: f32[1,32], index: 1, kind: output, shape index: {}]
  $region1: #{tile.19} parent=0
    #allocation0 [shape = 'u8[4096]{0}', space=vmem, size = 0x1000, scoped, tag = 'scoped mem for output reshape']
    %v2 = vld [vmem:[%s0] sm:$0x1]
    %vm3 = vcmask 31744
    %4 = vst.msk [vmem:[#allocation0] sm:$0x1] %vm3, %v2
    %s5 = scalar_lea.vmem %s0, 7
    %v6 = vld [vmem:[%s5] sm:$0x1]
    %7 = vrot.lane.b32.xlu0 %v6, 28
    %v8 = vpop.permute.xlu0 %7
    %vm9 = vcmask 261344
    %10 = vst.msk [vmem:[#allocation0] sm:$0x1] %vm9, %v8
    %s11 = scalar_lea.vmem %s0, 6
    %v12 = vld [vmem:[%s11] sm:$0x1]
    %13 = vrot.lane.b32.xlu0 %v12, 24
    %v14 = vpop.permute.xlu0 %13
    %vm15 = vcmask 228544
    %16 = vst.msk [vmem:[#allocation0] sm:$0x1] %vm15, %v14
    %s17 = scalar_lea.vmem %s0, 5
    %v18 = vld [vmem:[%s17] sm:$0x1]
    %19 = vrot.lane.b32.xlu0 %v18, 20
    %v20 = vpop.permute.xlu0 %19
    %vm21 = vcmask 195744
    %22 = vst.msk [vmem:[#allocation0] sm:$0x1] %vm21, %v20
    %s23 = scalar_lea.vmem %s0, 4
    %v24 = vld [vmem:[%s23] sm:$0x1]
    %25 = vrot.lane.b32.xlu0 %v24, 16
    %v26 = vpop.permute.xlu0 %25
    %vm27 = vcmask 162944
    %28 = vst.msk [vmem:[#allocation0] sm:$0x1] %vm27, %v26
    %s29 = scalar_lea.vmem %s0, 3
    %v30 = vld [vmem:[%s29] sm:$0x1]
    %31 = vrot.lane.b32.xlu0 %v30, 12
    %v32 = vpop.permute.xlu0 %31
    %vm33 = vcmask 130144
    %34 = vst.msk [vmem:[#allocation0] sm:$0x1] %vm33, %v32
    %s35 = scalar_lea.vmem %s0, 2
    %v36 = vld [vmem:[%s35] sm:$0x1]
    %37 = vrot.lane.b32.xlu0 %v36, 8
    %v38 = vpop.permute.xlu0 %37
    %vm39 = vcmask 97344
    %40 = vst.msk [vmem:[#allocation0] sm:$0x1] %vm39, %v38
    %s41 = scalar_lea.vmem %s0, 1
    %v42 = vld [vmem:[%s41] sm:$0x1]
    %43 = vrot.lane.b32.xlu0 %v42, 4
    %v44 = vpop.permute.xlu0 %43
    %vm45 = vcmask 64544
    %46 = vst.msk [vmem:[#allocation0] sm:$0x1] %vm45, %v44
    %s48 = sshllo.u32 0, 1
    %v50 = vld [vmem:[#allocation0] sm:%s48]
    %s51 = sshllo.u32 0, 1
    %52 = vst [vmem:[%s1] sm:%s51] %v50

// kernel: hourglass_forward.11
$region0: #{hourglass_forward.11}
  #allocation0 [shape = 'u32[]', space=smem, size = 0x4, offset = 0x4, fixed_abs, tag = 'smem constant byte address 0x4 - core index']
  #allocation1 [shape = 'u32[144,128]{1,0:T(1,128)}', space=vmem, size = 0x12000, scoped, tag = 'internal scratch']
  %s0 = inlined_call_operand.vmem [shape: bf16[512,64], index: 0, kind: input, shape index: {}]
  %s1 = inlined_call_operand.vmem [shape: bf16[64,32], index: 1, kind: input, shape index: {}]
  %s2 = inlined_call_operand.vmem [shape: bf16[512,32], index: 2, kind: input, shape index: {}]
  %s3 = inlined_call_operand.vmem [shape: bf16[32,32], index: 3, kind: input, shape index: {}]
  %s4 = inlined_call_operand.vmem [shape: f32[1,32], index: 4, kind: input, shape index: {}]
  %s5 = inlined_call_operand.vmem [shape: f32[512,32], index: 5, kind: output, shape index: {}]
  %s6 = sld [smem:[#allocation0]]
  $region53: #{hourglass_forward.11} parent=0
    _
  %s8 = ssub.s32 1, %s6
  %s9 = scalar_select 0, %s8, %s6
  loop: start=0, step=1, limit=4
  $region2: #{hourglass_forward.11} parent=0 // loop_pre_header
    _
  $region3: #{hourglass_forward.11} parent=0 // loop_header
    %s11 = sphi 0, %s15
    %p12 = scmp.ge.s32.totalorder %s11, 4
    %s21 = sphi 0, %s23
    %s24 = sphi 0, %s21
    %s25 = sphi 0, %s24
    %s41 = sphi 0, %s25
    %s45 = sphi 0, %s45
    %s47 = sphi 0, %s45
    %s48 = sphi 0, %s47
    %s62 = sphi 0, %s48
    %s68 = sphi 0, %s70
    %s71 = sphi 0, %s68
    %s72 = sphi 0, %s71
    %s88 = sphi 0, %s72
    %s92 = sphi 0, %s92
    %s94 = sphi 0, %s92
    %s95 = sphi 0, %s94
    %s109 = sphi 0, %s95
    %s113 = sphi 0, %s113
    %s115 = sphi 0, %s113
    %s116 = sphi 0, %s115
    %s130 = sphi 0, %s116
    %s136 = sphi 0, %s138
    %s139 = sphi 0, %s136
    %s140 = sphi 0, %s139
    %s156 = sphi 0, %s140
  $region4: #{hourglass_forward.11} parent=0 // loop_header_branch
    %14 = sbr.rel (%p12) target = $region8
  $region5: #{hourglass_forward.11} parent=0 // loop_body
    %s16 = ssub.s32 %s11, 1
    %s17 = ssub.s32 %s11, 2
    %s18 = sadd.s32 %s11, 1
    %s19 = ssub.s32 %s11, %s18
    %p20 = scmp.eq.s32.totalorder %s19, 0
    %s22 = sadd.s32 %s21, 1
    %s23 = scalar_select %p20, %s21, %s22
    %p26 = pneg %p20
    %p27 = scmp.eq.s32.totalorder %s11, 1
    %p28 = por %p26, %p27
    %p29 = scmp.ne.s32.totalorder %s21, %s24
    %p30 = scmp.eq.s32.totalorder %s11, 0
    %p31 = por %p29, %p30
    %p32 = scmp.ne.s32.totalorder %s21, %s24
    %p33 = scmp.eq.s32.totalorder %s16, 1
    %p34 = por %p32, %p33
    %p35 = scmp.ne.s32.totalorder %s24, %s25
    %p36 = scmp.eq.s32.totalorder %s16, 0
    %p37 = por %p35, %p36
    %p38 = scmp.ne.s32.totalorder %s24, %s25
    %p39 = scmp.eq.s32.totalorder %s17, 1
    %p40 = por %p38, %p39
    %p42 = scmp.ne.s32.totalorder %s25, %s41
    %p43 = scmp.eq.s32.totalorder %s17, 0
    %p44 = por %p42, %p43
    %s46 = sadd.s32 %s45, 1
    %p49 = scmp.eq.s32.totalorder %s11, 1
    %p50 = scmp.ne.s32.totalorder %s45, %s47
    %p51 = scmp.eq.s32.totalorder %s11, 0
    %p52 = por %p50, %p51
    %p53 = scmp.ne.s32.totalorder %s45, %s47
    %p54 = scmp.eq.s32.totalorder %s16, 1
    %p55 = por %p53, %p54
    %p56 = scmp.ne.s32.totalorder %s47, %s48
    %p57 = scmp.eq.s32.totalorder %s16, 0
    %p58 = por %p56, %p57
    %p59 = scmp.ne.s32.totalorder %s47, %s48
    %p60 = scmp.eq.s32.totalorder %s17, 1
    %p61 = por %p59, %p60
    %p63 = scmp.ne.s32.totalorder %s48, %s62
    %p64 = scmp.eq.s32.totalorder %s17, 0
    %p65 = por %p63, %p64
    %s66 = ssub.s32 %s11, %s18
    %p67 = scmp.eq.s32.totalorder %s66, 0
    %s69 = sadd.s32 %s68, 1
    %s70 = scalar_select %p67, %s68, %s69
    %p73 = pneg %p67
    %p74 = scmp.eq.s32.totalorder %s11, 1
    %p75 = por %p73, %p74
    %p76 = scmp.ne.s32.totalorder %s68, %s71
    %p77 = scmp.eq.s32.totalorder %s11, 0
    %p78 = por %p76, %p77
    %p79 = scmp.ne.s32.totalorder %s68, %s71
    %p80 = scmp.eq.s32.totalorder %s16, 1
    %p81 = por %p79, %p80
    %p82 = scmp.ne.s32.totalorder %s71, %s72
    %p83 = scmp.eq.s32.totalorder %s16, 0
    %p84 = por %p82, %p83
    %p85 = scmp.ne.s32.totalorder %s71, %s72
    %p86 = scmp.eq.s32.totalorder %s17, 1
    %p87 = por %p85, %p86
    %p89 = scmp.ne.s32.totalorder %s72, %s88
    %p90 = scmp.eq.s32.totalorder %s17, 0
    %p91 = por %p89, %p90
    %s93 = sadd.s32 %s92, 1
    %p96 = scmp.eq.s32.totalorder %s11, 1
    %p97 = scmp.ne.s32.totalorder %s92, %s94
    %p98 = scmp.eq.s32.totalorder %s11, 0
    %p99 = por %p97, %p98
    %p100 = scmp.ne.s32.totalorder %s92, %s94
    %p101 = scmp.eq.s32.totalorder %s16, 1
    %p102 = por %p100, %p101
    %p103 = scmp.ne.s32.totalorder %s94, %s95
    %p104 = scmp.eq.s32.totalorder %s16, 0
    %p105 = por %p103, %p104
    %p106 = scmp.ne.s32.totalorder %s94, %s95
    %p107 = scmp.eq.s32.totalorder %s17, 1
    %p108 = por %p106, %p107
    %p110 = scmp.ne.s32.totalorder %s95, %s109
    %p111 = scmp.eq.s32.totalorder %s17, 0
    %p112 = por %p110, %p111
    %s114 = sadd.s32 %s113, 1
    %p117 = scmp.eq.s32.totalorder %s11, 1
    %p118 = scmp.ne.s32.totalorder %s113, %s115
    %p119 = scmp.eq.s32.totalorder %s11, 0
    %p120 = por %p118, %p119
    %p121 = scmp.ne.s32.totalorder %s113, %s115
    %p122 = scmp.eq.s32.totalorder %s16, 1
    %p123 = por %p121, %p122
    %p124 = scmp.ne.s32.totalorder %s115, %s116
    %p125 = scmp.eq.s32.totalorder %s16, 0
    %p126 = por %p124, %p125
    %p127 = scmp.ne.s32.totalorder %s115, %s116
    %p128 = scmp.eq.s32.totalorder %s17, 1
    %p129 = por %p127, %p128
    %p131 = scmp.ne.s32.totalorder %s116, %s130
    %p132 = scmp.eq.s32.totalorder %s17, 0
    %p133 = por %p131, %p132
    %s134 = ssub.s32 %s11, %s18
    %p135 = scmp.eq.s32.totalorder %s134, 0
    %s137 = sadd.s32 %s136, 1
    %s138 = scalar_select %p135, %s136, %s137
    %p141 = pneg %p135
    %p142 = scmp.eq.s32.totalorder %s11, 1
    %p143 = por %p141, %p142
    %p144 = scmp.ne.s32.totalorder %s136, %s139
    %p145 = scmp.eq.s32.totalorder %s11, 0
    %p146 = por %p144, %p145
    %p147 = scmp.ne.s32.totalorder %s136, %s139
    %p148 = scmp.eq.s32.totalorder %s16, 1
    %p149 = por %p147, %p148
    %p150 = scmp.ne.s32.totalorder %s139, %s140
    %p151 = scmp.eq.s32.totalorder %s16, 0
    %p152 = por %p150, %p151
    %p153 = scmp.ne.s32.totalorder %s139, %s140
    %p154 = scmp.eq.s32.totalorder %s17, 1
    %p155 = por %p153, %p154
    %p157 = scmp.ne.s32.totalorder %s140, %s156
    %p158 = scmp.eq.s32.totalorder %s17, 0
    %p159 = por %p157, %p158
    %p160 = scmp.le.s32.totalorder 1, %s11
    %p161 = scmp.lt.s32.totalorder %s11, 3
    %p162 = pnand %p160, %p161
    %p163 = pneg %p162
    // Predicated region
    $region9: #{hourglass_forward.11} parent=5 // pred_check
      _
    $region10: #{hourglass_forward.11} parent=5 // pred_check_branch
      %165 = sbr.rel (%p162) target = $region12
    $region11: #{hourglass_forward.11} parent=5 // pred_region
      %s166 = ssub.s32 %s11, 1
      // Predicated region
      $region13: #{hourglass_forward.11} parent=11 // pred_check
        %p167 = pneg %p58
      $region14: #{hourglass_forward.11} parent=11 // pred_check_branch
        %169 = sbr.rel (%p167) target = $region16
      $region15: #{hourglass_forward.11} parent=11 // pred_region
        _
      $region16: #{hourglass_forward.11} parent=11 // pred_fallthru
        _
      // Predicated region
      $region17: #{hourglass_forward.11} parent=11 // pred_check
        %p170 = pneg %p105
      $region18: #{hourglass_forward.11} parent=11 // pred_check_branch
        %172 = sbr.rel (%p170) target = $region20
      $region19: #{hourglass_forward.11} parent=11 // pred_region
        _
      $region20: #{hourglass_forward.11} parent=11 // pred_fallthru
        _
      // Predicated region
      $region21: #{hourglass_forward.11} parent=11 // pred_check
        %p173 = pneg %p126
      $region22: #{hourglass_forward.11} parent=11 // pred_check_branch
        %175 = sbr.rel (%p173) target = $region24
      $region23: #{hourglass_forward.11} parent=11 // pred_region
        _
      $region24: #{hourglass_forward.11} parent=11 // pred_fallthru
        _
    $region12: #{hourglass_forward.11} parent=5 // pred_fallthru
      _
    %p176 = scmp.lt.s32.totalorder %s11, 2
    // Predicated region
    $region25: #{hourglass_forward.11} parent=5 // pred_check
      %p177 = pneg %p176
    $region26: #{hourglass_forward.11} parent=5 // pred_check_branch
      %179 = sbr.rel (%p177) target = $region28
    $region27: #{hourglass_forward.11} parent=5 // pred_region
      // Predicated region
      $region29: #{hourglass_forward.11} parent=27 // pred_check
        %p180 = pneg %p31
      $region30: #{hourglass_forward.11} parent=27 // pred_check_branch
        %182 = sbr.rel (%p180) target = $region32
      $region31: #{hourglass_forward.11} parent=27 // pred_region
        %s183 = smul.u32 32, %s11
        %p184 = scmp.lt.s32.totalorder %s183, 63
        %s185 = scalar_select %p184, %s183, 63
        %s186 = smul.addr %s185, 4
        %s187 = scalar_lea.vmem %s0, %s186
        %s188 = smul.u32 32, %s11
      $region32: #{hourglass_forward.11} parent=27 // pred_fallthru
        _
      // Predicated region
      $region33: #{hourglass_forward.11} parent=27 // pred_check
        %p189 = pneg %p78
      $region34: #{hourglass_forward.11} parent=27 // pred_check_branch
        %191 = sbr.rel (%p189) target = $region36
      $region35: #{hourglass_forward.11} parent=27 // pred_region
        %s192 = smul.u32 32, %s11
        %p193 = scmp.lt.s32.totalorder %s192, 63
        %s194 = scalar_select %p193, %s192, 63
        %s195 = smul.addr %s194, 4
        %s196 = scalar_lea.vmem %s2, %s195
        %s197 = smul.u32 32, %s11
      $region36: #{hourglass_forward.11} parent=27 // pred_fallthru
        _
    $region28: #{hourglass_forward.11} parent=5 // pred_fallthru
      _
    %p198 = scmp.le.s32.totalorder 1, %s11
    %p199 = scmp.lt.s32.totalorder %s11, 3
    %p200 = pnand %p198, %p199
    %p201 = pneg %p200
    // Predicated region
    $region37: #{hourglass_forward.11} parent=5 // pred_check
      _
    $region38: #{hourglass_forward.11} parent=5 // pred_check_branch
      %203 = sbr.rel (%p200) target = $region40
    $region39: #{hourglass_forward.11} parent=5 // pred_region
      %s204 = ssub.s32 %s11, 1
      %s205 = smul.u32 32, %s16
      %p206 = scmp.lt.s32.totalorder %s205, 63
      %s207 = scalar_select %p206, %s205, 63
      %s208 = smul.addr %s207, 4
      %s209 = scalar_lea.vmem %s0, %s208
      %p210 = pneg %p37
      %p211 = pneg %p34
      %p212 = pneg %p58
      %p213 = pneg %p55
      %s214 = smul.u32 32, %s16
      %p215 = scmp.lt.s32.totalorder %s214, 63
      %s216 = scalar_select %p215, %s214, 63
      %s217 = smul.addr %s216, 4
      %s218 = scalar_lea.vmem %s2, %s217
      %p219 = pneg %p84
      %p220 = pneg %p81
      %p221 = pneg %p105
      %p222 = pneg %p102
      %p223 = pneg %p126
      %p224 = pneg %p123
      %p225 = pneg %p152
      %p226 = pneg %p149
      %s227 = smul.u32 32, %s16
      %p228 = scmp.lt.s32.totalorder %s227, 63
      %s229 = scalar_select %p228, %s227, 63
      %s230 = smul.addr %s229, 8
      %s231 = scalar_lea.vmem %s5, %s230
      %s232 = smul.u32 32, %s16
      %p233 = scmp.lt.s32.totalorder %s232, 63
      %s234 = scalar_select %p233, %s232, 63
      %s235 = smul.addr %s234, 4
      %s236 = scalar_lea.vmem %s0, %s235
      %s237 = smul.u32 32, %s16
      %s238 = smul.u32 32, %s16
      %p239 = scmp.lt.s32.totalorder %s238, 63
      %s240 = scalar_select %p239, %s238, 63
      %s241 = smul.addr %s240, 4
      %s242 = scalar_lea.vmem %s2, %s241
      %s243 = smul.u32 32, %s16
      %s244 = smul.u32 32, %s16
      %p245 = scmp.lt.s32.totalorder %s244, 63
      %s246 = scalar_select %p245, %s244, 63
      %s247 = smul.addr %s246, 8
      %s248 = scalar_lea.vmem %s5, %s247
      %s249 = smul.u32 32, %s16
      %v251 = vld [vmem:[%s236] sm:$0xf]
      %v252 = vld [vmem:[%s236 + $0x4] sm:$0xf]
      %v253 = vld [vmem:[%s236 + $0x8] sm:$0xf]
      %v254 = vld [vmem:[%s236 + $0xc] sm:$0xf]
      %v255 = vld [vmem:[%s236 + $0x10] sm:$0xf]
      %v256 = vld [vmem:[%s236 + $0x14] sm:$0xf]
      %v257 = vld [vmem:[%s236 + $0x18] sm:$0xf]
      %v258 = vld [vmem:[%s236 + $0x1c] sm:$0xf]
      %v259 = vld [vmem:[%s236 + $0x20] sm:$0xf]
      %v260 = vld [vmem:[%s236 + $0x24] sm:$0xf]
      %v261 = vld [vmem:[%s236 + $0x28] sm:$0xf]
      %v262 = vld [vmem:[%s236 + $0x2c] sm:$0xf]
      %v263 = vld [vmem:[%s236 + $0x30] sm:$0xf]
      %v264 = vld [vmem:[%s236 + $0x34] sm:$0xf]
      %v265 = vld [vmem:[%s236 + $0x38] sm:$0xf]
      %v266 = vld [vmem:[%s236 + $0x3c] sm:$0xf]
      %v267 = vld [vmem:[%s236 + $0x40] sm:$0xf]
      %v268 = vld [vmem:[%s236 + $0x44] sm:$0xf]
      %v269 = vld [vmem:[%s236 + $0x48] sm:$0xf]
      %v270 = vld [vmem:[%s236 + $0x4c] sm:$0xf]
      %v271 = vld [vmem:[%s236 + $0x50] sm:$0xf]
      %v272 = vld [vmem:[%s236 + $0x54] sm:$0xf]
      %v273 = vld [vmem:[%s236 + $0x58] sm:$0xf]
      %v274 = vld [vmem:[%s236 + $0x5c] sm:$0xf]
      %v275 = vld [vmem:[%s236 + $0x60] sm:$0xf]
      %v276 = vld [vmem:[%s236 + $0x64] sm:$0xf]
      %v277 = vld [vmem:[%s236 + $0x68] sm:$0xf]
      %v278 = vld [vmem:[%s236 + $0x6c] sm:$0xf]
      %v279 = vld [vmem:[%s236 + $0x70] sm:$0xf]
      %v280 = vld [vmem:[%s236 + $0x74] sm:$0xf]
      %v281 = vld [vmem:[%s236 + $0x78] sm:$0xf]
      %v282 = vld [vmem:[%s236 + $0x7c] sm:$0xf]
      %v283 = vld [vmem:[%s1] sm:$0xf]
      %v284 = vld [vmem:[%s1 + $0x4] sm:$0xf]
      %v285 = vld [vmem:[%s1 + $0x8] sm:$0xf]
      %v286 = vld [vmem:[%s1 + $0xc] sm:$0xf]
      %v287 = vld [vmem:[%s1 + $0x10] sm:$0xf]
      %v288 = vld [vmem:[%s1 + $0x14] sm:$0xf]
      %v289 = vld [vmem:[%s1 + $0x18] sm:$0xf]
      %v290 = vld [vmem:[%s1 + $0x1c] sm:$0xf]
      %v291 = vld [vmem:[%s242] sm:$0xf]
      %v292 = vld [vmem:[%s242 + $0x4] sm:$0xf]
      %v293 = vld [vmem:[%s242 + $0x8] sm:$0xf]
      %v294 = vld [vmem:[%s242 + $0xc] sm:$0xf]
      %v295 = vld [vmem:[%s242 + $0x10] sm:$0xf]
      %v296 = vld [vmem:[%s242 + $0x14] sm:$0xf]
      %v297 = vld [vmem:[%s242 + $0x18] sm:$0xf]
      %v298 = vld [vmem:[%s242 + $0x1c] sm:$0xf]
      %v299 = vld [vmem:[%s242 + $0x20] sm:$0xf]
      %v300 = vld [vmem:[%s242 + $0x24] sm:$0xf]
      %v301 = vld [vmem:[%s242 + $0x28] sm:$0xf]
      %v302 = vld [vmem:[%s242 + $0x2c] sm:$0xf]
      %v303 = vld [vmem:[%s242 + $0x30] sm:$0xf]
      %v304 = vld [vmem:[%s242 + $0x34] sm:$0xf]
      %v305 = vld [vmem:[%s242 + $0x38] sm:$0xf]
      %v306 = vld [vmem:[%s242 + $0x3c] sm:$0xf]
      %v307 = vld [vmem:[%s242 + $0x40] sm:$0xf]
      %v308 = vld [vmem:[%s242 + $0x44] sm:$0xf]
      %v309 = vld [vmem:[%s242 + $0x48] sm:$0xf]
      %v310 = vld [vmem:[%s242 + $0x4c] sm:$0xf]
      %v311 = vld [vmem:[%s242 + $0x50] sm:$0xf]
      %v312 = vld [vmem:[%s242 + $0x54] sm:$0xf]
      %v313 = vld [vmem:[%s242 + $0x58] sm:$0xf]
      %v314 = vld [vmem:[%s242 + $0x5c] sm:$0xf]
      %v315 = vld [vmem:[%s242 + $0x60] sm:$0xf]
      %v316 = vld [vmem:[%s242 + $0x64] sm:$0xf]
      %v317 = vld [vmem:[%s242 + $0x68] sm:$0xf]
      %v318 = vld [vmem:[%s242 + $0x6c] sm:$0xf]
      %v319 = vld [vmem:[%s242 + $0x70] sm:$0xf]
      %v320 = vld [vmem:[%s242 + $0x74] sm:$0xf]
      %v321 = vld [vmem:[%s242 + $0x78] sm:$0xf]
      %v322 = vld [vmem:[%s242 + $0x7c] sm:$0xf]
      %v323 = vld [vmem:[%s3] sm:$0xf]
      %v324 = vld [vmem:[%s3 + $0x4] sm:$0xf]
      %v325 = vld [vmem:[%s3 + $0x8] sm:$0xf]
      %v326 = vld [vmem:[%s3 + $0xc] sm:$0xf]
      %v359 = vunpack.c.l.b16 %v291
      %v360 = vunpack.c.l.b16 %v292
      %v361 = vunpack.c.l.b16 %v293
      %v362 = vunpack.c.l.b16 %v294
      %v363 = vunpack.c.l.b16 %v295
      %v364 = vunpack.c.l.b16 %v296
      %v365 = vunpack.c.l.b16 %v297
      %v366 = vunpack.c.l.b16 %v298
      %v367 = vunpack.c.l.b16 %v299
      %v368 = vunpack.c.l.b16 %v300
      %v369 = vunpack.c.l.b16 %v301
      %v370 = vunpack.c.l.b16 %v302
      %v371 = vunpack.c.l.b16 %v303
      %v372 = vunpack.c.l.b16 %v304
      %v373 = vunpack.c.l.b16 %v305
      %v374 = vunpack.c.l.b16 %v306
      %v375 = vunpack.c.l.b16 %v307
      %v376 = vunpack.c.l.b16 %v308
      %v377 = vunpack.c.l.b16 %v309
      %v378 = vunpack.c.l.b16 %v310
      %v379 = vunpack.c.l.b16 %v311
      %v380 = vunpack.c.l.b16 %v312
      %v381 = vunpack.c.l.b16 %v313
      %v382 = vunpack.c.l.b16 %v314
      %v383 = vunpack.c.l.b16 %v315
      %v384 = vunpack.c.l.b16 %v316
      %v385 = vunpack.c.l.b16 %v317
      %v386 = vunpack.c.l.b16 %v318
      %v387 = vunpack.c.l.b16 %v319
      %v388 = vunpack.c.l.b16 %v320
      %v389 = vunpack.c.l.b16 %v321
      %v390 = vunpack.c.l.b16 %v322
      %v391 = vpack.c.b16 %v360, %v359
      %v392 = vpack.c.b16 %v362, %v361
      %v393 = vpack.c.b16 %v364, %v363
      %v394 = vpack.c.b16 %v366, %v365
      %v395 = vpack.c.b16 %v368, %v367
      %v396 = vpack.c.b16 %v370, %v369
      %v397 = vpack.c.b16 %v372, %v371
      %v398 = vpack.c.b16 %v374, %v373
      %v399 = vpack.c.b16 %v376, %v375
      %v400 = vpack.c.b16 %v378, %v377
      %v401 = vpack.c.b16 %v380, %v379
      %v402 = vpack.c.b16 %v382, %v381
      %v403 = vpack.c.b16 %v384, %v383
      %v404 = vpack.c.b16 %v386, %v385
      %v405 = vpack.c.b16 %v388, %v387
      %v406 = vpack.c.b16 %v390, %v389
      %v411 = vunpack.c.l.b16 %v323
      %v412 = vunpack.c.l.b16 %v324
      %v413 = vunpack.c.l.b16 %v325
      %v414 = vunpack.c.l.b16 %v326
      %v415 = vpack.c.b16 %v412, %v411
      %v416 = vpack.c.b16 %v414, %v413
      %vm419 = vcmask 261120
      %v421 = vsel %vm419, %v391, 0
      %v424 = vsel %vm419, %v392, 0
      %v427 = vsel %vm419, %v393, 0
      %v430 = vsel %vm419, %v394, 0
      %v433 = vsel %vm419, %v395, 0
      %v436 = vsel %vm419, %v396, 0
      %v439 = vsel %vm419, %v397, 0
      %v442 = vsel %vm419, %v398, 0
      %v445 = vsel %vm419, %v399, 0
      %v448 = vsel %vm419, %v400, 0
      %v451 = vsel %vm419, %v401, 0
      %v454 = vsel %vm419, %v402, 0
      %v457 = vsel %vm419, %v403, 0
      %v460 = vsel %vm419, %v404, 0
      %v463 = vsel %vm419, %v405, 0
      %v466 = vsel %vm419, %v406, 0
      %468 = vmatprep.subr.bf16.mxu0 0
      %469 = vmatpush1.bf16.msra.mxu0 %v415
      %470 = vmatprep.subr.bf16.mxu0 0
      %471 = vmatpush1.bf16.msra.mxu0 %v416
      %472 = vmatprep.subr.bf16.mxu0 0
      %473 = vmatpush1.bf16.msra.mxu0 0
      %474 = vmatprep.subr.bf16.mxu0 0
      %475 = vmatpush1.bf16.msra.mxu0 0
      %476 = vmatprep.subr.bf16.mxu0 0
      %477 = vmatpush1.bf16.msra.mxu0 0
      %478 = vmatprep.subr.bf16.mxu0 0
      %479 = vmatpush1.bf16.msra.mxu0 0
      %480 = vmatprep.subr.bf16.mxu0 0
      %481 = vmatpush1.bf16.msra.mxu0 0
      %482 = vmatprep.subr.bf16.mxu0 0
      %483 = vmatpush1.bf16.msra.mxu0 0
      %484 = vmatprep.subr.bf16.mxu0 0
      %485 = vmatpush1.bf16.msra.mxu0 0
      %486 = vmatprep.subr.bf16.mxu0 0
      %487 = vmatpush1.bf16.msra.mxu0 0
      %488 = vmatprep.subr.bf16.mxu0 0
      %489 = vmatpush1.bf16.msra.mxu0 0
      %490 = vmatprep.subr.bf16.mxu0 0
      %491 = vmatpush1.bf16.msra.mxu0 0
      %492 = vmatprep.subr.bf16.mxu0 0
      %493 = vmatpush1.bf16.msra.mxu0 0
      %494 = vmatprep.subr.bf16.mxu0 0
      %495 = vmatpush1.bf16.msra.mxu0 0
      %496 = vmatprep.subr.bf16.mxu0 0
      %497 = vmatpush1.bf16.msra.mxu0 0
      %498 = vmatprep.subr.bf16.mxu0 0
      %499 = vmatpush1.bf16.msra.mxu0 0
      %500 = vmatprep.mubr.bf16.mxu0 0
      %501 = vmatmul.mubr.bf16.gmra.mrb[0].mxu0 %v421
      %v502 = vpop.f32.mrb[0].mxu0
      %v503 = vadd.f32 0.0, %v502
      %v504 = vpop.f32.mrb[0].mxu0
      %v505 = vpop.f32.mrb[0].mxu0
      %v506 = vadd.f32 0.0, %v505
      %v507 = vpop.f32.mrb[0].mxu0
      %508 = vmatprep.mubr.bf16.mxu0 0
      %509 = vmatmul.mubr.bf16.gmra.mrb[0].mxu0 %v424
      %v510 = vpop.f32.mrb[0].mxu0
      %v511 = vadd.f32 0.0, %v510
      %v512 = vpop.f32.mrb[0].mxu0
      %v513 = vpop.f32.mrb[0].mxu0
      %v514 = vadd.f32 0.0, %v513
      %v515 = vpop.f32.mrb[0].mxu0
      %516 = vmatprep.mubr.bf16.mxu0 0
      %517 = vmatmul.mubr.bf16.gmra.mrb[0].mxu0 %v427
      %v518 = vpop.f32.mrb[0].mxu0
      %v519 = vadd.f32 0.0, %v518
      %v520 = vpop.f32.mrb[0].mxu0
      %v521 = vpop.f32.mrb[0].mxu0
      %v522 = vadd.f32 0.0, %v521
      %v523 = vpop.f32.mrb[0].mxu0
      %524 = vmatprep.mubr.bf16.mxu0 0
      %525 = vmatmul.mubr.bf16.gmra.mrb[0].mxu0 %v430
      %v526 = vpop.f32.mrb[0].mxu0
      %v527 = vadd.f32 0.0, %v526
      %v528 = vpop.f32.mrb[0].mxu0
      %v529 = vpop.f32.mrb[0].mxu0
      %v530 = vadd.f32 0.0, %v529
      %v531 = vpop.f32.mrb[0].mxu0
      %532 = vmatprep.mubr.bf16.mxu0 0
      %533 = vmatmul.mubr.bf16.gmra.mrb[0].mxu0 %v433
      %v534 = vpop.f32.mrb[0].mxu0
      %v535 = vadd.f32 0.0, %v534
      %v536 = vpop.f32.mrb[0].mxu0
      %v537 = vpop.f32.mrb[0].mxu0
      %v538 = vadd.f32 0.0, %v537
      %v539 = vpop.f32.mrb[0].mxu0
      %540 = vmatprep.mubr.bf16.mxu0 0
      %541 = vmatmul.mubr.bf16.gmra.mrb[0].mxu0 %v436
      %v542 = vpop.f32.mrb[0].mxu0
      %v543 = vadd.f32 0.0, %v542
      %v544 = vpop.f32.mrb[0].mxu0
      %v545 = vpop.f32.mrb[0].mxu0
      %v546 = vadd.f32 0.0, %v545
      %v547 = vpop.f32.mrb[0].mxu0
      %548 = vmatprep.mubr.bf16.mxu0 0
      %549 = vmatmul.mubr.bf16.gmra.mrb[0].mxu0 %v439
      %v550 = vpop.f32.mrb[0].mxu0
      %v551 = vadd.f32 0.0, %v550
      %v552 = vpop.f32.mrb[0].mxu0
      %v553 = vpop.f32.mrb[0].mxu0
      %v554 = vadd.f32 0.0, %v553
      %v555 = vpop.f32.mrb[0].mxu0
      %556 = vmatprep.mubr.bf16.mxu0 0
      %557 = vmatmul.mubr.bf16.gmra.mrb[0].mxu0 %v442
      %v558 = vpop.f32.mrb[0].mxu0
      %v559 = vadd.f32 0.0, %v558
      %v560 = vpop.f32.mrb[0].mxu0
      %v561 = vpop.f32.mrb[0].mxu0
      %v562 = vadd.f32 0.0, %v561
      %v563 = vpop.f32.mrb[0].mxu0
      %564 = vmatprep.mubr.bf16.mxu0 0
      %565 = vmatmul.mubr.bf16.gmra.mrb[0].mxu0 %v445
      %v566 = vpop.f32.mrb[0].mxu0
      %v567 = vadd.f32 0.0, %v566
      %v568 = vpop.f32.mrb[0].mxu0
      %v569 = vpop.f32.mrb[0].mxu0
      %v570 = vadd.f32 0.0, %v569
      %v571 = vpop.f32.mrb[0].mxu0
      %572 = vmatprep.mubr.bf16.mxu0 0
      %573 = vmatmul.mubr.bf16.gmra.mrb[0].mxu0 %v448
      %v574 = vpop.f32.mrb[0].mxu0
      %v575 = vadd.f32 0.0, %v574
      %v576 = vpop.f32.mrb[0].mxu0
      %v577 = vpop.f32.mrb[0].mxu0
      %v578 = vadd.f32 0.0, %v577
      %v579 = vpop.f32.mrb[0].mxu0
      %580 = vmatprep.mubr.bf16.mxu0 0
      %581 = vmatmul.mubr.bf16.gmra.mrb[0].mxu0 %v451
      %v582 = vpop.f32.mrb[0].mxu0
      %v583 = vadd.f32 0.0, %v582
      %v584 = vpop.f32.mrb[0].mxu0
      %v585 = vpop.f32.mrb[0].mxu0
      %v586 = vadd.f32 0.0, %v585
      %v587 = vpop.f32.mrb[0].mxu0
      %588 = vmatprep.mubr.bf16.mxu0 0
      %589 = vmatmul.mubr.bf16.gmra.mrb[0].mxu0 %v454
      %v590 = vpop.f32.mrb[0].mxu0
      %v591 = vadd.f32 0.0, %v590
      %v592 = vpop.f32.mrb[0].mxu0
      %v593 = vpop.f32.mrb[0].mxu0
      %v594 = vadd.f32 0.0, %v593
      %v595 = vpop.f32.mrb[0].mxu0
      %596 = vmatprep.mubr.bf16.mxu0 0
      %597 = vmatmul.mubr.bf16.gmra.mrb[0].mxu0 %v457
      %v598 = vpop.f32.mrb[0].mxu0
      %v599 = vadd.f32 0.0, %v598
      %v600 = vpop.f32.mrb[0].mxu0
      %v601 = vpop.f32.mrb[0].mxu0
      %v602 = vadd.f32 0.0, %v601
      %v603 = vpop.f32.mrb[0].mxu0
      %604 = vmatprep.mubr.bf16.mxu0 0
      %605 = vmatmul.mubr.bf16.gmra.mrb[0].mxu0 %v460
      %v606 = vpop.f32.mrb[0].mxu0
      %v607 = vadd.f32 0.0, %v606
      %v608 = vpop.f32.mrb[0].mxu0
      %v609 = vpop.f32.mrb[0].mxu0
      %v610 = vadd.f32 0.0, %v609
      %v611 = vpop.f32.mrb[0].mxu0
      %612 = vmatprep.mubr.bf16.mxu0 0
      %613 = vmatmul.mubr.bf16.gmra.mrb[0].mxu0 %v463
      %v614 = vpop.f32.mrb[0].mxu0
      %v615 = vadd.f32 0.0, %v614
      %v616 = vpop.f32.mrb[0].mxu0
      %v617 = vpop.f32.mrb[0].mxu0
      %v618 = vadd.f32 0.0, %v617
      %v619 = vpop.f32.mrb[0].mxu0
      %620 = vmatprep.mubr.bf16.mxu0 0
      %621 = vmatmul.mubr.bf16.gmra.mrb[0].mxu0 %v466
      %v622 = vpop.f32.mrb[0].mxu0
      %v623 = vadd.f32 0.0, %v622
      %v624 = vpop.f32.mrb[0].mxu0
      %v625 = vpop.f32.mrb[0].mxu0
      %v626 = vadd.f32 0.0, %v625
      %v627 = vpop.f32.mrb[0].mxu0
      %628 = vdwg.mxu0
      %v661 = vunpack.c.l.b16 %v251
      %v662 = vunpack.c.l.b16 %v252
      %v663 = vunpack.c.l.b16 %v253
      %v664 = vunpack.c.l.b16 %v254
      %v665 = vunpack.c.l.b16 %v255
      %v666 = vunpack.c.l.b16 %v256
      %v667 = vunpack.c.l.b16 %v257
      %v668 = vunpack.c.l.b16 %v258
      %v669 = vunpack.c.l.b16 %v259
      %v670 = vunpack.c.l.b16 %v260
      %v671 = vunpack.c.l.b16 %v261
      %v672 = vunpack.c.l.b16 %v262
      %v673 = vunpack.c.l.b16 %v263
      %v674 = vunpack.c.l.b16 %v264
      %v675 = vunpack.c.l.b16 %v265
      %v676 = vunpack.c.l.b16 %v266
      %v677 = vunpack.c.l.b16 %v267
      %v678 = vunpack.c.l.b16 %v268
      %v679 = vunpack.c.l.b16 %v269
      %v680 = vunpack.c.l.b16 %v270
      %v681 = vunpack.c.l.b16 %v271
      %v682 = vunpack.c.l.b16 %v272
      %v683 = vunpack.c.l.b16 %v273
      %v684 = vunpack.c.l.b16 %v274
      %v685 = vunpack.c.l.b16 %v275
      %v686 = vunpack.c.l.b16 %v276
      %v687 = vunpack.c.l.b16 %v277
      %v688 = vunpack.c.l.b16 %v278
      %v689 = vunpack.c.l.b16 %v279
      %v690 = vunpack.c.l.b16 %v280
      %v691 = vunpack.c.l.b16 %v281
      %v692 = vunpack.c.l.b16 %v282
      %v693 = vpack.c.b16 %v662, %v661
      %v694 = vpack.c.b16 %v664, %v663
      %v695 = vpack.c.b16 %v666, %v665
      %v696 = vpack.c.b16 %v668, %v667
      %v697 = vpack.c.b16 %v670, %v669
      %v698 = vpack.c.b16 %v672, %v671
      %v699 = vpack.c.b16 %v674, %v673
      %v700 = vpack.c.b16 %v676, %v675
      %v701 = vpack.c.b16 %v678, %v677
      %v702 = vpack.c.b16 %v680, %v679
      %v703 = vpack.c.b16 %v682, %v681
      %v704 = vpack.c.b16 %v684, %v683
      %v705 = vpack.c.b16 %v686, %v685
      %v706 = vpack.c.b16 %v688, %v687
      %v707 = vpack.c.b16 %v690, %v689
      %v708 = vpack.c.b16 %v692, %v691
      %v717 = vunpack.c.l.b16 %v283
      %v718 = vunpack.c.l.b16 %v284
      %v719 = vunpack.c.l.b16 %v285
      %v720 = vunpack.c.l.b16 %v286
      %v721 = vunpack.c.l.b16 %v287
      %v722 = vunpack.c.l.b16 %v288
      %v723 = vunpack.c.l.b16 %v289
      %v724 = vunpack.c.l.b16 %v290
      %v725 = vpack.c.b16 %v718, %v717
      %v726 = vpack.c.b16 %v720, %v719
      %v727 = vpack.c.b16 %v722, %v721
      %v728 = vpack.c.b16 %v724, %v723
      %vm733 = vcmask 523264
      %v735 = vsel %vm733, %v693, 0
      %v738 = vsel %vm733, %v694, 0
      %v741 = vsel %vm733, %v695, 0
      %v744 = vsel %vm733, %v696, 0
      %v747 = vsel %vm733, %v697, 0
      %v750 = vsel %vm733, %v698, 0
      %v753 = vsel %vm733, %v699, 0
      %v756 = vsel %vm733, %v700, 0
      %v759 = vsel %vm733, %v701, 0
      %v762 = vsel %vm733, %v702, 0
      %v765 = vsel %vm733, %v703, 0
      %v768 = vsel %vm733, %v704, 0
      %v771 = vsel %vm733, %v705, 0
      %v774 = vsel %vm733, %v706, 0
      %v777 = vsel %vm733, %v707, 0
      %v780 = vsel %vm733, %v708, 0
      %782 = vmatprep.subr.bf16.mxu0 0
      %783 = vmatpush1.bf16.msra.mxu0 %v725
      %784 = vmatprep.subr.bf16.mxu0 0
      %785 = vmatpush1.bf16.msra.mxu0 %v726
      %786 = vmatprep.subr.bf16.mxu0 0
      %787 = vmatpush1.bf16.msra.mxu0 %v727
      %788 = vmatprep.subr.bf16.mxu0 0
      %789 = vmatpush1.bf16.msra.mxu0 %v728
      %790 = vmatprep.subr.bf16.mxu0 0
      %791 = vmatpush1.bf16.msra.mxu0 0
      %792 = vmatprep.subr.bf16.mxu0 0
      %793 = vmatpush1.bf16.msra.mxu0 0
      %794 = vmatprep.subr.bf16.mxu0 0
      %795 = vmatpush1.bf16.msra.mxu0 0
      %796 = vmatprep.subr.bf16.mxu0 0
      %797 = vmatpush1.bf16.msra.mxu0 0
      %798 = vmatprep.subr.bf16.mxu0 0
      %799 = vmatpush1.bf16.msra.mxu0 0
      %800 = vmatprep.subr.bf16.mxu0 0
      %801 = vmatpush1.bf16.msra.mxu0 0
      %802 = vmatprep.subr.bf16.mxu0 0
      %803 = vmatpush1.bf16.msra.mxu0 0
      %804 = vmatprep.subr.bf16.mxu0 0
      %805 = vmatpush1.bf16.msra.mxu0 0
      %806 = vmatprep.subr.bf16.mxu0 0
      %807 = vmatpush1.bf16.msra.mxu0 0
      %808 = vmatprep.subr.bf16.mxu0 0
      %809 = vmatpush1.bf16.msra.mxu0 0
      %810 = vmatprep.subr.bf16.mxu0 0
      %811 = vmatpush1.bf16.msra.mxu0 0
      %812 = vmatprep.subr.bf16.mxu0 0
      %813 = vmatpush1.bf16.msra.mxu0 0
      %814 = vmatprep.mubr.bf16.mxu0 0
      %815 = vmatmul.mubr.bf16.gmra.mrb[0].mxu0 %v735
      %v816 = vpop.f32.mrb[0].mxu0
      %v817 = vadd.f32 %v503, %v816
      %v818 = vpop.f32.mrb[0].mxu0
      %v819 = vpop.f32.mrb[0].mxu0
      %v820 = vadd.f32 %v506, %v819
      %v821 = vpop.f32.mrb[0].mxu0
      %822 = vmatprep.mubr.bf16.mxu0 0
      %823 = vmatmul.mubr.bf16.gmra.mrb[0].mxu0 %v738
      %v824 = vpop.f32.mrb[0].mxu0
      %v825 = vadd.f32 %v511, %v824
      %v826 = vpop.f32.mrb[0].mxu0
      %v827 = vpop.f32.mrb[0].mxu0
      %v828 = vadd.f32 %v514, %v827
      %v829 = vpop.f32.mrb[0].mxu0
      %830 = vmatprep.mubr.bf16.mxu0 0
      %831 = vmatmul.mubr.bf16.gmra.mrb[0].mxu0 %v741
      %v832 = vpop.f32.mrb[0].mxu0
      %v833 = vadd.f32 %v519, %v832
      %v834 = vpop.f32.mrb[0].mxu0
      %v835 = vpop.f32.mrb[0].mxu0
      %v836 = vadd.f32 %v522, %v835
      %v837 = vpop.f32.mrb[0].mxu0
      %838 = vmatprep.mubr.bf16.mxu0 0
      %839 = vmatmul.mubr.bf16.gmra.mrb[0].mxu0 %v744
      %v840 = vpop.f32.mrb[0].mxu0
      %v841 = vadd.f32 %v527, %v840
      %v842 = vpop.f32.mrb[0].mxu0
      %v843 = vpop.f32.mrb[0].mxu0
      %v844 = vadd.f32 %v530, %v843
      %v845 = vpop.f32.mrb[0].mxu0
      %846 = vmatprep.mubr.bf16.mxu0 0
      %847 = vmatmul.mubr.bf16.gmra.mrb[0].mxu0 %v747
      %v848 = vpop.f32.mrb[0].mxu0
      %v849 = vadd.f32 %v535, %v848
      %v850 = vpop.f32.mrb[0].mxu0
      %v851 = vpop.f32.mrb[0].mxu0
      %v852 = vadd.f32 %v538, %v851
      %v853 = vpop.f32.mrb[0].mxu0
      %854 = vmatprep.mubr.bf16.mxu0 0
      %855 = vmatmul.mubr.bf16.gmra.mrb[0].mxu0 %v750
      %v856 = vpop.f32.mrb[0].mxu0
      %v857 = vadd.f32 %v543, %v856
      %v858 = vpop.f32.mrb[0].mxu0
      %v859 = vpop.f32.mrb[0].mxu0
      %v860 = vadd.f32 %v546, %v859
      %v861 = vpop.f32.mrb[0].mxu0
      %862 = vmatprep.mubr.bf16.mxu0 0
      %863 = vmatmul.mubr.bf16.gmra.mrb[0].mxu0 %v753
      %v864 = vpop.f32.mrb[0].mxu0
      %v865 = vadd.f32 %v551, %v864
      %v866 = vpop.f32.mrb[0].mxu0
      %v867 = vpop.f32.mrb[0].mxu0
      %v868 = vadd.f32 %v554, %v867
      %v869 = vpop.f32.mrb[0].mxu0
      %870 = vmatprep.mubr.bf16.mxu0 0
      %871 = vmatmul.mubr.bf16.gmra.mrb[0].mxu0 %v756
      %v872 = vpop.f32.mrb[0].mxu0
      %v873 = vadd.f32 %v559, %v872
      %v874 = vpop.f32.mrb[0].mxu0
      %v875 = vpop.f32.mrb[0].mxu0
      %v876 = vadd.f32 %v562, %v875
      %v877 = vpop.f32.mrb[0].mxu0
      %878 = vmatprep.mubr.bf16.mxu0 0
      %879 = vmatmul.mubr.bf16.gmra.mrb[0].mxu0 %v759
      %v880 = vpop.f32.mrb[0].mxu0
      %v881 = vadd.f32 %v567, %v880
      %v882 = vpop.f32.mrb[0].mxu0
      %v883 = vpop.f32.mrb[0].mxu0
      %v884 = vadd.f32 %v570, %v883
      %v885 = vpop.f32.mrb[0].mxu0
      %886 = vmatprep.mubr.bf16.mxu0 0
      %887 = vmatmul.mubr.bf16.gmra.mrb[0].mxu0 %v762
      %v888 = vpop.f32.mrb[0].mxu0
      %v889 = vadd.f32 %v575, %v888
      %v890 = vpop.f32.mrb[0].mxu0
      %v891 = vpop.f32.mrb[0].mxu0
      %v892 = vadd.f32 %v578, %v891
      %v893 = vpop.f32.mrb[0].mxu0
      %894 = vmatprep.mubr.bf16.mxu0 0
      %895 = vmatmul.mubr.bf16.gmra.mrb[0].mxu0 %v765
      %v896 = vpop.f32.mrb[0].mxu0
      %v897 = vadd.f32 %v583, %v896
      %v898 = vpop.f32.mrb[0].mxu0
      %v899 = vpop.f32.mrb[0].mxu0
      %v900 = vadd.f32 %v586, %v899
      %v901 = vpop.f32.mrb[0].mxu0
      %902 = vmatprep.mubr.bf16.mxu0 0
      %903 = vmatmul.mubr.bf16.gmra.mrb[0].mxu0 %v768
      %v904 = vpop.f32.mrb[0].mxu0
      %v905 = vadd.f32 %v591, %v904
      %v906 = vpop.f32.mrb[0].mxu0
      %v907 = vpop.f32.mrb[0].mxu0
      %v908 = vadd.f32 %v594, %v907
      %v909 = vpop.f32.mrb[0].mxu0
      %910 = vmatprep.mubr.bf16.mxu0 0
      %911 = vmatmul.mubr.bf16.gmra.mrb[0].mxu0 %v771
      %v912 = vpop.f32.mrb[0].mxu0
      %v913 = vadd.f32 %v599, %v912
      %v914 = vpop.f32.mrb[0].mxu0
      %v915 = vpop.f32.mrb[0].mxu0
      %v916 = vadd.f32 %v602, %v915
      %v917 = vpop.f32.mrb[0].mxu0
      %918 = vmatprep.mubr.bf16.mxu0 0
      %919 = vmatmul.mubr.bf16.gmra.mrb[0].mxu0 %v774
      %v920 = vpop.f32.mrb[0].mxu0
      %v921 = vadd.f32 %v607, %v920
      %v922 = vpop.f32.mrb[0].mxu0
      %v923 = vpop.f32.mrb[0].mxu0
      %v924 = vadd.f32 %v610, %v923
      %v925 = vpop.f32.mrb[0].mxu0
      %926 = vmatprep.mubr.bf16.mxu0 0
      %927 = vmatmul.mubr.bf16.gmra.mrb[0].mxu0 %v777
      %v928 = vpop.f32.mrb[0].mxu0
      %v929 = vadd.f32 %v615, %v928
      %v930 = vpop.f32.mrb[0].mxu0
      %v931 = vpop.f32.mrb[0].mxu0
      %v932 = vadd.f32 %v618, %v931
      %v933 = vpop.f32.mrb[0].mxu0
      %934 = vmatprep.mubr.bf16.mxu0 0
      %935 = vmatmul.mubr.bf16.gmra.mrb[0].mxu0 %v780
      %v936 = vpop.f32.mrb[0].mxu0
      %v937 = vadd.f32 %v623, %v936
      %v938 = vpop.f32.mrb[0].mxu0
      %v939 = vpop.f32.mrb[0].mxu0
      %v940 = vadd.f32 %v626, %v939
      %v941 = vpop.f32.mrb[0].mxu0
      %942 = vdwg.mxu0
      %v943 = vld [vmem:[%s4] sm:$0x1]
      %v945 = vlaneseq
      %v946 = vshrl.u32 %v945, 7
      %v947 = vsub.s32 0, %v946
      %v948 = vrot.slane %v943, %v947
      %v950 = vadd.f32 %v817, %v948
      %v951 = vadd.f32 %v820, %v948
      %v952 = vadd.f32 %v825, %v948
      %v953 = vadd.f32 %v828, %v948
      %v954 = vadd.f32 %v833, %v948
      %v955 = vadd.f32 %v836, %v948
      %v956 = vadd.f32 %v841, %v948
      %v957 = vadd.f32 %v844, %v948
      %v958 = vadd.f32 %v849, %v948
      %v959 = vadd.f32 %v852, %v948
      %v960 = vadd.f32 %v857, %v948
      %v961 = vadd.f32 %v860, %v948
      %v962 = vadd.f32 %v865, %v948
      %v963 = vadd.f32 %v868, %v948
      %v964 = vadd.f32 %v873, %v948
      %v965 = vadd.f32 %v876, %v948
      %v966 = vadd.f32 %v881, %v948
      %v967 = vadd.f32 %v884, %v948
      %v968 = vadd.f32 %v889, %v948
      %v969 = vadd.f32 %v892, %v948
      %v970 = vadd.f32 %v897, %v948
      %v971 = vadd.f32 %v900, %v948
      %v972 = vadd.f32 %v905, %v948
      %v973 = vadd.f32 %v908, %v948
      %v974 = vadd.f32 %v913, %v948
      %v975 = vadd.f32 %v916, %v948
      %v976 = vadd.f32 %v921, %v948
      %v977 = vadd.f32 %v924, %v948
      %v978 = vadd.f32 %v929, %v948
      %v979 = vadd.f32 %v932, %v948
      %v980 = vadd.f32 %v937, %v948
      %v981 = vadd.f32 %v940, %v948
      %v982 = vmax.f32 %v950, 0.0
      %v983 = vmax.f32 %v951, 0.0
      %v984 = vmax.f32 %v952, 0.0
      %v985 = vmax.f32 %v953, 0.0
      %v986 = vmax.f32 %v954, 0.0
      %v987 = vmax.f32 %v955, 0.0
      %v988 = vmax.f32 %v956, 0.0
      %v989 = vmax.f32 %v957, 0.0
      %v990 = vmax.f32 %v958, 0.0
      %v991 = vmax.f32 %v959, 0.0
      %v992 = vmax.f32 %v960, 0.0
      %v993 = vmax.f32 %v961, 0.0
      %v994 = vmax.f32 %v962, 0.0
      %v995 = vmax.f32 %v963, 0.0
      %v996 = vmax.f32 %v964, 0.0
      %v997 = vmax.f32 %v965, 0.0
      %v998 = vmax.f32 %v966, 0.0
      %v999 = vmax.f32 %v967, 0.0
      %v1000 = vmax.f32 %v968, 0.0
      %v1001 = vmax.f32 %v969, 0.0
      %v1002 = vmax.f32 %v970, 0.0
      %v1003 = vmax.f32 %v971, 0.0
      %v1004 = vmax.f32 %v972, 0.0
      %v1005 = vmax.f32 %v973, 0.0
      %v1006 = vmax.f32 %v974, 0.0
      %v1007 = vmax.f32 %v975, 0.0
      %v1008 = vmax.f32 %v976, 0.0
      %v1009 = vmax.f32 %v977, 0.0
      %v1010 = vmax.f32 %v978, 0.0
      %v1011 = vmax.f32 %v979, 0.0
      %v1012 = vmax.f32 %v980, 0.0
      %v1013 = vmax.f32 %v981, 0.0
      %1014 = vst.msk [vmem:[%s248] sm:$0xff] %vm419, %v982
      %1015 = vst.msk [vmem:[%s248 + $0x8] sm:$0xff] %vm419, %v983
      %1016 = vst.msk [vmem:[%s248 + $0x10] sm:$0xff] %vm419, %v984
      %1017 = vst.msk [vmem:[%s248 + $0x18] sm:$0xff] %vm419, %v985
      %1018 = vst.msk [vmem:[%s248 + $0x20] sm:$0xff] %vm419, %v986
      %1019 = vst.msk [vmem:[%s248 + $0x28] sm:$0xff] %vm419, %v987
      %1020 = vst.msk [vmem:[%s248 + $0x30] sm:$0xff] %vm419, %v988
      %1021 = vst.msk [vmem:[%s248 + $0x38] sm:$0xff] %vm419, %v989
      %1022 = vst.msk [vmem:[%s248 + $0x40] sm:$0xff] %vm419, %v990
      %1023 = vst.msk [vmem:[%s248 + $0x48] sm:$0xff] %vm419, %v991
      %1024 = vst.msk [vmem:[%s248 + $0x50] sm:$0xff] %vm419, %v992
      %1025 = vst.msk [vmem:[%s248 + $0x58] sm:$0xff] %vm419, %v993
      %1026 = vst.msk [vmem:[%s248 + $0x60] sm:$0xff] %vm419, %v994
      %1027 = vst.msk [vmem:[%s248 + $0x68] sm:$0xff] %vm419, %v995
      %1028 = vst.msk [vmem:[%s248 + $0x70] sm:$0xff] %vm419, %v996
      %1029 = vst.msk [vmem:[%s248 + $0x78] sm:$0xff] %vm419, %v997
      %1030 = vst.msk [vmem:[%s248 + $0x80] sm:$0xff] %vm419, %v998
      %1031 = vst.msk [vmem:[%s248 + $0x88] sm:$0xff] %vm419, %v999
      %1032 = vst.msk [vmem:[%s248 + $0x90] sm:$0xff] %vm419, %v1000
      %1033 = vst.msk [vmem:[%s248 + $0x98] sm:$0xff] %vm419, %v1001
      %1034 = vst.msk [vmem:[%s248 + $0xa0] sm:$0xff] %vm419, %v1002
      %1035 = vst.msk [vmem:[%s248 + $0xa8] sm:$0xff] %vm419, %v1003
      %1036 = vst.msk [vmem:[%s248 + $0xb0] sm:$0xff] %vm419, %v1004
      %1037 = vst.msk [vmem:[%s248 + $0xb8] sm:$0xff] %vm419, %v1005
      %1038 = vst.msk [vmem:[%s248 + $0xc0] sm:$0xff] %vm419, %v1006
      %1039 = vst.msk [vmem:[%s248 + $0xc8] sm:$0xff] %vm419, %v1007
      %1040 = vst.msk [vmem:[%s248 + $0xd0] sm:$0xff] %vm419, %v1008
      %1041 = vst.msk [vmem:[%s248 + $0xd8] sm:$0xff] %vm419, %v1009
      %1042 = vst.msk [vmem:[%s248 + $0xe0] sm:$0xff] %vm419, %v1010
      %1043 = vst.msk [vmem:[%s248 + $0xe8] sm:$0xff] %vm419, %v1011
      %1044 = vst.msk [vmem:[%s248 + $0xf0] sm:$0xff] %vm419, %v1012
      %1045 = vst.msk [vmem:[%s248 + $0xf8] sm:$0xff] %vm419, %v1013
      %s1046 = smul.u32 32, %s16
      %p1047 = scmp.lt.s32.totalorder %s1046, 63
      %s1048 = scalar_select %p1047, %s1046, 63
      %s1049 = smul.addr %s1048, 8
      %s1050 = scalar_lea.vmem %s5, %s1049
      // Predicated region
      $region41: #{hourglass_forward.11} parent=39 // pred_check
        %p1051 = pneg %p149
      $region42: #{hourglass_forward.11} parent=39 // pred_check_branch
        %1053 = sbr.rel (%p1051) target = $region44
      $region43: #{hourglass_forward.11} parent=39 // pred_region
        %s1054 = smul.u32 32, %s16
      $region44: #{hourglass_forward.11} parent=39 // pred_fallthru
        _
    $region40: #{hourglass_forward.11} parent=5 // pred_fallthru
      _
    %p1055 = scmp.le.s32.totalorder 2, %s11
    // Predicated region
    $region45: #{hourglass_forward.11} parent=5 // pred_check
      %p1056 = pneg %p1055
    $region46: #{hourglass_forward.11} parent=5 // pred_check_branch
      %1058 = sbr.rel (%p1056) target = $region48
    $region47: #{hourglass_forward.11} parent=5 // pred_region
      %s1059 = ssub.s32 %s11, 2
      // Predicated region
      $region49: #{hourglass_forward.11} parent=47 // pred_check
        %p1060 = pneg %p155
      $region50: #{hourglass_forward.11} parent=47 // pred_check_branch
        %1062 = sbr.rel (%p1060) target = $region52
      $region51: #{hourglass_forward.11} parent=47 // pred_region
        %s1063 = smul.u32 32, %s17
        %p1064 = scmp.lt.s32.totalorder %s1063, 63
        %s1065 = scalar_select %p1064, %s1063, 63
        %s1066 = smul.addr %s1065, 8
        %s1067 = scalar_lea.vmem %s5, %s1066
      $region52: #{hourglass_forward.11} parent=47 // pred_fallthru
        _
    $region48: #{hourglass_forward.11} parent=5 // pred_fallthru
      _
  $region6: #{hourglass_forward.11} parent=0 // loop_footer
    %s15 = sadd.s32 1, %s11
  $region7: #{hourglass_forward.11} parent=0 // loop_footer_branch
    %10 = sbr.rel target = $region3
  $region8: #{hourglass_forward.11} parent=0 // loop_exit
    _

</llo_original>
